<compile_context>
chip_gen: v6e
topology: v6e:2x2x1
jax: 0.10.0
libtpu: 0.0.40
codegen_flags: <defaults>
</compile_context>

<pallas_src>
import functools
import numpy as np

import jax
import jax.numpy as jnp
from jax import lax
from jax.experimental import pallas as pl
from jax.experimental.pallas import tpu as pltpu


@functools.lru_cache(maxsize=None)
def _spread_matrix(scale, w_tile, depth):
    """0/1 lane-dilation matrix, shape (s^2*Wt*D, Wt*s*D*s).

    M[(s2*s+s3)*Wt*D + w*D + d, (w*s+s2)*(D*s) + (d*s+s3)] = 1
    Right-multiplying an (M, s^2*Wt*D) LHS whose lane blocks are the
    per-(s2, s3) input slabs produces the dilated (w_out, d_out) lane layout.
    """
    wd = w_tile * depth
    wd_out = (w_tile * scale) * (depth * scale)
    m = np.zeros((scale * scale * wd, wd_out), np.float32)
    for s2 in range(scale):
        for s3 in range(scale):
            k = s2 * scale + s3
            for w in range(w_tile):
                for d in range(depth):
                    src = k * wd + w * depth + d
                    dst = (w * scale + s2) * (depth * scale) + (d * scale + s3)
                    m[src, dst] = 1.0
    return m


@functools.lru_cache(maxsize=None)
def _row_interleave_matrix(scale, height, n_tile):
    """0/1 permutation, shape (n_tile*H*s, n_tile*s*H).

    E[n*(H*s) + h*s + s1, n*(s*H) + s1*H + h] = 1 : maps LHS rows ordered
    (n, s1, h) to output rows ordered (n, h*s + s1).
    """
    hs = height * scale
    m = np.zeros((n_tile * hs, n_tile * hs), np.float32)
    for n in range(n_tile):
        for s1 in range(scale):
            for h in range(height):
                m[n * hs + h * scale + s1, n * hs + s1 * height + h] = 1.0
    return m


def _choose_w_tile(W, D, scale):
    """Smallest W tile (divisor of W) whose input minor dim Wt*D is 128-aligned
    and whose contraction K = s^2*Wt*D is >= 256; otherwise the full W.
    Bounds the spread-matrix VMEM footprint and the MXU FLOP amplification."""
    for wt in range(1, W):
        if W % wt:
            continue
        wd = wt * D
        if wd % 128 == 0 and scale * scale * wd >= 256:
            return wt
    return W


def _choose_n_tile(n_out, H, scale, target_m=256):
    """Largest divisor of n_out with matmul M = n_tile*scale*H <= target_m."""
    best = 1
    for nt in range(1, n_out + 1):
        if n_out % nt == 0 and nt * scale * H <= target_m:
            best = nt
    return best


def _pixel_shuffle_kernel(x_ref, e_ref, p_ref, o_ref, *, scale, n_tile, height,
                          wd_t, compute_dtype, precision):
    # x_ref: (1, n_tile, s, s^2, H, Wt*D)
    # e_ref: (n_tile*H*s, n_tile*s*H)        0/1 row-interleave permutation
    # p_ref: (s^2*Wt*D, Wt*s*D*s)            0/1 lane-dilation matrix
    # o_ref: (1, n_tile, H*s, Wt*s*D*s)
    s2c = scale * scale

    # Build the fused LHS: rows ordered (n, s1, h), lane blocks ordered by
    # k = s2*scale + s3.  One lane-concatenate of the s^2 slabs; the leading
    # reshape is a free row-major merge (H is the full sublane-tile extent).
    pieces = [x_ref[0, :, :, k, :, :] for k in range(s2c)]  # (n_tile, s, H, Wt*D)
    lhs = jnp.concatenate(pieces, axis=-1)                  # (n_tile, s, H, s^2*Wt*D)
    lhs = lhs.reshape(n_tile * scale * height, s2c * wd_t).astype(compute_dtype)

    # (1) Row interleave (n, s1, h) -> (n, h*s + s1) on the MXU.
    #     Exact: 0/1 permutation, exactly one nonzero contribution per row.
    lhs = jnp.dot(e_ref[...], lhs, preferred_element_type=jnp.float32,
                  precision=precision).astype(compute_dtype)

    # (2) Fused lane dilation: a single matmul with K = s^2*Wt*D.
    #     Exact for the same reason (one nonzero per output column).
    out2d = jnp.dot(lhs, p_ref[...], preferred_element_type=jnp.float32,
                    precision=precision)

    # Dense, unmasked store: minor dim Wt*s*D*s is 128-aligned (or full).
    o_ref[...] = out2d.reshape(o_ref.shape).astype(o_ref.dtype)


def pixel_shuffle_3d(x, scale):
    """Forward pass of PixelShuffle3d for x of shape (B, C, H, W, D)."""
    B, C, H, W, D = x.shape
    s3 = scale ** 3
    s2c = scale * scale
    assert C % s3 == 0, "channels must be divisible by scale**3"
    n_out = C // s3
    WD = W * D
    WD_out = WD * s2c

    w_tile = _choose_w_tile(W, D, scale)
    n_w = W // w_tile
    wd_t = w_tile * D
    wd_t_out = wd_t * s2c

    n_tile = _choose_n_tile(n_out, H, scale)
    n_n = n_out // n_tile
    m_rows = n_tile * scale * H

    # Precision/dtype coupling (exactness relies on it -- see kernel comments).
    if x.dtype == jnp.bfloat16:
        compute_dtype, precision = jnp.bfloat16, lax.Precision.DEFAULT
    else:
        compute_dtype, precision = jnp.float32, lax.Precision.HIGHEST

    spread = jnp.asarray(_spread_matrix(scale, w_tile, D), dtype=compute_dtype)
    rowmat = jnp.asarray(_row_interleave_matrix(scale, H, n_tile),
                         dtype=compute_dtype)

    # Free row-major reinterpretation: channel split + innermost (W, D) merge.
    x6 = x.reshape(B, n_out, scale, s2c, H, WD)

    kernel = functools.partial(
        _pixel_shuffle_kernel, scale=scale, n_tile=n_tile, height=H,
        wd_t=wd_t, compute_dtype=compute_dtype, precision=precision)

    itemsize = np.dtype(x.dtype).itemsize
    cbytes = np.dtype(compute_dtype).itemsize
    blk_in = n_tile * s3 * H * wd_t * itemsize
    blk_out = n_tile * H * scale * wd_t_out * itemsize
    const_bytes = (spread.size + rowmat.size) * cbytes
    vmem_limit = int(min(64 * 2**20,
                         max(8 * 2**20, 6 * (blk_in + blk_out) + 4 * const_bytes)))

    n_steps = B * n_n * n_w
    flops_per_step = 2 * (m_rows * m_rows * (s2c * wd_t)
                          + m_rows * (s2c * wd_t) * wd_t_out)
    cost = pl.CostEstimate(
        flops=int(flops_per_step * n_steps),
        transcendentals=0,
        bytes_accessed=int(2 * x.size * itemsize + const_bytes))

    out = pl.pallas_call(
        kernel,
        out_shape=jax.ShapeDtypeStruct((B, n_out, H * scale, WD_out), x.dtype),
        grid=(B, n_n, n_w),
        in_specs=[
            pl.BlockSpec((1, n_tile, scale, s2c, H, wd_t),
                         lambda b, n, w: (b, n, 0, 0, 0, w)),
            pl.BlockSpec((m_rows, m_rows), lambda b, n, w: (0, 0)),
            pl.BlockSpec((s2c * wd_t, wd_t_out), lambda b, n, w: (0, 0)),
        ],
        out_specs=pl.BlockSpec((1, n_tile, H * scale, wd_t_out),
                               lambda b, n, w: (b, n, 0, w)),
        compiler_params=pltpu.CompilerParams(
            dimension_semantics=("parallel", "parallel", "parallel"),
            vmem_limit_bytes=vmem_limit),
        cost_estimate=cost,
    )(x6, rowmat, spread)

    # Pure row-major reinterpretation back to the module's output shape:
    # (B, n_out, H*s, (W*s)*(D*s)) -> (B, n_out, H*s, W*s, D*s).
    return out.reshape(B, n_out, H * scale, W * scale, D * scale)


def pixel_shuffle_3d_reference(x, scale):
    """Pure-JAX reference mirroring the PyTorch module exactly."""
    B, C, H, W, D = x.shape
    n_out = C // scale ** 3
    xv = x.reshape(B, n_out, scale, scale, scale, H, W, D)
    xp = jnp.transpose(xv, (0, 1, 5, 2, 6, 3, 7, 4))
    return xp.reshape(B, n_out, H * scale, W * scale, D * scale)


if __name__ == "__main__":
    key = jax.random.PRNGKey(0)

    scale = 2
    B, n_out = 2, 4
    C = n_out * scale ** 3          # 32 channels
    H = W = D = 8                   # output: (2, 4, 16, 16, 16)

    x = jax.random.normal(key, (B, C, H, W, D), dtype=jnp.float32)

    fwd = jax.jit(lambda xx: pixel_shuffle_3d(xx, scale))
    out = jax.block_until_ready(fwd(x))

    ref = pixel_shuffle_3d_reference(x, scale)
    assert out.shape == (B, n_out, H * scale, W * scale, D * scale), out.shape
    assert bool(jnp.all(jnp.isfinite(out)))
    assert bool(jnp.allclose(out, ref, atol=1e-5, rtol=1e-5)), float(
        jnp.max(jnp.abs(out - ref)))
    print("KERNEL_OK")
</pallas_src>

<mosaic_0001>
module attributes {stable_mosaic.version = 11 : i64} {
  func.func @_pixel_shuffle_kernel(%arg0: i32, %arg1: i32, %arg2: i32, %arg3: memref<1x4x2x4x8x64xf32, #tpu.memory_space<vmem>>, %arg4: memref<64x64xf32, #tpu.memory_space<vmem>>, %arg5: memref<256x256xf32, #tpu.memory_space<vmem>>, %arg6: memref<1x4x16x256xf32, #tpu.memory_space<vmem>>) attributes {dimension_semantics = [#tpu.dimension_semantics<parallel>, #tpu.dimension_semantics<parallel>, #tpu.dimension_semantics<parallel>], iteration_bounds = array<i64: 2, 1, 1>, scalar_prefetch = 0 : i64, scratch_operands = 0 : i64, tpu.core_type = #tpu.core_type<tc>, window_params = [{transform_indices = @transform_0, window_bounds = array<i64: 1, 4, 2, 4, 8, 64>}, {pipeline_mode = #tpu.pipeline_mode<synchronous>, transform_indices = @transform_1, window_bounds = array<i64: 64, 64>}, {pipeline_mode = #tpu.pipeline_mode<synchronous>, transform_indices = @transform_2, window_bounds = array<i64: 256, 256>}, {transform_indices = @transform_3, window_bounds = array<i64: 1, 4, 16, 256>}]} {
    %c0 = arith.constant 0 : index
    %c0_0 = arith.constant 0 : index
    %c0_1 = arith.constant 0 : index
    %c0_2 = arith.constant 0 : index
    %c0_3 = arith.constant 0 : index
    %c0_4 = arith.constant 0 : index
    %0 = vector.load %arg3[%c0, %c0_0, %c0_1, %c0_2, %c0_3, %c0_4] : memref<1x4x2x4x8x64xf32, #tpu.memory_space<vmem>>, vector<1x4x2x1x8x64xf32>
    %1 = vector.shape_cast %0 : vector<1x4x2x1x8x64xf32> to vector<4x2x8x64xf32>
    %c0_5 = arith.constant 0 : index
    %c0_6 = arith.constant 0 : index
    %c0_7 = arith.constant 0 : index
    %c1 = arith.constant 1 : index
    %c0_8 = arith.constant 0 : index
    %c0_9 = arith.constant 0 : index
    %2 = vector.load %arg3[%c0_5, %c0_6, %c0_7, %c1, %c0_8, %c0_9] : memref<1x4x2x4x8x64xf32, #tpu.memory_space<vmem>>, vector<1x4x2x1x8x64xf32>
    %3 = vector.shape_cast %2 : vector<1x4x2x1x8x64xf32> to vector<4x2x8x64xf32>
    %c0_10 = arith.constant 0 : index
    %c0_11 = arith.constant 0 : index
    %c0_12 = arith.constant 0 : index
    %c2 = arith.constant 2 : index
    %c0_13 = arith.constant 0 : index
    %c0_14 = arith.constant 0 : index
    %4 = vector.load %arg3[%c0_10, %c0_11, %c0_12, %c2, %c0_13, %c0_14] : memref<1x4x2x4x8x64xf32, #tpu.memory_space<vmem>>, vector<1x4x2x1x8x64xf32>
    %5 = vector.shape_cast %4 : vector<1x4x2x1x8x64xf32> to vector<4x2x8x64xf32>
    %c0_15 = arith.constant 0 : index
    %c0_16 = arith.constant 0 : index
    %c0_17 = arith.constant 0 : index
    %c3 = arith.constant 3 : index
    %c0_18 = arith.constant 0 : index
    %c0_19 = arith.constant 0 : index
    %6 = vector.load %arg3[%c0_15, %c0_16, %c0_17, %c3, %c0_18, %c0_19] : memref<1x4x2x4x8x64xf32, #tpu.memory_space<vmem>>, vector<1x4x2x1x8x64xf32>
    %7 = vector.shape_cast %6 : vector<1x4x2x1x8x64xf32> to vector<4x2x8x64xf32>
    %8 = tpu.concatenate %1, %3, %5, %7 in 3 : vector<4x2x8x64xf32>, vector<4x2x8x64xf32>, vector<4x2x8x64xf32>, vector<4x2x8x64xf32> -> vector<4x2x8x256xf32>
    %9 = vector.shape_cast %8 : vector<4x2x8x256xf32> to vector<64x256xf32>
    %c0_20 = arith.constant 0 : index
    %c0_21 = arith.constant 0 : index
    %10 = vector.load %arg4[%c0_20, %c0_21] : memref<64x64xf32, #tpu.memory_space<vmem>>, vector<64x64xf32>
    %cst = arith.constant dense<0.000000e+00> : vector<64x256xf32>
    %11 = tpu.matmul %10, %9, %cst {dimension_numbers = #tpu.dot_dimension_numbers<[1], [0], [0], [1], [0, 0, 1, 1], [], []>, precision = #tpu.contract_precision<fp32>} : vector<64x64xf32>, vector<64x256xf32>, vector<64x256xf32> -> vector<64x256xf32>
    %c0_22 = arith.constant 0 : index
    %c0_23 = arith.constant 0 : index
    %12 = vector.load %arg5[%c0_22, %c0_23] : memref<256x256xf32, #tpu.memory_space<vmem>>, vector<256x256xf32>
    %cst_24 = arith.constant dense<0.000000e+00> : vector<64x256xf32>
    %13 = tpu.matmul %11, %12, %cst_24 {dimension_numbers = #tpu.dot_dimension_numbers<[1], [0], [0], [1], [0, 0, 1, 1], [], []>, precision = #tpu.contract_precision<fp32>} : vector<64x256xf32>, vector<256x256xf32>, vector<64x256xf32> -> vector<64x256xf32>
    %14 = vector.shape_cast %13 : vector<64x256xf32> to vector<1x4x16x256xf32>
    %c0_25 = arith.constant 0 : index
    %c0_26 = arith.constant 0 : index
    %c0_27 = arith.constant 0 : index
    %c0_28 = arith.constant 0 : index
    %15 = vector.load %arg6[%c0_25, %c0_26, %c0_27, %c0_28] : memref<1x4x16x256xf32, #tpu.memory_space<vmem>>, vector<1x4x16x256xf32>
    tpu.vector_store %arg6[%c0_25, %c0_26, %c0_27, %c0_28], %14 {strides = array<i32>} : memref<1x4x16x256xf32, #tpu.memory_space<vmem>>, vector<1x4x16x256xf32>,
    return
  }
  func.func @transform_0(%arg0: i32, %arg1: i32, %arg2: i32) -> (i32, i32, i32, i32, i32, i32) {
    %c0_i32 = arith.constant 0 : i32
    %c0_i32_0 = arith.constant 0 : i32
    %c0_i32_1 = arith.constant 0 : i32
    %c0_i32_2 = arith.constant 0 : i32
    return %arg0, %arg1, %c0_i32, %c0_i32_0, %c0_i32_1, %arg2 : i32, i32, i32, i32, i32, i32
  }
  func.func @transform_1(%arg0: i32, %arg1: i32, %arg2: i32) -> (i32, i32) {
    %c0_i32 = arith.constant 0 : i32
    %c0_i32_0 = arith.constant 0 : i32
    %c0_i32_1 = arith.constant 0 : i32
    return %c0_i32, %c0_i32_0 : i32, i32
  }
  func.func @transform_2(%arg0: i32, %arg1: i32, %arg2: i32) -> (i32, i32) {
    %c0_i32 = arith.constant 0 : i32
    %c0_i32_0 = arith.constant 0 : i32
    %c0_i32_1 = arith.constant 0 : i32
    return %c0_i32, %c0_i32_0 : i32, i32
  }
  func.func @transform_3(%arg0: i32, %arg1: i32, %arg2: i32) -> (i32, i32, i32, i32) {
    %c0_i32 = arith.constant 0 : i32
    %c0_i32_0 = arith.constant 0 : i32
    return %arg0, %arg1, %c0_i32, %arg2 : i32, i32, i32, i32
  }
}

</mosaic_0001>

<llo_original>
// kernel: _lambda_.1
$region0: #{_lambda_.1}
  #allocation0 [shape = 'u32[]', space=smem, size = 0x4, offset = 0x4, fixed_abs, tag = 'smem constant byte address 0x4 - core index']
  #allocation1 [shape = 'u32[144,128]{1,0:T(1,128)}', space=vmem, size = 0x12000, scoped, tag = 'internal scratch']
  %s0 = inlined_call_operand.vmem [shape: f32[2,4,2,4,8,64], index: 0, kind: input, shape index: {}]
  %s1 = inlined_call_operand.vmem [shape: f32[64,64], index: 1, kind: input, shape index: {}]
  %s2 = inlined_call_operand.vmem [shape: f32[256,256], index: 2, kind: input, shape index: {}]
  %s3 = inlined_call_operand.vmem [shape: f32[2,4,16,256], index: 3, kind: output, shape index: {}]
  %s4 = sld [smem:[#allocation0]]
  $region45: #{_lambda_.1} parent=0
    _
  %s6 = ssub.s32 1, %s4
  %s7 = scalar_select 0, %s6, %s4
  loop: start=0, step=1, limit=4
  $region2: #{_lambda_.1} parent=0 // loop_pre_header
    _
  $region3: #{_lambda_.1} parent=0 // loop_header
    %s9 = sphi 0, %s13
    %p10 = scmp.ge.s32.totalorder %s9, 4
    %s16 = sphi 0, %s35
    %s17 = sphi 0, %s31
    %s18 = sphi 0, %s27
    %s19 = sphi 0, %s16
    %s20 = sphi 0, %s17
    %s21 = sphi 0, %s18
    %s22 = sphi 0, %s19
    %s23 = sphi 0, %s20
    %s24 = sphi 0, %s21
    %s42 = sphi 0, %s44
    %s45 = sphi 0, %s42
    %s46 = sphi 0, %s45
    %s62 = sphi 0, %s46
    %s66 = sphi 0, %s66
    %s68 = sphi 0, %s66
    %s69 = sphi 0, %s68
    %s83 = sphi 0, %s69
    %s87 = sphi 0, %s87
    %s89 = sphi 0, %s87
    %s90 = sphi 0, %s89
    %s104 = sphi 0, %s90
    %s114 = sphi 0, %s116
    %s117 = sphi 0, %s114
    %s118 = sphi 0, %s117
    %s134 = sphi 0, %s118
  $region4: #{_lambda_.1} parent=0 // loop_header_branch
    %12 = sbr.rel (%p10) target = $region8
  $region5: #{_lambda_.1} parent=0 // loop_body
    %s14 = ssub.s32 %s9, 1
    %s15 = ssub.s32 %s9, 2
    %s25 = sadd.s32 1, %s18
    %p26 = scmp.ge.s32.totalorder %s25, 1
    %s27 = scalar_select %p26, 0, %s25
    %s28 = sadd.s32 1, %s17
    %s29 = scalar_select %p26, %s28, %s17
    %p30 = scmp.ge.s32.totalorder %s29, 1
    %s31 = scalar_select %p30, 0, %s29
    %s32 = sadd.s32 1, %s16
    %s33 = scalar_select %p30, %s32, %s16
    %p34 = scmp.ge.s32.totalorder %s33, 2
    %s35 = scalar_select %p34, 0, %s33
    %s36 = ssub.s32 %s16, %s35
    %s37 = ssub.s32 %s17, %s31
    %s38 = sor.u32 %s36, %s37
    %s39 = ssub.s32 %s18, %s27
    %s40 = sor.u32 %s38, %s39
    %p41 = scmp.eq.s32.totalorder %s40, 0
    %s43 = sadd.s32 %s42, 1
    %s44 = scalar_select %p41, %s42, %s43
    %p47 = pneg %p41
    %p48 = scmp.eq.s32.totalorder %s9, 1
    %p49 = por %p47, %p48
    %p50 = scmp.ne.s32.totalorder %s42, %s45
    %p51 = scmp.eq.s32.totalorder %s9, 0
    %p52 = por %p50, %p51
    %p53 = scmp.ne.s32.totalorder %s42, %s45
    %p54 = scmp.eq.s32.totalorder %s14, 1
    %p55 = por %p53, %p54
    %p56 = scmp.ne.s32.totalorder %s45, %s46
    %p57 = scmp.eq.s32.totalorder %s14, 0
    %p58 = por %p56, %p57
    %p59 = scmp.ne.s32.totalorder %s45, %s46
    %p60 = scmp.eq.s32.totalorder %s15, 1
    %p61 = por %p59, %p60
    %p63 = scmp.ne.s32.totalorder %s46, %s62
    %p64 = scmp.eq.s32.totalorder %s15, 0
    %p65 = por %p63, %p64
    %s67 = sadd.s32 %s66, 1
    %p70 = scmp.eq.s32.totalorder %s9, 1
    %p71 = scmp.ne.s32.totalorder %s66, %s68
    %p72 = scmp.eq.s32.totalorder %s9, 0
    %p73 = por %p71, %p72
    %p74 = scmp.ne.s32.totalorder %s66, %s68
    %p75 = scmp.eq.s32.totalorder %s14, 1
    %p76 = por %p74, %p75
    %p77 = scmp.ne.s32.totalorder %s68, %s69
    %p78 = scmp.eq.s32.totalorder %s14, 0
    %p79 = por %p77, %p78
    %p80 = scmp.ne.s32.totalorder %s68, %s69
    %p81 = scmp.eq.s32.totalorder %s15, 1
    %p82 = por %p80, %p81
    %p84 = scmp.ne.s32.totalorder %s69, %s83
    %p85 = scmp.eq.s32.totalorder %s15, 0
    %p86 = por %p84, %p85
    %s88 = sadd.s32 %s87, 1
    %p91 = scmp.eq.s32.totalorder %s9, 1
    %p92 = scmp.ne.s32.totalorder %s87, %s89
    %p93 = scmp.eq.s32.totalorder %s9, 0
    %p94 = por %p92, %p93
    %p95 = scmp.ne.s32.totalorder %s87, %s89
    %p96 = scmp.eq.s32.totalorder %s14, 1
    %p97 = por %p95, %p96
    %p98 = scmp.ne.s32.totalorder %s89, %s90
    %p99 = scmp.eq.s32.totalorder %s14, 0
    %p100 = por %p98, %p99
    %p101 = scmp.ne.s32.totalorder %s89, %s90
    %p102 = scmp.eq.s32.totalorder %s15, 1
    %p103 = por %p101, %p102
    %p105 = scmp.ne.s32.totalorder %s90, %s104
    %p106 = scmp.eq.s32.totalorder %s15, 0
    %p107 = por %p105, %p106
    %s108 = ssub.s32 %s16, %s35
    %s109 = ssub.s32 %s17, %s31
    %s110 = sor.u32 %s108, %s109
    %s111 = ssub.s32 %s18, %s27
    %s112 = sor.u32 %s110, %s111
    %p113 = scmp.eq.s32.totalorder %s112, 0
    %s115 = sadd.s32 %s114, 1
    %s116 = scalar_select %p113, %s114, %s115
    %p119 = pneg %p113
    %p120 = scmp.eq.s32.totalorder %s9, 1
    %p121 = por %p119, %p120
    %p122 = scmp.ne.s32.totalorder %s114, %s117
    %p123 = scmp.eq.s32.totalorder %s9, 0
    %p124 = por %p122, %p123
    %p125 = scmp.ne.s32.totalorder %s114, %s117
    %p126 = scmp.eq.s32.totalorder %s14, 1
    %p127 = por %p125, %p126
    %p128 = scmp.ne.s32.totalorder %s117, %s118
    %p129 = scmp.eq.s32.totalorder %s14, 0
    %p130 = por %p128, %p129
    %p131 = scmp.ne.s32.totalorder %s117, %s118
    %p132 = scmp.eq.s32.totalorder %s15, 1
    %p133 = por %p131, %p132
    %p135 = scmp.ne.s32.totalorder %s118, %s134
    %p136 = scmp.eq.s32.totalorder %s15, 0
    %p137 = por %p135, %p136
    %p138 = scmp.le.s32.totalorder 1, %s9
    %p139 = scmp.lt.s32.totalorder %s9, 3
    %p140 = pnand %p138, %p139
    %p141 = pneg %p140
    // Predicated region
    $region9: #{_lambda_.1} parent=5 // pred_check
      _
    $region10: #{_lambda_.1} parent=5 // pred_check_branch
      %143 = sbr.rel (%p140) target = $region12
    $region11: #{_lambda_.1} parent=5 // pred_region
      %s144 = ssub.s32 %s9, 1
      // Predicated region
      $region13: #{_lambda_.1} parent=11 // pred_check
        %p145 = pneg %p79
      $region14: #{_lambda_.1} parent=11 // pred_check_branch
        %147 = sbr.rel (%p145) target = $region16
      $region15: #{_lambda_.1} parent=11 // pred_region
        _
      $region16: #{_lambda_.1} parent=11 // pred_fallthru
        _
      // Predicated region
      $region17: #{_lambda_.1} parent=11 // pred_check
        %p148 = pneg %p100
      $region18: #{_lambda_.1} parent=11 // pred_check_branch
        %150 = sbr.rel (%p148) target = $region20
      $region19: #{_lambda_.1} parent=11 // pred_region
        _
      $region20: #{_lambda_.1} parent=11 // pred_fallthru
        _
    $region12: #{_lambda_.1} parent=5 // pred_fallthru
      _
    %p151 = scmp.lt.s32.totalorder %s9, 2
    // Predicated region
    $region21: #{_lambda_.1} parent=5 // pred_check
      %p152 = pneg %p151
    $region22: #{_lambda_.1} parent=5 // pred_check_branch
      %154 = sbr.rel (%p152) target = $region24
    $region23: #{_lambda_.1} parent=5 // pred_region
      // Predicated region
      $region25: #{_lambda_.1} parent=23 // pred_check
        %p155 = pneg %p52
      $region26: #{_lambda_.1} parent=23 // pred_check_branch
        %157 = sbr.rel (%p155) target = $region28
      $region27: #{_lambda_.1} parent=23 // pred_region
        %s158 = smul.u32 4, %s17
        %p159 = scmp.lt.s32.totalorder %s16, 1
        %s160 = scalar_select %p159, %s16, 1
        %p161 = scmp.lt.s32.totalorder %s158, 3
        %s162 = scalar_select %p161, %s158, 3
        %p163 = scmp.lt.s32.totalorder %s18, 0
        %s164 = scalar_select %p163, %s18, 0
        %s165 = smul.addr %s162, 8
        %s166 = sadd.s32 %s164, %s165
        %s167 = smul.addr %s160, 32
        %s168 = sadd.s32 %s166, %s167
        %s169 = smul.addr %s168, 8
        %s170 = scalar_lea.vmem %s0, %s169
        %s171 = smul.u32 4, %s17
      $region28: #{_lambda_.1} parent=23 // pred_fallthru
        _
    $region24: #{_lambda_.1} parent=5 // pred_fallthru
      _
    %p172 = scmp.le.s32.totalorder 1, %s9
    %p173 = scmp.lt.s32.totalorder %s9, 3
    %p174 = pnand %p172, %p173
    %p175 = pneg %p174
    // Predicated region
    $region29: #{_lambda_.1} parent=5 // pred_check
      _
    $region30: #{_lambda_.1} parent=5 // pred_check_branch
      %177 = sbr.rel (%p174) target = $region32
    $region31: #{_lambda_.1} parent=5 // pred_region
      %s178 = ssub.s32 %s9, 1
      %s179 = smul.u32 4, %s20
      %p180 = scmp.lt.s32.totalorder %s19, 1
      %s181 = scalar_select %p180, %s19, 1
      %p182 = scmp.lt.s32.totalorder %s179, 3
      %s183 = scalar_select %p182, %s179, 3
      %p184 = scmp.lt.s32.totalorder %s21, 0
      %s185 = scalar_select %p184, %s21, 0
      %s186 = smul.addr %s183, 8
      %s187 = sadd.s32 %s185, %s186
      %s188 = smul.addr %s181, 32
      %s189 = sadd.s32 %s187, %s188
      %s190 = smul.addr %s189, 8
      %s191 = scalar_lea.vmem %s0, %s190
      %p192 = pneg %p58
      %p193 = pneg %p55
      %p194 = pneg %p79
      %p195 = pneg %p76
      %p196 = pneg %p100
      %p197 = pneg %p97
      %p198 = pneg %p130
      %p199 = pneg %p127
      %s200 = smul.u32 4, %s20
      %s201 = smul.u32 2, %s21
      %p202 = scmp.lt.s32.totalorder %s19, 1
      %s203 = scalar_select %p202, %s19, 1
      %p204 = scmp.lt.s32.totalorder %s200, 3
      %s205 = scalar_select %p204, %s200, 3
      %p206 = scmp.lt.s32.totalorder %s201, 1
      %s207 = scalar_select %p206, %s201, 1
      %s208 = smul.addr %s205, 4
      %s209 = sadd.s32 %s207, %s208
      %s210 = smul.addr %s203, 16
      %s211 = sadd.s32 %s209, %s210
      %s212 = smul.addr %s211, 8
      %s213 = scalar_lea.vmem %s3, %s212
      %s214 = smul.u32 4, %s20
      %p215 = scmp.lt.s32.totalorder %s19, 1
      %s216 = scalar_select %p215, %s19, 1
      %p217 = scmp.lt.s32.totalorder %s214, 3
      %s218 = scalar_select %p217, %s214, 3
      %p219 = scmp.lt.s32.totalorder %s21, 0
      %s220 = scalar_select %p219, %s21, 0
      %s221 = smul.addr %s218, 8
      %s222 = sadd.s32 %s220, %s221
      %s223 = smul.addr %s216, 32
      %s224 = sadd.s32 %s222, %s223
      %s225 = smul.addr %s224, 8
      %s226 = scalar_lea.vmem %s0, %s225
      %s227 = smul.u32 4, %s20
      %s228 = smul.u32 4, %s20
      %s229 = smul.u32 2, %s21
      %p230 = scmp.lt.s32.totalorder %s19, 1
      %s231 = scalar_select %p230, %s19, 1
      %p232 = scmp.lt.s32.totalorder %s228, 3
      %s233 = scalar_select %p232, %s228, 3
      %p234 = scmp.lt.s32.totalorder %s229, 1
      %s235 = scalar_select %p234, %s229, 1
      %s236 = smul.addr %s233, 4
      %s237 = sadd.s32 %s235, %s236
      %s238 = smul.addr %s231, 16
      %s239 = sadd.s32 %s237, %s238
      %s240 = smul.addr %s239, 8
      %s241 = scalar_lea.vmem %s3, %s240
      %s242 = smul.u32 4, %s20
      %s243 = smul.u32 2, %s21
      %v244 = vld [vmem:[%s226] sm:$0xff]
      %v245 = vld [vmem:[%s226 + $0x20] sm:$0xff]
      %v246 = vld [vmem:[%s226 + $0x40] sm:$0xff]
      %v247 = vld [vmem:[%s226 + $0x60] sm:$0xff]
      %v248 = vld [vmem:[%s226 + $0x80] sm:$0xff]
      %v249 = vld [vmem:[%s226 + $0xa0] sm:$0xff]
      %v250 = vld [vmem:[%s226 + $0xc0] sm:$0xff]
      %v251 = vld [vmem:[%s226 + $0xe0] sm:$0xff]
      %s252 = scalar_lea.vmem %s226, 8
      %v253 = vld [vmem:[%s252] sm:$0xff]
      %v254 = vld [vmem:[%s252 + $0x20] sm:$0xff]
      %v255 = vld [vmem:[%s252 + $0x40] sm:$0xff]
      %v256 = vld [vmem:[%s252 + $0x60] sm:$0xff]
      %v257 = vld [vmem:[%s252 + $0x80] sm:$0xff]
      %v258 = vld [vmem:[%s252 + $0xa0] sm:$0xff]
      %v259 = vld [vmem:[%s252 + $0xc0] sm:$0xff]
      %v260 = vld [vmem:[%s252 + $0xe0] sm:$0xff]
      %s261 = scalar_lea.vmem %s226, 16
      %v262 = vld [vmem:[%s261] sm:$0xff]
      %v263 = vld [vmem:[%s261 + $0x20] sm:$0xff]
      %v264 = vld [vmem:[%s261 + $0x40] sm:$0xff]
      %v265 = vld [vmem:[%s261 + $0x60] sm:$0xff]
      %v266 = vld [vmem:[%s261 + $0x80] sm:$0xff]
      %v267 = vld [vmem:[%s261 + $0xa0] sm:$0xff]
      %v268 = vld [vmem:[%s261 + $0xc0] sm:$0xff]
      %v269 = vld [vmem:[%s261 + $0xe0] sm:$0xff]
      %s270 = scalar_lea.vmem %s226, 24
      %v271 = vld [vmem:[%s270] sm:$0xff]
      %v272 = vld [vmem:[%s270 + $0x20] sm:$0xff]
      %v273 = vld [vmem:[%s270 + $0x40] sm:$0xff]
      %v274 = vld [vmem:[%s270 + $0x60] sm:$0xff]
      %v275 = vld [vmem:[%s270 + $0x80] sm:$0xff]
      %v276 = vld [vmem:[%s270 + $0xa0] sm:$0xff]
      %v277 = vld [vmem:[%s270 + $0xc0] sm:$0xff]
      %v278 = vld [vmem:[%s270 + $0xe0] sm:$0xff]
      %287 = vrot.lane.b32.xlu0 %v253, 64
      %v288 = vpop.permute.xlu0 %287
      %289 = vrot.lane.b32.xlu0 %v254, 64
      %v290 = vpop.permute.xlu0 %289
      %291 = vrot.lane.b32.xlu0 %v255, 64
      %v292 = vpop.permute.xlu0 %291
      %293 = vrot.lane.b32.xlu0 %v256, 64
      %v294 = vpop.permute.xlu0 %293
      %295 = vrot.lane.b32.xlu0 %v257, 64
      %v296 = vpop.permute.xlu0 %295
      %297 = vrot.lane.b32.xlu0 %v258, 64
      %v298 = vpop.permute.xlu0 %297
      %299 = vrot.lane.b32.xlu0 %v259, 64
      %v300 = vpop.permute.xlu0 %299
      %301 = vrot.lane.b32.xlu0 %v260, 64
      %v302 = vpop.permute.xlu0 %301
      %319 = vrot.lane.b32.xlu0 %v271, 64
      %v320 = vpop.permute.xlu0 %319
      %321 = vrot.lane.b32.xlu0 %v272, 64
      %v322 = vpop.permute.xlu0 %321
      %323 = vrot.lane.b32.xlu0 %v273, 64
      %v324 = vpop.permute.xlu0 %323
      %325 = vrot.lane.b32.xlu0 %v274, 64
      %v326 = vpop.permute.xlu0 %325
      %327 = vrot.lane.b32.xlu0 %v275, 64
      %v328 = vpop.permute.xlu0 %327
      %329 = vrot.lane.b32.xlu0 %v276, 64
      %v330 = vpop.permute.xlu0 %329
      %331 = vrot.lane.b32.xlu0 %v277, 64
      %v332 = vpop.permute.xlu0 %331
      %333 = vrot.lane.b32.xlu0 %v278, 64
      %v334 = vpop.permute.xlu0 %333
      %vm343 = vcmask 523264
      %v344 = vsel %vm343, %v244, %v288
      %v345 = vsel %vm343, %v245, %v290
      %v346 = vsel %vm343, %v246, %v292
      %v347 = vsel %vm343, %v247, %v294
      %v348 = vsel %vm343, %v248, %v296
      %v349 = vsel %vm343, %v249, %v298
      %v350 = vsel %vm343, %v250, %v300
      %v351 = vsel %vm343, %v251, %v302
      %v352 = vsel %vm343, %v262, %v320
      %v353 = vsel %vm343, %v263, %v322
      %v354 = vsel %vm343, %v264, %v324
      %v355 = vsel %vm343, %v265, %v326
      %v356 = vsel %vm343, %v266, %v328
      %v357 = vsel %vm343, %v267, %v330
      %v358 = vsel %vm343, %v268, %v332
      %v359 = vsel %vm343, %v269, %v334
      %v360 = vld [vmem:[%s1] sm:$0xff]
      %v361 = vld [vmem:[%s1 + $0x8] sm:$0xff]
      %v362 = vld [vmem:[%s1 + $0x10] sm:$0xff]
      %v363 = vld [vmem:[%s1 + $0x18] sm:$0xff]
      %v364 = vld [vmem:[%s1 + $0x20] sm:$0xff]
      %v365 = vld [vmem:[%s1 + $0x28] sm:$0xff]
      %v366 = vld [vmem:[%s1 + $0x30] sm:$0xff]
      %v367 = vld [vmem:[%s1 + $0x38] sm:$0xff]
      %v369 = vsel %vm343, %v360, 0
      %v372 = vsel %vm343, %v361, 0
      %v375 = vsel %vm343, %v362, 0
      %v378 = vsel %vm343, %v363, 0
      %v381 = vsel %vm343, %v364, 0
      %v384 = vsel %vm343, %v365, 0
      %v387 = vsel %vm343, %v366, 0
      %v390 = vsel %vm343, %v367, 0
      %392 = vmatprep.subr.mxu0 0.0
      %393 = vmatpush1.msra.mxu0 0.0
      %394 = vmatprep.subr.mxu0 0.0
      %395 = vmatpush1.msra.mxu0 0.0
      %396 = vmatprep.subr.mxu0 0.0
      %397 = vmatpush1.msra.mxu0 0.0
      %398 = vmatprep.subr.mxu0 0.0
      %399 = vmatpush1.msra.mxu0 0.0
      %400 = vmatprep.subr.mxu0 0.0
      %401 = vmatpush1.msra.mxu0 0.0
      %402 = vmatprep.subr.mxu0 0.0
      %403 = vmatpush1.msra.mxu0 0.0
      %404 = vmatprep.subr.mxu0 0.0
      %405 = vmatpush1.msra.mxu0 0.0
      %406 = vmatprep.subr.mxu0 0.0
      %407 = vmatpush1.msra.mxu0 0.0
      %v408 = vand.u32 %v359, 4294901760
      %409 = vmatprep.subr.mxu0 %v408
      %v410 = vand.u32 %v351, 4294901760
      %411 = vmatpush1.msra.mxu0 %v410
      %v412 = vand.u32 %v358, 4294901760
      %413 = vmatprep.subr.mxu0 %v412
      %v414 = vand.u32 %v350, 4294901760
      %415 = vmatpush1.msra.mxu0 %v414
      %v416 = vand.u32 %v357, 4294901760
      %417 = vmatprep.subr.mxu0 %v416
      %v418 = vand.u32 %v349, 4294901760
      %419 = vmatpush1.msra.mxu0 %v418
      %v420 = vand.u32 %v356, 4294901760
      %421 = vmatprep.subr.mxu0 %v420
      %v422 = vand.u32 %v348, 4294901760
      %423 = vmatpush1.msra.mxu0 %v422
      %v424 = vand.u32 %v355, 4294901760
      %425 = vmatprep.subr.mxu0 %v424
      %v426 = vand.u32 %v347, 4294901760
      %427 = vmatpush1.msra.mxu0 %v426
      %v428 = vand.u32 %v354, 4294901760
      %429 = vmatprep.subr.mxu0 %v428
      %v430 = vand.u32 %v346, 4294901760
      %431 = vmatpush1.msra.mxu0 %v430
      %v432 = vand.u32 %v353, 4294901760
      %433 = vmatprep.subr.mxu0 %v432
      %v434 = vand.u32 %v345, 4294901760
      %435 = vmatpush1.msra.mxu0 %v434
      %v436 = vand.u32 %v352, 4294901760
      %437 = vmatprep.subr.mxu0 %v436
      %v438 = vand.u32 %v344, 4294901760
      %439 = vmatpush1.msra.mxu0 %v438
      %440 = vmatprep.subr.mxu0 0.0
      %441 = vmatpush2.msra.mxu0 0.0
      %442 = vmatprep.subr.mxu0 0.0
      %443 = vmatpush2.msra.mxu0 0.0
      %444 = vmatprep.subr.mxu0 0.0
      %445 = vmatpush2.msra.mxu0 0.0
      %446 = vmatprep.subr.mxu0 0.0
      %447 = vmatpush2.msra.mxu0 0.0
      %448 = vmatprep.subr.mxu0 0.0
      %449 = vmatpush2.msra.mxu0 0.0
      %450 = vmatprep.subr.mxu0 0.0
      %451 = vmatpush2.msra.mxu0 0.0
      %452 = vmatprep.subr.mxu0 0.0
      %453 = vmatpush2.msra.mxu0 0.0
      %454 = vmatprep.subr.mxu0 0.0
      %455 = vmatpush2.msra.mxu0 0.0
      %456 = vmatprep.subr.mxu0 0.0
      %457 = vmatpush2.msra.mxu0 0.0
      %458 = vmatprep.subr.mxu0 0.0
      %459 = vmatpush2.msra.mxu0 0.0
      %460 = vmatprep.subr.mxu0 0.0
      %461 = vmatpush2.msra.mxu0 0.0
      %462 = vmatprep.subr.mxu0 0.0
      %463 = vmatpush2.msra.mxu0 0.0
      %464 = vmatprep.subr.mxu0 0.0
      %465 = vmatpush2.msra.mxu0 0.0
      %466 = vmatprep.subr.mxu0 0.0
      %467 = vmatpush2.msra.mxu0 0.0
      %468 = vmatprep.subr.mxu0 0.0
      %469 = vmatpush2.msra.mxu0 0.0
      %470 = vmatprep.subr.mxu0 0.0
      %471 = vmatpush2.msra.mxu0 0.0
      %472 = vmatprep.mubr.f32.mxu0 0.0
      %v473 = vand.u32 %v369, 4294901760
      %v474 = vsub.f32 %v369, %v473
      %v475 = vand.u32 %v474, 4294901760
      %v476 = vsub.f32 %v474, %v475
      %v477 = vand.u32 %v476, 4294901760
      %478 = vmatmul.mubr.f32.gmra.mxu0 %v477
      %v479 = vpop.f32.mrf.mxu0
      %v480 = vadd.f32 0.0, %v479
      %v481 = vpop.f32.mrf.mxu0
      %v482 = vadd.f32 0.0, %v481
      %483 = vmatprep.mubr.f32.mxu0 0.0
      %v484 = vand.u32 %v372, 4294901760
      %v485 = vsub.f32 %v372, %v484
      %v486 = vand.u32 %v485, 4294901760
      %v487 = vsub.f32 %v485, %v486
      %v488 = vand.u32 %v487, 4294901760
      %489 = vmatmul.mubr.f32.gmra.mxu0 %v488
      %v490 = vpop.f32.mrf.mxu0
      %v491 = vadd.f32 0.0, %v490
      %v492 = vpop.f32.mrf.mxu0
      %v493 = vadd.f32 0.0, %v492
      %494 = vmatprep.mubr.f32.mxu0 0.0
      %v495 = vand.u32 %v375, 4294901760
      %v496 = vsub.f32 %v375, %v495
      %v497 = vand.u32 %v496, 4294901760
      %v498 = vsub.f32 %v496, %v497
      %v499 = vand.u32 %v498, 4294901760
      %500 = vmatmul.mubr.f32.gmra.mxu0 %v499
      %v501 = vpop.f32.mrf.mxu0
      %v502 = vadd.f32 0.0, %v501
      %v503 = vpop.f32.mrf.mxu0
      %v504 = vadd.f32 0.0, %v503
      %505 = vmatprep.mubr.f32.mxu0 0.0
      %v506 = vand.u32 %v378, 4294901760
      %v507 = vsub.f32 %v378, %v506
      %v508 = vand.u32 %v507, 4294901760
      %v509 = vsub.f32 %v507, %v508
      %v510 = vand.u32 %v509, 4294901760
      %511 = vmatmul.mubr.f32.gmra.mxu0 %v510
      %v512 = vpop.f32.mrf.mxu0
      %v513 = vadd.f32 0.0, %v512
      %v514 = vpop.f32.mrf.mxu0
      %v515 = vadd.f32 0.0, %v514
      %516 = vmatprep.mubr.f32.mxu0 0.0
      %v517 = vand.u32 %v381, 4294901760
      %v518 = vsub.f32 %v381, %v517
      %v519 = vand.u32 %v518, 4294901760
      %v520 = vsub.f32 %v518, %v519
      %v521 = vand.u32 %v520, 4294901760
      %522 = vmatmul.mubr.f32.gmra.mxu0 %v521
      %v523 = vpop.f32.mrf.mxu0
      %v524 = vadd.f32 0.0, %v523
      %v525 = vpop.f32.mrf.mxu0
      %v526 = vadd.f32 0.0, %v525
      %527 = vmatprep.mubr.f32.mxu0 0.0
      %v528 = vand.u32 %v384, 4294901760
      %v529 = vsub.f32 %v384, %v528
      %v530 = vand.u32 %v529, 4294901760
      %v531 = vsub.f32 %v529, %v530
      %v532 = vand.u32 %v531, 4294901760
      %533 = vmatmul.mubr.f32.gmra.mxu0 %v532
      %v534 = vpop.f32.mrf.mxu0
      %v535 = vadd.f32 0.0, %v534
      %v536 = vpop.f32.mrf.mxu0
      %v537 = vadd.f32 0.0, %v536
      %538 = vmatprep.mubr.f32.mxu0 0.0
      %v539 = vand.u32 %v387, 4294901760
      %v540 = vsub.f32 %v387, %v539
      %v541 = vand.u32 %v540, 4294901760
      %v542 = vsub.f32 %v540, %v541
      %v543 = vand.u32 %v542, 4294901760
      %544 = vmatmul.mubr.f32.gmra.mxu0 %v543
      %v545 = vpop.f32.mrf.mxu0
      %v546 = vadd.f32 0.0, %v545
      %v547 = vpop.f32.mrf.mxu0
      %v548 = vadd.f32 0.0, %v547
      %549 = vmatprep.mubr.f32.mxu0 0.0
      %v550 = vand.u32 %v390, 4294901760
      %v551 = vsub.f32 %v390, %v550
      %v552 = vand.u32 %v551, 4294901760
      %v553 = vsub.f32 %v551, %v552
      %v554 = vand.u32 %v553, 4294901760
      %555 = vmatmul.mubr.f32.gmra.mxu0 %v554
      %v556 = vpop.f32.mrf.mxu0
      %v557 = vadd.f32 0.0, %v556
      %v558 = vpop.f32.mrf.mxu0
      %v559 = vadd.f32 0.0, %v558
      %560 = vdwg.mxu0
      %561 = vmatprep.subr.mxu0 0.0
      %562 = vmatpush1.msra.mxu0 0.0
      %563 = vmatprep.subr.mxu0 0.0
      %564 = vmatpush1.msra.mxu0 0.0
      %565 = vmatprep.subr.mxu0 0.0
      %566 = vmatpush1.msra.mxu0 0.0
      %567 = vmatprep.subr.mxu0 0.0
      %568 = vmatpush1.msra.mxu0 0.0
      %569 = vmatprep.subr.mxu0 0.0
      %570 = vmatpush1.msra.mxu0 0.0
      %571 = vmatprep.subr.mxu0 0.0
      %572 = vmatpush1.msra.mxu0 0.0
      %573 = vmatprep.subr.mxu0 0.0
      %574 = vmatpush1.msra.mxu0 0.0
      %575 = vmatprep.subr.mxu0 0.0
      %576 = vmatpush1.msra.mxu0 0.0
      %v577 = vand.u32 %v359, 4294901760
      %v578 = vsub.f32 %v359, %v577
      %v579 = vand.u32 %v578, 4294901760
      %v580 = vsub.f32 %v578, %v579
      %v581 = vand.u32 %v580, 4294901760
      %582 = vmatprep.subr.mxu0 %v581
      %v583 = vand.u32 %v351, 4294901760
      %v584 = vsub.f32 %v351, %v583
      %v585 = vand.u32 %v584, 4294901760
      %v586 = vsub.f32 %v584, %v585
      %v587 = vand.u32 %v586, 4294901760
      %588 = vmatpush1.msra.mxu0 %v587
      %v589 = vand.u32 %v358, 4294901760
      %v590 = vsub.f32 %v358, %v589
      %v591 = vand.u32 %v590, 4294901760
      %v592 = vsub.f32 %v590, %v591
      %v593 = vand.u32 %v592, 4294901760
      %594 = vmatprep.subr.mxu0 %v593
      %v595 = vand.u32 %v350, 4294901760
      %v596 = vsub.f32 %v350, %v595
      %v597 = vand.u32 %v596, 4294901760
      %v598 = vsub.f32 %v596, %v597
      %v599 = vand.u32 %v598, 4294901760
      %600 = vmatpush1.msra.mxu0 %v599
      %v601 = vand.u32 %v357, 4294901760
      %v602 = vsub.f32 %v357, %v601
      %v603 = vand.u32 %v602, 4294901760
      %v604 = vsub.f32 %v602, %v603
      %v605 = vand.u32 %v604, 4294901760
      %606 = vmatprep.subr.mxu0 %v605
      %v607 = vand.u32 %v349, 4294901760
      %v608 = vsub.f32 %v349, %v607
      %v609 = vand.u32 %v608, 4294901760
      %v610 = vsub.f32 %v608, %v609
      %v611 = vand.u32 %v610, 4294901760
      %612 = vmatpush1.msra.mxu0 %v611
      %v613 = vand.u32 %v356, 4294901760
      %v614 = vsub.f32 %v356, %v613
      %v615 = vand.u32 %v614, 4294901760
      %v616 = vsub.f32 %v614, %v615
      %v617 = vand.u32 %v616, 4294901760
      %618 = vmatprep.subr.mxu0 %v617
      %v619 = vand.u32 %v348, 4294901760
      %v620 = vsub.f32 %v348, %v619
      %v621 = vand.u32 %v620, 4294901760
      %v622 = vsub.f32 %v620, %v621
      %v623 = vand.u32 %v622, 4294901760
      %624 = vmatpush1.msra.mxu0 %v623
      %v625 = vand.u32 %v355, 4294901760
      %v626 = vsub.f32 %v355, %v625
      %v627 = vand.u32 %v626, 4294901760
      %v628 = vsub.f32 %v626, %v627
      %v629 = vand.u32 %v628, 4294901760
      %630 = vmatprep.subr.mxu0 %v629
      %v631 = vand.u32 %v347, 4294901760
      %v632 = vsub.f32 %v347, %v631
      %v633 = vand.u32 %v632, 4294901760
      %v634 = vsub.f32 %v632, %v633
      %v635 = vand.u32 %v634, 4294901760
      %636 = vmatpush1.msra.mxu0 %v635
      %v637 = vand.u32 %v354, 4294901760
      %v638 = vsub.f32 %v354, %v637
      %v639 = vand.u32 %v638, 4294901760
      %v640 = vsub.f32 %v638, %v639
      %v641 = vand.u32 %v640, 4294901760
      %642 = vmatprep.subr.mxu0 %v641
      %v643 = vand.u32 %v346, 4294901760
      %v644 = vsub.f32 %v346, %v643
      %v645 = vand.u32 %v644, 4294901760
      %v646 = vsub.f32 %v644, %v645
      %v647 = vand.u32 %v646, 4294901760
      %648 = vmatpush1.msra.mxu0 %v647
      %v649 = vand.u32 %v353, 4294901760
      %v650 = vsub.f32 %v353, %v649
      %v651 = vand.u32 %v650, 4294901760
      %v652 = vsub.f32 %v650, %v651
      %v653 = vand.u32 %v652, 4294901760
      %654 = vmatprep.subr.mxu0 %v653
      %v655 = vand.u32 %v345, 4294901760
      %v656 = vsub.f32 %v345, %v655
      %v657 = vand.u32 %v656, 4294901760
      %v658 = vsub.f32 %v656, %v657
      %v659 = vand.u32 %v658, 4294901760
      %660 = vmatpush1.msra.mxu0 %v659
      %v661 = vand.u32 %v352, 4294901760
      %v662 = vsub.f32 %v352, %v661
      %v663 = vand.u32 %v662, 4294901760
      %v664 = vsub.f32 %v662, %v663
      %v665 = vand.u32 %v664, 4294901760
      %666 = vmatprep.subr.mxu0 %v665
      %v667 = vand.u32 %v344, 4294901760
      %v668 = vsub.f32 %v344, %v667
      %v669 = vand.u32 %v668, 4294901760
      %v670 = vsub.f32 %v668, %v669
      %v671 = vand.u32 %v670, 4294901760
      %672 = vmatpush1.msra.mxu0 %v671
      %673 = vmatprep.subr.mxu0 0.0
      %674 = vmatpush2.msra.mxu0 0.0
      %675 = vmatprep.subr.mxu0 0.0
      %676 = vmatpush2.msra.mxu0 0.0
      %677 = vmatprep.subr.mxu0 0.0
      %678 = vmatpush2.msra.mxu0 0.0
      %679 = vmatprep.subr.mxu0 0.0
      %680 = vmatpush2.msra.mxu0 0.0
      %681 = vmatprep.subr.mxu0 0.0
      %682 = vmatpush2.msra.mxu0 0.0
      %683 = vmatprep.subr.mxu0 0.0
      %684 = vmatpush2.msra.mxu0 0.0
      %685 = vmatprep.subr.mxu0 0.0
      %686 = vmatpush2.msra.mxu0 0.0
      %687 = vmatprep.subr.mxu0 0.0
      %688 = vmatpush2.msra.mxu0 0.0
      %689 = vmatprep.subr.mxu0 0.0
      %690 = vmatpush2.msra.mxu0 0.0
      %691 = vmatprep.subr.mxu0 0.0
      %692 = vmatpush2.msra.mxu0 0.0
      %693 = vmatprep.subr.mxu0 0.0
      %694 = vmatpush2.msra.mxu0 0.0
      %695 = vmatprep.subr.mxu0 0.0
      %696 = vmatpush2.msra.mxu0 0.0
      %697 = vmatprep.subr.mxu0 0.0
      %698 = vmatpush2.msra.mxu0 0.0
      %699 = vmatprep.subr.mxu0 0.0
      %700 = vmatpush2.msra.mxu0 0.0
      %701 = vmatprep.subr.mxu0 0.0
      %702 = vmatpush2.msra.mxu0 0.0
      %703 = vmatprep.subr.mxu0 0.0
      %704 = vmatpush2.msra.mxu0 0.0
      %705 = vmatprep.mubr.f32.mxu0 0.0
      %v706 = vand.u32 %v369, 4294901760
      %707 = vmatmul.mubr.f32.gmra.mxu0 %v706
      %v708 = vpop.f32.mrf.mxu0
      %v709 = vadd.f32 %v480, %v708
      %v710 = vpop.f32.mrf.mxu0
      %v711 = vadd.f32 %v482, %v710
      %712 = vmatprep.mubr.f32.mxu0 0.0
      %v713 = vand.u32 %v372, 4294901760
      %714 = vmatmul.mubr.f32.gmra.mxu0 %v713
      %v715 = vpop.f32.mrf.mxu0
      %v716 = vadd.f32 %v491, %v715
      %v717 = vpop.f32.mrf.mxu0
      %v718 = vadd.f32 %v493, %v717
      %719 = vmatprep.mubr.f32.mxu0 0.0
      %v720 = vand.u32 %v375, 4294901760
      %721 = vmatmul.mubr.f32.gmra.mxu0 %v720
      %v722 = vpop.f32.mrf.mxu0
      %v723 = vadd.f32 %v502, %v722
      %v724 = vpop.f32.mrf.mxu0
      %v725 = vadd.f32 %v504, %v724
      %726 = vmatprep.mubr.f32.mxu0 0.0
      %v727 = vand.u32 %v378, 4294901760
      %728 = vmatmul.mubr.f32.gmra.mxu0 %v727
      %v729 = vpop.f32.mrf.mxu0
      %v730 = vadd.f32 %v513, %v729
      %v731 = vpop.f32.mrf.mxu0
      %v732 = vadd.f32 %v515, %v731
      %733 = vmatprep.mubr.f32.mxu0 0.0
      %v734 = vand.u32 %v381, 4294901760
      %735 = vmatmul.mubr.f32.gmra.mxu0 %v734
      %v736 = vpop.f32.mrf.mxu0
      %v737 = vadd.f32 %v524, %v736
      %v738 = vpop.f32.mrf.mxu0
      %v739 = vadd.f32 %v526, %v738
      %740 = vmatprep.mubr.f32.mxu0 0.0
      %v741 = vand.u32 %v384, 4294901760
      %742 = vmatmul.mubr.f32.gmra.mxu0 %v741
      %v743 = vpop.f32.mrf.mxu0
      %v744 = vadd.f32 %v535, %v743
      %v745 = vpop.f32.mrf.mxu0
      %v746 = vadd.f32 %v537, %v745
      %747 = vmatprep.mubr.f32.mxu0 0.0
      %v748 = vand.u32 %v387, 4294901760
      %749 = vmatmul.mubr.f32.gmra.mxu0 %v748
      %v750 = vpop.f32.mrf.mxu0
      %v751 = vadd.f32 %v546, %v750
      %v752 = vpop.f32.mrf.mxu0
      %v753 = vadd.f32 %v548, %v752
      %754 = vmatprep.mubr.f32.mxu0 0.0
      %v755 = vand.u32 %v390, 4294901760
      %756 = vmatmul.mubr.f32.gmra.mxu0 %v755
      %v757 = vpop.f32.mrf.mxu0
      %v758 = vadd.f32 %v557, %v757
      %v759 = vpop.f32.mrf.mxu0
      %v760 = vadd.f32 %v559, %v759
      %761 = vdwg.mxu0
      %762 = vmatprep.subr.mxu0 0.0
      %763 = vmatpush1.msra.mxu0 0.0
      %764 = vmatprep.subr.mxu0 0.0
      %765 = vmatpush1.msra.mxu0 0.0
      %766 = vmatprep.subr.mxu0 0.0
      %767 = vmatpush1.msra.mxu0 0.0
      %768 = vmatprep.subr.mxu0 0.0
      %769 = vmatpush1.msra.mxu0 0.0
      %770 = vmatprep.subr.mxu0 0.0
      %771 = vmatpush1.msra.mxu0 0.0
      %772 = vmatprep.subr.mxu0 0.0
      %773 = vmatpush1.msra.mxu0 0.0
      %774 = vmatprep.subr.mxu0 0.0
      %775 = vmatpush1.msra.mxu0 0.0
      %776 = vmatprep.subr.mxu0 0.0
      %777 = vmatpush1.msra.mxu0 0.0
      %v778 = vand.u32 %v359, 4294901760
      %v779 = vsub.f32 %v359, %v778
      %780 = vmatprep.subr.mxu0 %v779
      %v781 = vand.u32 %v351, 4294901760
      %v782 = vsub.f32 %v351, %v781
      %783 = vmatpush1.msra.mxu0 %v782
      %v784 = vand.u32 %v358, 4294901760
      %v785 = vsub.f32 %v358, %v784
      %786 = vmatprep.subr.mxu0 %v785
      %v787 = vand.u32 %v350, 4294901760
      %v788 = vsub.f32 %v350, %v787
      %789 = vmatpush1.msra.mxu0 %v788
      %v790 = vand.u32 %v357, 4294901760
      %v791 = vsub.f32 %v357, %v790
      %792 = vmatprep.subr.mxu0 %v791
      %v793 = vand.u32 %v349, 4294901760
      %v794 = vsub.f32 %v349, %v793
      %795 = vmatpush1.msra.mxu0 %v794
      %v796 = vand.u32 %v356, 4294901760
      %v797 = vsub.f32 %v356, %v796
      %798 = vmatprep.subr.mxu0 %v797
      %v799 = vand.u32 %v348, 4294901760
      %v800 = vsub.f32 %v348, %v799
      %801 = vmatpush1.msra.mxu0 %v800
      %v802 = vand.u32 %v355, 4294901760
      %v803 = vsub.f32 %v355, %v802
      %804 = vmatprep.subr.mxu0 %v803
      %v805 = vand.u32 %v347, 4294901760
      %v806 = vsub.f32 %v347, %v805
      %807 = vmatpush1.msra.mxu0 %v806
      %v808 = vand.u32 %v354, 4294901760
      %v809 = vsub.f32 %v354, %v808
      %810 = vmatprep.subr.mxu0 %v809
      %v811 = vand.u32 %v346, 4294901760
      %v812 = vsub.f32 %v346, %v811
      %813 = vmatpush1.msra.mxu0 %v812
      %v814 = vand.u32 %v353, 4294901760
      %v815 = vsub.f32 %v353, %v814
      %816 = vmatprep.subr.mxu0 %v815
      %v817 = vand.u32 %v345, 4294901760
      %v818 = vsub.f32 %v345, %v817
      %819 = vmatpush1.msra.mxu0 %v818
      %v820 = vand.u32 %v352, 4294901760
      %v821 = vsub.f32 %v352, %v820
      %822 = vmatprep.subr.mxu0 %v821
      %v823 = vand.u32 %v344, 4294901760
      %v824 = vsub.f32 %v344, %v823
      %825 = vmatpush1.msra.mxu0 %v824
      %826 = vmatprep.subr.mxu0 0.0
      %827 = vmatpush2.msra.mxu0 0.0
      %828 = vmatprep.subr.mxu0 0.0
      %829 = vmatpush2.msra.mxu0 0.0
      %830 = vmatprep.subr.mxu0 0.0
      %831 = vmatpush2.msra.mxu0 0.0
      %832 = vmatprep.subr.mxu0 0.0
      %833 = vmatpush2.msra.mxu0 0.0
      %834 = vmatprep.subr.mxu0 0.0
      %835 = vmatpush2.msra.mxu0 0.0
      %836 = vmatprep.subr.mxu0 0.0
      %837 = vmatpush2.msra.mxu0 0.0
      %838 = vmatprep.subr.mxu0 0.0
      %839 = vmatpush2.msra.mxu0 0.0
      %840 = vmatprep.subr.mxu0 0.0
      %841 = vmatpush2.msra.mxu0 0.0
      %842 = vmatprep.subr.mxu0 0.0
      %843 = vmatpush2.msra.mxu0 0.0
      %844 = vmatprep.subr.mxu0 0.0
      %845 = vmatpush2.msra.mxu0 0.0
      %846 = vmatprep.subr.mxu0 0.0
      %847 = vmatpush2.msra.mxu0 0.0
      %848 = vmatprep.subr.mxu0 0.0
      %849 = vmatpush2.msra.mxu0 0.0
      %850 = vmatprep.subr.mxu0 0.0
      %851 = vmatpush2.msra.mxu0 0.0
      %852 = vmatprep.subr.mxu0 0.0
      %853 = vmatpush2.msra.mxu0 0.0
      %854 = vmatprep.subr.mxu0 0.0
      %855 = vmatpush2.msra.mxu0 0.0
      %856 = vmatprep.subr.mxu0 0.0
      %857 = vmatpush2.msra.mxu0 0.0
      %858 = vmatprep.mubr.f32.mxu0 0.0
      %v859 = vand.u32 %v369, 4294901760
      %v860 = vsub.f32 %v369, %v859
      %861 = vmatmul.mubr.f32.gmra.mxu0 %v860
      %v862 = vpop.f32.mrf.mxu0
      %v863 = vadd.f32 %v709, %v862
      %v864 = vpop.f32.mrf.mxu0
      %v865 = vadd.f32 %v711, %v864
      %866 = vmatprep.mubr.f32.mxu0 0.0
      %v867 = vand.u32 %v372, 4294901760
      %v868 = vsub.f32 %v372, %v867
      %869 = vmatmul.mubr.f32.gmra.mxu0 %v868
      %v870 = vpop.f32.mrf.mxu0
      %v871 = vadd.f32 %v716, %v870
      %v872 = vpop.f32.mrf.mxu0
      %v873 = vadd.f32 %v718, %v872
      %874 = vmatprep.mubr.f32.mxu0 0.0
      %v875 = vand.u32 %v375, 4294901760
      %v876 = vsub.f32 %v375, %v875
      %877 = vmatmul.mubr.f32.gmra.mxu0 %v876
      %v878 = vpop.f32.mrf.mxu0
      %v879 = vadd.f32 %v723, %v878
      %v880 = vpop.f32.mrf.mxu0
      %v881 = vadd.f32 %v725, %v880
      %882 = vmatprep.mubr.f32.mxu0 0.0
      %v883 = vand.u32 %v378, 4294901760
      %v884 = vsub.f32 %v378, %v883
      %885 = vmatmul.mubr.f32.gmra.mxu0 %v884
      %v886 = vpop.f32.mrf.mxu0
      %v887 = vadd.f32 %v730, %v886
      %v888 = vpop.f32.mrf.mxu0
      %v889 = vadd.f32 %v732, %v888
      %890 = vmatprep.mubr.f32.mxu0 0.0
      %v891 = vand.u32 %v381, 4294901760
      %v892 = vsub.f32 %v381, %v891
      %893 = vmatmul.mubr.f32.gmra.mxu0 %v892
      %v894 = vpop.f32.mrf.mxu0
      %v895 = vadd.f32 %v737, %v894
      %v896 = vpop.f32.mrf.mxu0
      %v897 = vadd.f32 %v739, %v896
      %898 = vmatprep.mubr.f32.mxu0 0.0
      %v899 = vand.u32 %v384, 4294901760
      %v900 = vsub.f32 %v384, %v899
      %901 = vmatmul.mubr.f32.gmra.mxu0 %v900
      %v902 = vpop.f32.mrf.mxu0
      %v903 = vadd.f32 %v744, %v902
      %v904 = vpop.f32.mrf.mxu0
      %v905 = vadd.f32 %v746, %v904
      %906 = vmatprep.mubr.f32.mxu0 0.0
      %v907 = vand.u32 %v387, 4294901760
      %v908 = vsub.f32 %v387, %v907
      %909 = vmatmul.mubr.f32.gmra.mxu0 %v908
      %v910 = vpop.f32.mrf.mxu0
      %v911 = vadd.f32 %v751, %v910
      %v912 = vpop.f32.mrf.mxu0
      %v913 = vadd.f32 %v753, %v912
      %914 = vmatprep.mubr.f32.mxu0 0.0
      %v915 = vand.u32 %v390, 4294901760
      %v916 = vsub.f32 %v390, %v915
      %917 = vmatmul.mubr.f32.gmra.mxu0 %v916
      %v918 = vpop.f32.mrf.mxu0
      %v919 = vadd.f32 %v758, %v918
      %v920 = vpop.f32.mrf.mxu0
      %v921 = vadd.f32 %v760, %v920
      %922 = vdwg.mxu0
      %923 = vmatprep.subr.mxu0 0.0
      %924 = vmatpush1.msra.mxu0 0.0
      %925 = vmatprep.subr.mxu0 0.0
      %926 = vmatpush1.msra.mxu0 0.0
      %927 = vmatprep.subr.mxu0 0.0
      %928 = vmatpush1.msra.mxu0 0.0
      %929 = vmatprep.subr.mxu0 0.0
      %930 = vmatpush1.msra.mxu0 0.0
      %931 = vmatprep.subr.mxu0 0.0
      %932 = vmatpush1.msra.mxu0 0.0
      %933 = vmatprep.subr.mxu0 0.0
      %934 = vmatpush1.msra.mxu0 0.0
      %935 = vmatprep.subr.mxu0 0.0
      %936 = vmatpush1.msra.mxu0 0.0
      %937 = vmatprep.subr.mxu0 0.0
      %938 = vmatpush1.msra.mxu0 0.0
      %v939 = vand.u32 %v359, 4294901760
      %940 = vmatprep.subr.mxu0 %v939
      %v941 = vand.u32 %v351, 4294901760
      %942 = vmatpush1.msra.mxu0 %v941
      %v943 = vand.u32 %v358, 4294901760
      %944 = vmatprep.subr.mxu0 %v943
      %v945 = vand.u32 %v350, 4294901760
      %946 = vmatpush1.msra.mxu0 %v945
      %v947 = vand.u32 %v357, 4294901760
      %948 = vmatprep.subr.mxu0 %v947
      %v949 = vand.u32 %v349, 4294901760
      %950 = vmatpush1.msra.mxu0 %v949
      %v951 = vand.u32 %v356, 4294901760
      %952 = vmatprep.subr.mxu0 %v951
      %v953 = vand.u32 %v348, 4294901760
      %954 = vmatpush1.msra.mxu0 %v953
      %v955 = vand.u32 %v355, 4294901760
      %956 = vmatprep.subr.mxu0 %v955
      %v957 = vand.u32 %v347, 4294901760
      %958 = vmatpush1.msra.mxu0 %v957
      %v959 = vand.u32 %v354, 4294901760
      %960 = vmatprep.subr.mxu0 %v959
      %v961 = vand.u32 %v346, 4294901760
      %962 = vmatpush1.msra.mxu0 %v961
      %v963 = vand.u32 %v353, 4294901760
      %964 = vmatprep.subr.mxu0 %v963
      %v965 = vand.u32 %v345, 4294901760
      %966 = vmatpush1.msra.mxu0 %v965
      %v967 = vand.u32 %v352, 4294901760
      %968 = vmatprep.subr.mxu0 %v967
      %v969 = vand.u32 %v344, 4294901760
      %970 = vmatpush1.msra.mxu0 %v969
      %971 = vmatprep.subr.mxu0 0.0
      %972 = vmatpush2.msra.mxu0 0.0
      %973 = vmatprep.subr.mxu0 0.0
      %974 = vmatpush2.msra.mxu0 0.0
      %975 = vmatprep.subr.mxu0 0.0
      %976 = vmatpush2.msra.mxu0 0.0
      %977 = vmatprep.subr.mxu0 0.0
      %978 = vmatpush2.msra.mxu0 0.0
      %979 = vmatprep.subr.mxu0 0.0
      %980 = vmatpush2.msra.mxu0 0.0
      %981 = vmatprep.subr.mxu0 0.0
      %982 = vmatpush2.msra.mxu0 0.0
      %983 = vmatprep.subr.mxu0 0.0
      %984 = vmatpush2.msra.mxu0 0.0
      %985 = vmatprep.subr.mxu0 0.0
      %986 = vmatpush2.msra.mxu0 0.0
      %987 = vmatprep.subr.mxu0 0.0
      %988 = vmatpush2.msra.mxu0 0.0
      %989 = vmatprep.subr.mxu0 0.0
      %990 = vmatpush2.msra.mxu0 0.0
      %991 = vmatprep.subr.mxu0 0.0
      %992 = vmatpush2.msra.mxu0 0.0
      %993 = vmatprep.subr.mxu0 0.0
      %994 = vmatpush2.msra.mxu0 0.0
      %995 = vmatprep.subr.mxu0 0.0
      %996 = vmatpush2.msra.mxu0 0.0
      %997 = vmatprep.subr.mxu0 0.0
      %998 = vmatpush2.msra.mxu0 0.0
      %999 = vmatprep.subr.mxu0 0.0
      %1000 = vmatpush2.msra.mxu0 0.0
      %1001 = vmatprep.subr.mxu0 0.0
      %1002 = vmatpush2.msra.mxu0 0.0
      %1003 = vmatprep.mubr.f32.mxu0 0.0
      %v1004 = vand.u32 %v369, 4294901760
      %v1005 = vsub.f32 %v369, %v1004
      %v1006 = vand.u32 %v1005, 4294901760
      %1007 = vmatmul.mubr.f32.gmra.mxu0 %v1006
      %v1008 = vpop.f32.mrf.mxu0
      %v1009 = vadd.f32 %v863, %v1008
      %v1010 = vpop.f32.mrf.mxu0
      %v1011 = vadd.f32 %v865, %v1010
      %1012 = vmatprep.mubr.f32.mxu0 0.0
      %v1013 = vand.u32 %v372, 4294901760
      %v1014 = vsub.f32 %v372, %v1013
      %v1015 = vand.u32 %v1014, 4294901760
      %1016 = vmatmul.mubr.f32.gmra.mxu0 %v1015
      %v1017 = vpop.f32.mrf.mxu0
      %v1018 = vadd.f32 %v871, %v1017
      %v1019 = vpop.f32.mrf.mxu0
      %v1020 = vadd.f32 %v873, %v1019
      %1021 = vmatprep.mubr.f32.mxu0 0.0
      %v1022 = vand.u32 %v375, 4294901760
      %v1023 = vsub.f32 %v375, %v1022
      %v1024 = vand.u32 %v1023, 4294901760
      %1025 = vmatmul.mubr.f32.gmra.mxu0 %v1024
      %v1026 = vpop.f32.mrf.mxu0
      %v1027 = vadd.f32 %v879, %v1026
      %v1028 = vpop.f32.mrf.mxu0
      %v1029 = vadd.f32 %v881, %v1028
      %1030 = vmatprep.mubr.f32.mxu0 0.0
      %v1031 = vand.u32 %v378, 4294901760
      %v1032 = vsub.f32 %v378, %v1031
      %v1033 = vand.u32 %v1032, 4294901760
      %1034 = vmatmul.mubr.f32.gmra.mxu0 %v1033
      %v1035 = vpop.f32.mrf.mxu0
      %v1036 = vadd.f32 %v887, %v1035
      %v1037 = vpop.f32.mrf.mxu0
      %v1038 = vadd.f32 %v889, %v1037
      %1039 = vmatprep.mubr.f32.mxu0 0.0
      %v1040 = vand.u32 %v381, 4294901760
      %v1041 = vsub.f32 %v381, %v1040
      %v1042 = vand.u32 %v1041, 4294901760
      %1043 = vmatmul.mubr.f32.gmra.mxu0 %v1042
      %v1044 = vpop.f32.mrf.mxu0
      %v1045 = vadd.f32 %v895, %v1044
      %v1046 = vpop.f32.mrf.mxu0
      %v1047 = vadd.f32 %v897, %v1046
      %1048 = vmatprep.mubr.f32.mxu0 0.0
      %v1049 = vand.u32 %v384, 4294901760
      %v1050 = vsub.f32 %v384, %v1049
      %v1051 = vand.u32 %v1050, 4294901760
      %1052 = vmatmul.mubr.f32.gmra.mxu0 %v1051
      %v1053 = vpop.f32.mrf.mxu0
      %v1054 = vadd.f32 %v903, %v1053
      %v1055 = vpop.f32.mrf.mxu0
      %v1056 = vadd.f32 %v905, %v1055
      %1057 = vmatprep.mubr.f32.mxu0 0.0
      %v1058 = vand.u32 %v387, 4294901760
      %v1059 = vsub.f32 %v387, %v1058
      %v1060 = vand.u32 %v1059, 4294901760
      %1061 = vmatmul.mubr.f32.gmra.mxu0 %v1060
      %v1062 = vpop.f32.mrf.mxu0
      %v1063 = vadd.f32 %v911, %v1062
      %v1064 = vpop.f32.mrf.mxu0
      %v1065 = vadd.f32 %v913, %v1064
      %1066 = vmatprep.mubr.f32.mxu0 0.0
      %v1067 = vand.u32 %v390, 4294901760
      %v1068 = vsub.f32 %v390, %v1067
      %v1069 = vand.u32 %v1068, 4294901760
      %1070 = vmatmul.mubr.f32.gmra.mxu0 %v1069
      %v1071 = vpop.f32.mrf.mxu0
      %v1072 = vadd.f32 %v919, %v1071
      %v1073 = vpop.f32.mrf.mxu0
      %v1074 = vadd.f32 %v921, %v1073
      %1075 = vdwg.mxu0
      %1076 = vmatprep.subr.mxu0 0.0
      %1077 = vmatpush1.msra.mxu0 0.0
      %1078 = vmatprep.subr.mxu0 0.0
      %1079 = vmatpush1.msra.mxu0 0.0
      %1080 = vmatprep.subr.mxu0 0.0
      %1081 = vmatpush1.msra.mxu0 0.0
      %1082 = vmatprep.subr.mxu0 0.0
      %1083 = vmatpush1.msra.mxu0 0.0
      %1084 = vmatprep.subr.mxu0 0.0
      %1085 = vmatpush1.msra.mxu0 0.0
      %1086 = vmatprep.subr.mxu0 0.0
      %1087 = vmatpush1.msra.mxu0 0.0
      %1088 = vmatprep.subr.mxu0 0.0
      %1089 = vmatpush1.msra.mxu0 0.0
      %1090 = vmatprep.subr.mxu0 0.0
      %1091 = vmatpush1.msra.mxu0 0.0
      %v1092 = vand.u32 %v359, 4294901760
      %v1093 = vsub.f32 %v359, %v1092
      %v1094 = vand.u32 %v1093, 4294901760
      %1095 = vmatprep.subr.mxu0 %v1094
      %v1096 = vand.u32 %v351, 4294901760
      %v1097 = vsub.f32 %v351, %v1096
      %v1098 = vand.u32 %v1097, 4294901760
      %1099 = vmatpush1.msra.mxu0 %v1098
      %v1100 = vand.u32 %v358, 4294901760
      %v1101 = vsub.f32 %v358, %v1100
      %v1102 = vand.u32 %v1101, 4294901760
      %1103 = vmatprep.subr.mxu0 %v1102
      %v1104 = vand.u32 %v350, 4294901760
      %v1105 = vsub.f32 %v350, %v1104
      %v1106 = vand.u32 %v1105, 4294901760
      %1107 = vmatpush1.msra.mxu0 %v1106
      %v1108 = vand.u32 %v357, 4294901760
      %v1109 = vsub.f32 %v357, %v1108
      %v1110 = vand.u32 %v1109, 4294901760
      %1111 = vmatprep.subr.mxu0 %v1110
      %v1112 = vand.u32 %v349, 4294901760
      %v1113 = vsub.f32 %v349, %v1112
      %v1114 = vand.u32 %v1113, 4294901760
      %1115 = vmatpush1.msra.mxu0 %v1114
      %v1116 = vand.u32 %v356, 4294901760
      %v1117 = vsub.f32 %v356, %v1116
      %v1118 = vand.u32 %v1117, 4294901760
      %1119 = vmatprep.subr.mxu0 %v1118
      %v1120 = vand.u32 %v348, 4294901760
      %v1121 = vsub.f32 %v348, %v1120
      %v1122 = vand.u32 %v1121, 4294901760
      %1123 = vmatpush1.msra.mxu0 %v1122
      %v1124 = vand.u32 %v355, 4294901760
      %v1125 = vsub.f32 %v355, %v1124
      %v1126 = vand.u32 %v1125, 4294901760
      %1127 = vmatprep.subr.mxu0 %v1126
      %v1128 = vand.u32 %v347, 4294901760
      %v1129 = vsub.f32 %v347, %v1128
      %v1130 = vand.u32 %v1129, 4294901760
      %1131 = vmatpush1.msra.mxu0 %v1130
      %v1132 = vand.u32 %v354, 4294901760
      %v1133 = vsub.f32 %v354, %v1132
      %v1134 = vand.u32 %v1133, 4294901760
      %1135 = vmatprep.subr.mxu0 %v1134
      %v1136 = vand.u32 %v346, 4294901760
      %v1137 = vsub.f32 %v346, %v1136
      %v1138 = vand.u32 %v1137, 4294901760
      %1139 = vmatpush1.msra.mxu0 %v1138
      %v1140 = vand.u32 %v353, 4294901760
      %v1141 = vsub.f32 %v353, %v1140
      %v1142 = vand.u32 %v1141, 4294901760
      %1143 = vmatprep.subr.mxu0 %v1142
      %v1144 = vand.u32 %v345, 4294901760
      %v1145 = vsub.f32 %v345, %v1144
      %v1146 = vand.u32 %v1145, 4294901760
      %1147 = vmatpush1.msra.mxu0 %v1146
      %v1148 = vand.u32 %v352, 4294901760
      %v1149 = vsub.f32 %v352, %v1148
      %v1150 = vand.u32 %v1149, 4294901760
      %1151 = vmatprep.subr.mxu0 %v1150
      %v1152 = vand.u32 %v344, 4294901760
      %v1153 = vsub.f32 %v344, %v1152
      %v1154 = vand.u32 %v1153, 4294901760
      %1155 = vmatpush1.msra.mxu0 %v1154
      %1156 = vmatprep.subr.mxu0 0.0
      %1157 = vmatpush2.msra.mxu0 0.0
      %1158 = vmatprep.subr.mxu0 0.0
      %1159 = vmatpush2.msra.mxu0 0.0
      %1160 = vmatprep.subr.mxu0 0.0
      %1161 = vmatpush2.msra.mxu0 0.0
      %1162 = vmatprep.subr.mxu0 0.0
      %1163 = vmatpush2.msra.mxu0 0.0
      %1164 = vmatprep.subr.mxu0 0.0
      %1165 = vmatpush2.msra.mxu0 0.0
      %1166 = vmatprep.subr.mxu0 0.0
      %1167 = vmatpush2.msra.mxu0 0.0
      %1168 = vmatprep.subr.mxu0 0.0
      %1169 = vmatpush2.msra.mxu0 0.0
      %1170 = vmatprep.subr.mxu0 0.0
      %1171 = vmatpush2.msra.mxu0 0.0
      %1172 = vmatprep.subr.mxu0 0.0
      %1173 = vmatpush2.msra.mxu0 0.0
      %1174 = vmatprep.subr.mxu0 0.0
      %1175 = vmatpush2.msra.mxu0 0.0
      %1176 = vmatprep.subr.mxu0 0.0
      %1177 = vmatpush2.msra.mxu0 0.0
      %1178 = vmatprep.subr.mxu0 0.0
      %1179 = vmatpush2.msra.mxu0 0.0
      %1180 = vmatprep.subr.mxu0 0.0
      %1181 = vmatpush2.msra.mxu0 0.0
      %1182 = vmatprep.subr.mxu0 0.0
      %1183 = vmatpush2.msra.mxu0 0.0
      %1184 = vmatprep.subr.mxu0 0.0
      %1185 = vmatpush2.msra.mxu0 0.0
      %1186 = vmatprep.subr.mxu0 0.0
      %1187 = vmatpush2.msra.mxu0 0.0
      %1188 = vmatprep.mubr.f32.mxu0 0.0
      %v1189 = vand.u32 %v369, 4294901760
      %1190 = vmatmul.mubr.f32.gmra.mxu0 %v1189
      %v1191 = vpop.f32.mrf.mxu0
      %v1192 = vadd.f32 %v1009, %v1191
      %v1193 = vpop.f32.mrf.mxu0
      %v1194 = vadd.f32 %v1011, %v1193
      %1195 = vmatprep.mubr.f32.mxu0 0.0
      %v1196 = vand.u32 %v372, 4294901760
      %1197 = vmatmul.mubr.f32.gmra.mxu0 %v1196
      %v1198 = vpop.f32.mrf.mxu0
      %v1199 = vadd.f32 %v1018, %v1198
      %v1200 = vpop.f32.mrf.mxu0
      %v1201 = vadd.f32 %v1020, %v1200
      %1202 = vmatprep.mubr.f32.mxu0 0.0
      %v1203 = vand.u32 %v375, 4294901760
      %1204 = vmatmul.mubr.f32.gmra.mxu0 %v1203
      %v1205 = vpop.f32.mrf.mxu0
      %v1206 = vadd.f32 %v1027, %v1205
      %v1207 = vpop.f32.mrf.mxu0
      %v1208 = vadd.f32 %v1029, %v1207
      %1209 = vmatprep.mubr.f32.mxu0 0.0
      %v1210 = vand.u32 %v378, 4294901760
      %1211 = vmatmul.mubr.f32.gmra.mxu0 %v1210
      %v1212 = vpop.f32.mrf.mxu0
      %v1213 = vadd.f32 %v1036, %v1212
      %v1214 = vpop.f32.mrf.mxu0
      %v1215 = vadd.f32 %v1038, %v1214
      %1216 = vmatprep.mubr.f32.mxu0 0.0
      %v1217 = vand.u32 %v381, 4294901760
      %1218 = vmatmul.mubr.f32.gmra.mxu0 %v1217
      %v1219 = vpop.f32.mrf.mxu0
      %v1220 = vadd.f32 %v1045, %v1219
      %v1221 = vpop.f32.mrf.mxu0
      %v1222 = vadd.f32 %v1047, %v1221
      %1223 = vmatprep.mubr.f32.mxu0 0.0
      %v1224 = vand.u32 %v384, 4294901760
      %1225 = vmatmul.mubr.f32.gmra.mxu0 %v1224
      %v1226 = vpop.f32.mrf.mxu0
      %v1227 = vadd.f32 %v1054, %v1226
      %v1228 = vpop.f32.mrf.mxu0
      %v1229 = vadd.f32 %v1056, %v1228
      %1230 = vmatprep.mubr.f32.mxu0 0.0
      %v1231 = vand.u32 %v387, 4294901760
      %1232 = vmatmul.mubr.f32.gmra.mxu0 %v1231
      %v1233 = vpop.f32.mrf.mxu0
      %v1234 = vadd.f32 %v1063, %v1233
      %v1235 = vpop.f32.mrf.mxu0
      %v1236 = vadd.f32 %v1065, %v1235
      %1237 = vmatprep.mubr.f32.mxu0 0.0
      %v1238 = vand.u32 %v390, 4294901760
      %1239 = vmatmul.mubr.f32.gmra.mxu0 %v1238
      %v1240 = vpop.f32.mrf.mxu0
      %v1241 = vadd.f32 %v1072, %v1240
      %v1242 = vpop.f32.mrf.mxu0
      %v1243 = vadd.f32 %v1074, %v1242
      %1244 = vdwg.mxu0
      %1245 = vmatprep.subr.mxu0 0.0
      %1246 = vmatpush1.msra.mxu0 0.0
      %1247 = vmatprep.subr.mxu0 0.0
      %1248 = vmatpush1.msra.mxu0 0.0
      %1249 = vmatprep.subr.mxu0 0.0
      %1250 = vmatpush1.msra.mxu0 0.0
      %1251 = vmatprep.subr.mxu0 0.0
      %1252 = vmatpush1.msra.mxu0 0.0
      %1253 = vmatprep.subr.mxu0 0.0
      %1254 = vmatpush1.msra.mxu0 0.0
      %1255 = vmatprep.subr.mxu0 0.0
      %1256 = vmatpush1.msra.mxu0 0.0
      %1257 = vmatprep.subr.mxu0 0.0
      %1258 = vmatpush1.msra.mxu0 0.0
      %1259 = vmatprep.subr.mxu0 0.0
      %1260 = vmatpush1.msra.mxu0 0.0
      %v1261 = vand.u32 %v359, 4294901760
      %1262 = vmatprep.subr.mxu0 %v1261
      %v1263 = vand.u32 %v351, 4294901760
      %1264 = vmatpush1.msra.mxu0 %v1263
      %v1265 = vand.u32 %v358, 4294901760
      %1266 = vmatprep.subr.mxu0 %v1265
      %v1267 = vand.u32 %v350, 4294901760
      %1268 = vmatpush1.msra.mxu0 %v1267
      %v1269 = vand.u32 %v357, 4294901760
      %1270 = vmatprep.subr.mxu0 %v1269
      %v1271 = vand.u32 %v349, 4294901760
      %1272 = vmatpush1.msra.mxu0 %v1271
      %v1273 = vand.u32 %v356, 4294901760
      %1274 = vmatprep.subr.mxu0 %v1273
      %v1275 = vand.u32 %v348, 4294901760
      %1276 = vmatpush1.msra.mxu0 %v1275
      %v1277 = vand.u32 %v355, 4294901760
      %1278 = vmatprep.subr.mxu0 %v1277
      %v1279 = vand.u32 %v347, 4294901760
      %1280 = vmatpush1.msra.mxu0 %v1279
      %v1281 = vand.u32 %v354, 4294901760
      %1282 = vmatprep.subr.mxu0 %v1281
      %v1283 = vand.u32 %v346, 4294901760
      %1284 = vmatpush1.msra.mxu0 %v1283
      %v1285 = vand.u32 %v353, 4294901760
      %1286 = vmatprep.subr.mxu0 %v1285
      %v1287 = vand.u32 %v345, 4294901760
      %1288 = vmatpush1.msra.mxu0 %v1287
      %v1289 = vand.u32 %v352, 4294901760
      %1290 = vmatprep.subr.mxu0 %v1289
      %v1291 = vand.u32 %v344, 4294901760
      %1292 = vmatpush1.msra.mxu0 %v1291
      %1293 = vmatprep.subr.mxu0 0.0
      %1294 = vmatpush2.msra.mxu0 0.0
      %1295 = vmatprep.subr.mxu0 0.0
      %1296 = vmatpush2.msra.mxu0 0.0
      %1297 = vmatprep.subr.mxu0 0.0
      %1298 = vmatpush2.msra.mxu0 0.0
      %1299 = vmatprep.subr.mxu0 0.0
      %1300 = vmatpush2.msra.mxu0 0.0
      %1301 = vmatprep.subr.mxu0 0.0
      %1302 = vmatpush2.msra.mxu0 0.0
      %1303 = vmatprep.subr.mxu0 0.0
      %1304 = vmatpush2.msra.mxu0 0.0
      %1305 = vmatprep.subr.mxu0 0.0
      %1306 = vmatpush2.msra.mxu0 0.0
      %1307 = vmatprep.subr.mxu0 0.0
      %1308 = vmatpush2.msra.mxu0 0.0
      %1309 = vmatprep.subr.mxu0 0.0
      %1310 = vmatpush2.msra.mxu0 0.0
      %1311 = vmatprep.subr.mxu0 0.0
      %1312 = vmatpush2.msra.mxu0 0.0
      %1313 = vmatprep.subr.mxu0 0.0
      %1314 = vmatpush2.msra.mxu0 0.0
      %1315 = vmatprep.subr.mxu0 0.0
      %1316 = vmatpush2.msra.mxu0 0.0
      %1317 = vmatprep.subr.mxu0 0.0
      %1318 = vmatpush2.msra.mxu0 0.0
      %1319 = vmatprep.subr.mxu0 0.0
      %1320 = vmatpush2.msra.mxu0 0.0
      %1321 = vmatprep.subr.mxu0 0.0
      %1322 = vmatpush2.msra.mxu0 0.0
      %1323 = vmatprep.subr.mxu0 0.0
      %1324 = vmatpush2.msra.mxu0 0.0
      %1325 = vmatprep.mubr.f32.mxu0 0.0
      %v1326 = vand.u32 %v369, 4294901760
      %1327 = vmatmul.mubr.f32.gmra.mxu0 %v1326
      %v1328 = vpop.f32.mrf.mxu0
      %v1329 = vadd.f32 %v1192, %v1328
      %v1330 = vpop.f32.mrf.mxu0
      %v1331 = vadd.f32 %v1194, %v1330
      %1332 = vmatprep.mubr.f32.mxu0 0.0
      %v1333 = vand.u32 %v372, 4294901760
      %1334 = vmatmul.mubr.f32.gmra.mxu0 %v1333
      %v1335 = vpop.f32.mrf.mxu0
      %v1336 = vadd.f32 %v1199, %v1335
      %v1337 = vpop.f32.mrf.mxu0
      %v1338 = vadd.f32 %v1201, %v1337
      %1339 = vmatprep.mubr.f32.mxu0 0.0
      %v1340 = vand.u32 %v375, 4294901760
      %1341 = vmatmul.mubr.f32.gmra.mxu0 %v1340
      %v1342 = vpop.f32.mrf.mxu0
      %v1343 = vadd.f32 %v1206, %v1342
      %v1344 = vpop.f32.mrf.mxu0
      %v1345 = vadd.f32 %v1208, %v1344
      %1346 = vmatprep.mubr.f32.mxu0 0.0
      %v1347 = vand.u32 %v378, 4294901760
      %1348 = vmatmul.mubr.f32.gmra.mxu0 %v1347
      %v1349 = vpop.f32.mrf.mxu0
      %v1350 = vadd.f32 %v1213, %v1349
      %v1351 = vpop.f32.mrf.mxu0
      %v1352 = vadd.f32 %v1215, %v1351
      %1353 = vmatprep.mubr.f32.mxu0 0.0
      %v1354 = vand.u32 %v381, 4294901760
      %1355 = vmatmul.mubr.f32.gmra.mxu0 %v1354
      %v1356 = vpop.f32.mrf.mxu0
      %v1357 = vadd.f32 %v1220, %v1356
      %v1358 = vpop.f32.mrf.mxu0
      %v1359 = vadd.f32 %v1222, %v1358
      %1360 = vmatprep.mubr.f32.mxu0 0.0
      %v1361 = vand.u32 %v384, 4294901760
      %1362 = vmatmul.mubr.f32.gmra.mxu0 %v1361
      %v1363 = vpop.f32.mrf.mxu0
      %v1364 = vadd.f32 %v1227, %v1363
      %v1365 = vpop.f32.mrf.mxu0
      %v1366 = vadd.f32 %v1229, %v1365
      %1367 = vmatprep.mubr.f32.mxu0 0.0
      %v1368 = vand.u32 %v387, 4294901760
      %1369 = vmatmul.mubr.f32.gmra.mxu0 %v1368
      %v1370 = vpop.f32.mrf.mxu0
      %v1371 = vadd.f32 %v1234, %v1370
      %v1372 = vpop.f32.mrf.mxu0
      %v1373 = vadd.f32 %v1236, %v1372
      %1374 = vmatprep.mubr.f32.mxu0 0.0
      %v1375 = vand.u32 %v390, 4294901760
      %1376 = vmatmul.mubr.f32.gmra.mxu0 %v1375
      %v1377 = vpop.f32.mrf.mxu0
      %v1378 = vadd.f32 %v1241, %v1377
      %v1379 = vpop.f32.mrf.mxu0
      %v1380 = vadd.f32 %v1243, %v1379
      %1381 = vdwg.mxu0
      %v1382 = vld [vmem:[%s2] sm:$0xff]
      %v1383 = vld [vmem:[%s2 + $0x8] sm:$0xff]
      %v1384 = vld [vmem:[%s2 + $0x10] sm:$0xff]
      %v1385 = vld [vmem:[%s2 + $0x18] sm:$0xff]
      %v1386 = vld [vmem:[%s2 + $0x20] sm:$0xff]
      %v1387 = vld [vmem:[%s2 + $0x28] sm:$0xff]
      %v1388 = vld [vmem:[%s2 + $0x30] sm:$0xff]
      %v1389 = vld [vmem:[%s2 + $0x38] sm:$0xff]
      %v1390 = vld [vmem:[%s2 + $0x40] sm:$0xff]
      %v1391 = vld [vmem:[%s2 + $0x48] sm:$0xff]
      %v1392 = vld [vmem:[%s2 + $0x50] sm:$0xff]
      %v1393 = vld [vmem:[%s2 + $0x58] sm:$0xff]
      %v1394 = vld [vmem:[%s2 + $0x60] sm:$0xff]
      %v1395 = vld [vmem:[%s2 + $0x68] sm:$0xff]
      %v1396 = vld [vmem:[%s2 + $0x70] sm:$0xff]
      %v1397 = vld [vmem:[%s2 + $0x78] sm:$0xff]
      %v1398 = vld [vmem:[%s2 + $0x80] sm:$0xff]
      %v1399 = vld [vmem:[%s2 + $0x88] sm:$0xff]
      %v1400 = vld [vmem:[%s2 + $0x90] sm:$0xff]
      %v1401 = vld [vmem:[%s2 + $0x98] sm:$0xff]
      %v1402 = vld [vmem:[%s2 + $0xa0] sm:$0xff]
      %v1403 = vld [vmem:[%s2 + $0xa8] sm:$0xff]
      %v1404 = vld [vmem:[%s2 + $0xb0] sm:$0xff]
      %v1405 = vld [vmem:[%s2 + $0xb8] sm:$0xff]
      %v1406 = vld [vmem:[%s2 + $0xc0] sm:$0xff]
      %v1407 = vld [vmem:[%s2 + $0xc8] sm:$0xff]
      %v1408 = vld [vmem:[%s2 + $0xd0] sm:$0xff]
      %v1409 = vld [vmem:[%s2 + $0xd8] sm:$0xff]
      %v1410 = vld [vmem:[%s2 + $0xe0] sm:$0xff]
      %v1411 = vld [vmem:[%s2 + $0xe8] sm:$0xff]
      %v1412 = vld [vmem:[%s2 + $0xf0] sm:$0xff]
      %v1413 = vld [vmem:[%s2 + $0xf8] sm:$0xff]
      %v1414 = vld [vmem:[%s2 + $0x100] sm:$0xff]
      %v1415 = vld [vmem:[%s2 + $0x108] sm:$0xff]
      %v1416 = vld [vmem:[%s2 + $0x110] sm:$0xff]
      %v1417 = vld [vmem:[%s2 + $0x118] sm:$0xff]
      %v1418 = vld [vmem:[%s2 + $0x120] sm:$0xff]
      %v1419 = vld [vmem:[%s2 + $0x128] sm:$0xff]
      %v1420 = vld [vmem:[%s2 + $0x130] sm:$0xff]
      %v1421 = vld [vmem:[%s2 + $0x138] sm:$0xff]
      %v1422 = vld [vmem:[%s2 + $0x140] sm:$0xff]
      %v1423 = vld [vmem:[%s2 + $0x148] sm:$0xff]
      %v1424 = vld [vmem:[%s2 + $0x150] sm:$0xff]
      %v1425 = vld [vmem:[%s2 + $0x158] sm:$0xff]
      %v1426 = vld [vmem:[%s2 + $0x160] sm:$0xff]
      %v1427 = vld [vmem:[%s2 + $0x168] sm:$0xff]
      %v1428 = vld [vmem:[%s2 + $0x170] sm:$0xff]
      %v1429 = vld [vmem:[%s2 + $0x178] sm:$0xff]
      %v1430 = vld [vmem:[%s2 + $0x180] sm:$0xff]
      %v1431 = vld [vmem:[%s2 + $0x188] sm:$0xff]
      %v1432 = vld [vmem:[%s2 + $0x190] sm:$0xff]
      %v1433 = vld [vmem:[%s2 + $0x198] sm:$0xff]
      %v1434 = vld [vmem:[%s2 + $0x1a0] sm:$0xff]
      %v1435 = vld [vmem:[%s2 + $0x1a8] sm:$0xff]
      %v1436 = vld [vmem:[%s2 + $0x1b0] sm:$0xff]
      %v1437 = vld [vmem:[%s2 + $0x1b8] sm:$0xff]
      %v1438 = vld [vmem:[%s2 + $0x1c0] sm:$0xff]
      %v1439 = vld [vmem:[%s2 + $0x1c8] sm:$0xff]
      %v1440 = vld [vmem:[%s2 + $0x1d0] sm:$0xff]
      %v1441 = vld [vmem:[%s2 + $0x1d8] sm:$0xff]
      %v1442 = vld [vmem:[%s2 + $0x1e0] sm:$0xff]
      %v1443 = vld [vmem:[%s2 + $0x1e8] sm:$0xff]
      %v1444 = vld [vmem:[%s2 + $0x1f0] sm:$0xff]
      %v1445 = vld [vmem:[%s2 + $0x1f8] sm:$0xff]
      %v1446 = vand.u32 %v1413, 4294901760
      %1447 = vmatprep.subr.mxu0 %v1446
      %v1448 = vand.u32 %v1412, 4294901760
      %1449 = vmatpush1.msra.mxu0 %v1448
      %v1450 = vand.u32 %v1411, 4294901760
      %1451 = vmatprep.subr.mxu0 %v1450
      %v1452 = vand.u32 %v1410, 4294901760
      %1453 = vmatpush1.msra.mxu0 %v1452
      %v1454 = vand.u32 %v1409, 4294901760
      %1455 = vmatprep.subr.mxu0 %v1454
      %v1456 = vand.u32 %v1408, 4294901760
      %1457 = vmatpush1.msra.mxu0 %v1456
      %v1458 = vand.u32 %v1407, 4294901760
      %1459 = vmatprep.subr.mxu0 %v1458
      %v1460 = vand.u32 %v1406, 4294901760
      %1461 = vmatpush1.msra.mxu0 %v1460
      %v1462 = vand.u32 %v1405, 4294901760
      %1463 = vmatprep.subr.mxu0 %v1462
      %v1464 = vand.u32 %v1404, 4294901760
      %1465 = vmatpush1.msra.mxu0 %v1464
      %v1466 = vand.u32 %v1403, 4294901760
      %1467 = vmatprep.subr.mxu0 %v1466
      %v1468 = vand.u32 %v1402, 4294901760
      %1469 = vmatpush1.msra.mxu0 %v1468
      %v1470 = vand.u32 %v1401, 4294901760
      %1471 = vmatprep.subr.mxu0 %v1470
      %v1472 = vand.u32 %v1400, 4294901760
      %1473 = vmatpush1.msra.mxu0 %v1472
      %v1474 = vand.u32 %v1399, 4294901760
      %1475 = vmatprep.subr.mxu0 %v1474
      %v1476 = vand.u32 %v1398, 4294901760
      %1477 = vmatpush1.msra.mxu0 %v1476
      %v1478 = vand.u32 %v1397, 4294901760
      %1479 = vmatprep.subr.mxu0 %v1478
      %v1480 = vand.u32 %v1396, 4294901760
      %1481 = vmatpush1.msra.mxu0 %v1480
      %v1482 = vand.u32 %v1395, 4294901760
      %1483 = vmatprep.subr.mxu0 %v1482
      %v1484 = vand.u32 %v1394, 4294901760
      %1485 = vmatpush1.msra.mxu0 %v1484
      %v1486 = vand.u32 %v1393, 4294901760
      %1487 = vmatprep.subr.mxu0 %v1486
      %v1488 = vand.u32 %v1392, 4294901760
      %1489 = vmatpush1.msra.mxu0 %v1488
      %v1490 = vand.u32 %v1391, 4294901760
      %1491 = vmatprep.subr.mxu0 %v1490
      %v1492 = vand.u32 %v1390, 4294901760
      %1493 = vmatpush1.msra.mxu0 %v1492
      %v1494 = vand.u32 %v1389, 4294901760
      %1495 = vmatprep.subr.mxu0 %v1494
      %v1496 = vand.u32 %v1388, 4294901760
      %1497 = vmatpush1.msra.mxu0 %v1496
      %v1498 = vand.u32 %v1387, 4294901760
      %1499 = vmatprep.subr.mxu0 %v1498
      %v1500 = vand.u32 %v1386, 4294901760
      %1501 = vmatpush1.msra.mxu0 %v1500
      %v1502 = vand.u32 %v1385, 4294901760
      %1503 = vmatprep.subr.mxu0 %v1502
      %v1504 = vand.u32 %v1384, 4294901760
      %1505 = vmatpush1.msra.mxu0 %v1504
      %v1506 = vand.u32 %v1383, 4294901760
      %1507 = vmatprep.subr.mxu0 %v1506
      %v1508 = vand.u32 %v1382, 4294901760
      %1509 = vmatpush1.msra.mxu0 %v1508
      %v1510 = vand.u32 %v1445, 4294901760
      %1511 = vmatprep.subr.mxu0 %v1510
      %v1512 = vand.u32 %v1444, 4294901760
      %1513 = vmatpush2.msra.mxu0 %v1512
      %v1514 = vand.u32 %v1443, 4294901760
      %1515 = vmatprep.subr.mxu0 %v1514
      %v1516 = vand.u32 %v1442, 4294901760
      %1517 = vmatpush2.msra.mxu0 %v1516
      %v1518 = vand.u32 %v1441, 4294901760
      %1519 = vmatprep.subr.mxu0 %v1518
      %v1520 = vand.u32 %v1440, 4294901760
      %1521 = vmatpush2.msra.mxu0 %v1520
      %v1522 = vand.u32 %v1439, 4294901760
      %1523 = vmatprep.subr.mxu0 %v1522
      %v1524 = vand.u32 %v1438, 4294901760
      %1525 = vmatpush2.msra.mxu0 %v1524
      %v1526 = vand.u32 %v1437, 4294901760
      %1527 = vmatprep.subr.mxu0 %v1526
      %v1528 = vand.u32 %v1436, 4294901760
      %1529 = vmatpush2.msra.mxu0 %v1528
      %v1530 = vand.u32 %v1435, 4294901760
      %1531 = vmatprep.subr.mxu0 %v1530
      %v1532 = vand.u32 %v1434, 4294901760
      %1533 = vmatpush2.msra.mxu0 %v1532
      %v1534 = vand.u32 %v1433, 4294901760
      %1535 = vmatprep.subr.mxu0 %v1534
      %v1536 = vand.u32 %v1432, 4294901760
      %1537 = vmatpush2.msra.mxu0 %v1536
      %v1538 = vand.u32 %v1431, 4294901760
      %1539 = vmatprep.subr.mxu0 %v1538
      %v1540 = vand.u32 %v1430, 4294901760
      %1541 = vmatpush2.msra.mxu0 %v1540
      %v1542 = vand.u32 %v1429, 4294901760
      %1543 = vmatprep.subr.mxu0 %v1542
      %v1544 = vand.u32 %v1428, 4294901760
      %1545 = vmatpush2.msra.mxu0 %v1544
      %v1546 = vand.u32 %v1427, 4294901760
      %1547 = vmatprep.subr.mxu0 %v1546
      %v1548 = vand.u32 %v1426, 4294901760
      %1549 = vmatpush2.msra.mxu0 %v1548
      %v1550 = vand.u32 %v1425, 4294901760
      %1551 = vmatprep.subr.mxu0 %v1550
      %v1552 = vand.u32 %v1424, 4294901760
      %1553 = vmatpush2.msra.mxu0 %v1552
      %v1554 = vand.u32 %v1423, 4294901760
      %1555 = vmatprep.subr.mxu0 %v1554
      %v1556 = vand.u32 %v1422, 4294901760
      %1557 = vmatpush2.msra.mxu0 %v1556
      %v1558 = vand.u32 %v1421, 4294901760
      %1559 = vmatprep.subr.mxu0 %v1558
      %v1560 = vand.u32 %v1420, 4294901760
      %1561 = vmatpush2.msra.mxu0 %v1560
      %v1562 = vand.u32 %v1419, 4294901760
      %1563 = vmatprep.subr.mxu0 %v1562
      %v1564 = vand.u32 %v1418, 4294901760
      %1565 = vmatpush2.msra.mxu0 %v1564
      %v1566 = vand.u32 %v1417, 4294901760
      %1567 = vmatprep.subr.mxu0 %v1566
      %v1568 = vand.u32 %v1416, 4294901760
      %1569 = vmatpush2.msra.mxu0 %v1568
      %v1570 = vand.u32 %v1415, 4294901760
      %1571 = vmatprep.subr.mxu0 %v1570
      %v1572 = vand.u32 %v1414, 4294901760
      %1573 = vmatpush2.msra.mxu0 %v1572
      %v1574 = vand.u32 %v1331, 4294901760
      %v1575 = vsub.f32 %v1331, %v1574
      %v1576 = vand.u32 %v1575, 4294901760
      %v1577 = vsub.f32 %v1575, %v1576
      %v1578 = vand.u32 %v1577, 4294901760
      %1579 = vmatprep.mubr.f32.mxu0 %v1578
      %v1580 = vand.u32 %v1329, 4294901760
      %v1581 = vsub.f32 %v1329, %v1580
      %v1582 = vand.u32 %v1581, 4294901760
      %v1583 = vsub.f32 %v1581, %v1582
      %v1584 = vand.u32 %v1583, 4294901760
      %1585 = vmatmul.mubr.f32.gmra.mxu0 %v1584
      %v1586 = vpop.f32.mrf.mxu0
      %v1587 = vadd.f32 0.0, %v1586
      %v1588 = vpop.f32.mrf.mxu0
      %v1589 = vadd.f32 0.0, %v1588
      %v1590 = vand.u32 %v1338, 4294901760
      %v1591 = vsub.f32 %v1338, %v1590
      %v1592 = vand.u32 %v1591, 4294901760
      %v1593 = vsub.f32 %v1591, %v1592
      %v1594 = vand.u32 %v1593, 4294901760
      %1595 = vmatprep.mubr.f32.mxu0 %v1594
      %v1596 = vand.u32 %v1336, 4294901760
      %v1597 = vsub.f32 %v1336, %v1596
      %v1598 = vand.u32 %v1597, 4294901760
      %v1599 = vsub.f32 %v1597, %v1598
      %v1600 = vand.u32 %v1599, 4294901760
      %1601 = vmatmul.mubr.f32.gmra.mxu0 %v1600
      %v1602 = vpop.f32.mrf.mxu0
      %v1603 = vadd.f32 0.0, %v1602
      %v1604 = vpop.f32.mrf.mxu0
      %v1605 = vadd.f32 0.0, %v1604
      %v1606 = vand.u32 %v1345, 4294901760
      %v1607 = vsub.f32 %v1345, %v1606
      %v1608 = vand.u32 %v1607, 4294901760
      %v1609 = vsub.f32 %v1607, %v1608
      %v1610 = vand.u32 %v1609, 4294901760
      %1611 = vmatprep.mubr.f32.mxu0 %v1610
      %v1612 = vand.u32 %v1343, 4294901760
      %v1613 = vsub.f32 %v1343, %v1612
      %v1614 = vand.u32 %v1613, 4294901760
      %v1615 = vsub.f32 %v1613, %v1614
      %v1616 = vand.u32 %v1615, 4294901760
      %1617 = vmatmul.mubr.f32.gmra.mxu0 %v1616
      %v1618 = vpop.f32.mrf.mxu0
      %v1619 = vadd.f32 0.0, %v1618
      %v1620 = vpop.f32.mrf.mxu0
      %v1621 = vadd.f32 0.0, %v1620
      %v1622 = vand.u32 %v1352, 4294901760
      %v1623 = vsub.f32 %v1352, %v1622
      %v1624 = vand.u32 %v1623, 4294901760
      %v1625 = vsub.f32 %v1623, %v1624
      %v1626 = vand.u32 %v1625, 4294901760
      %1627 = vmatprep.mubr.f32.mxu0 %v1626
      %v1628 = vand.u32 %v1350, 4294901760
      %v1629 = vsub.f32 %v1350, %v1628
      %v1630 = vand.u32 %v1629, 4294901760
      %v1631 = vsub.f32 %v1629, %v1630
      %v1632 = vand.u32 %v1631, 4294901760
      %1633 = vmatmul.mubr.f32.gmra.mxu0 %v1632
      %v1634 = vpop.f32.mrf.mxu0
      %v1635 = vadd.f32 0.0, %v1634
      %v1636 = vpop.f32.mrf.mxu0
      %v1637 = vadd.f32 0.0, %v1636
      %v1638 = vand.u32 %v1359, 4294901760
      %v1639 = vsub.f32 %v1359, %v1638
      %v1640 = vand.u32 %v1639, 4294901760
      %v1641 = vsub.f32 %v1639, %v1640
      %v1642 = vand.u32 %v1641, 4294901760
      %1643 = vmatprep.mubr.f32.mxu0 %v1642
      %v1644 = vand.u32 %v1357, 4294901760
      %v1645 = vsub.f32 %v1357, %v1644
      %v1646 = vand.u32 %v1645, 4294901760
      %v1647 = vsub.f32 %v1645, %v1646
      %v1648 = vand.u32 %v1647, 4294901760
      %1649 = vmatmul.mubr.f32.gmra.mxu0 %v1648
      %v1650 = vpop.f32.mrf.mxu0
      %v1651 = vadd.f32 0.0, %v1650
      %v1652 = vpop.f32.mrf.mxu0
      %v1653 = vadd.f32 0.0, %v1652
      %v1654 = vand.u32 %v1366, 4294901760
      %v1655 = vsub.f32 %v1366, %v1654
      %v1656 = vand.u32 %v1655, 4294901760
      %v1657 = vsub.f32 %v1655, %v1656
      %v1658 = vand.u32 %v1657, 4294901760
      %1659 = vmatprep.mubr.f32.mxu0 %v1658
      %v1660 = vand.u32 %v1364, 4294901760
      %v1661 = vsub.f32 %v1364, %v1660
      %v1662 = vand.u32 %v1661, 4294901760
      %v1663 = vsub.f32 %v1661, %v1662
      %v1664 = vand.u32 %v1663, 4294901760
      %1665 = vmatmul.mubr.f32.gmra.mxu0 %v1664
      %v1666 = vpop.f32.mrf.mxu0
      %v1667 = vadd.f32 0.0, %v1666
      %v1668 = vpop.f32.mrf.mxu0
      %v1669 = vadd.f32 0.0, %v1668
      %v1670 = vand.u32 %v1373, 4294901760
      %v1671 = vsub.f32 %v1373, %v1670
      %v1672 = vand.u32 %v1671, 4294901760
      %v1673 = vsub.f32 %v1671, %v1672
      %v1674 = vand.u32 %v1673, 4294901760
      %1675 = vmatprep.mubr.f32.mxu0 %v1674
      %v1676 = vand.u32 %v1371, 4294901760
      %v1677 = vsub.f32 %v1371, %v1676
      %v1678 = vand.u32 %v1677, 4294901760
      %v1679 = vsub.f32 %v1677, %v1678
      %v1680 = vand.u32 %v1679, 4294901760
      %1681 = vmatmul.mubr.f32.gmra.mxu0 %v1680
      %v1682 = vpop.f32.mrf.mxu0
      %v1683 = vadd.f32 0.0, %v1682
      %v1684 = vpop.f32.mrf.mxu0
      %v1685 = vadd.f32 0.0, %v1684
      %v1686 = vand.u32 %v1380, 4294901760
      %v1687 = vsub.f32 %v1380, %v1686
      %v1688 = vand.u32 %v1687, 4294901760
      %v1689 = vsub.f32 %v1687, %v1688
      %v1690 = vand.u32 %v1689, 4294901760
      %1691 = vmatprep.mubr.f32.mxu0 %v1690
      %v1692 = vand.u32 %v1378, 4294901760
      %v1693 = vsub.f32 %v1378, %v1692
      %v1694 = vand.u32 %v1693, 4294901760
      %v1695 = vsub.f32 %v1693, %v1694
      %v1696 = vand.u32 %v1695, 4294901760
      %1697 = vmatmul.mubr.f32.gmra.mxu0 %v1696
      %v1698 = vpop.f32.mrf.mxu0
      %v1699 = vadd.f32 0.0, %v1698
      %v1700 = vpop.f32.mrf.mxu0
      %v1701 = vadd.f32 0.0, %v1700
      %1702 = vdwg.mxu0
      %v1703 = vand.u32 %v1413, 4294901760
      %v1704 = vsub.f32 %v1413, %v1703
      %v1705 = vand.u32 %v1704, 4294901760
      %v1706 = vsub.f32 %v1704, %v1705
      %v1707 = vand.u32 %v1706, 4294901760
      %1708 = vmatprep.subr.mxu0 %v1707
      %v1709 = vand.u32 %v1412, 4294901760
      %v1710 = vsub.f32 %v1412, %v1709
      %v1711 = vand.u32 %v1710, 4294901760
      %v1712 = vsub.f32 %v1710, %v1711
      %v1713 = vand.u32 %v1712, 4294901760
      %1714 = vmatpush1.msra.mxu0 %v1713
      %v1715 = vand.u32 %v1411, 4294901760
      %v1716 = vsub.f32 %v1411, %v1715
      %v1717 = vand.u32 %v1716, 4294901760
      %v1718 = vsub.f32 %v1716, %v1717
      %v1719 = vand.u32 %v1718, 4294901760
      %1720 = vmatprep.subr.mxu0 %v1719
      %v1721 = vand.u32 %v1410, 4294901760
      %v1722 = vsub.f32 %v1410, %v1721
      %v1723 = vand.u32 %v1722, 4294901760
      %v1724 = vsub.f32 %v1722, %v1723
      %v1725 = vand.u32 %v1724, 4294901760
      %1726 = vmatpush1.msra.mxu0 %v1725
      %v1727 = vand.u32 %v1409, 4294901760
      %v1728 = vsub.f32 %v1409, %v1727
      %v1729 = vand.u32 %v1728, 4294901760
      %v1730 = vsub.f32 %v1728, %v1729
      %v1731 = vand.u32 %v1730, 4294901760
      %1732 = vmatprep.subr.mxu0 %v1731
      %v1733 = vand.u32 %v1408, 4294901760
      %v1734 = vsub.f32 %v1408, %v1733
      %v1735 = vand.u32 %v1734, 4294901760
      %v1736 = vsub.f32 %v1734, %v1735
      %v1737 = vand.u32 %v1736, 4294901760
      %1738 = vmatpush1.msra.mxu0 %v1737
      %v1739 = vand.u32 %v1407, 4294901760
      %v1740 = vsub.f32 %v1407, %v1739
      %v1741 = vand.u32 %v1740, 4294901760
      %v1742 = vsub.f32 %v1740, %v1741
      %v1743 = vand.u32 %v1742, 4294901760
      %1744 = vmatprep.subr.mxu0 %v1743
      %v1745 = vand.u32 %v1406, 4294901760
      %v1746 = vsub.f32 %v1406, %v1745
      %v1747 = vand.u32 %v1746, 4294901760
      %v1748 = vsub.f32 %v1746, %v1747
      %v1749 = vand.u32 %v1748, 4294901760
      %1750 = vmatpush1.msra.mxu0 %v1749
      %v1751 = vand.u32 %v1405, 4294901760
      %v1752 = vsub.f32 %v1405, %v1751
      %v1753 = vand.u32 %v1752, 4294901760
      %v1754 = vsub.f32 %v1752, %v1753
      %v1755 = vand.u32 %v1754, 4294901760
      %1756 = vmatprep.subr.mxu0 %v1755
      %v1757 = vand.u32 %v1404, 4294901760
      %v1758 = vsub.f32 %v1404, %v1757
      %v1759 = vand.u32 %v1758, 4294901760
      %v1760 = vsub.f32 %v1758, %v1759
      %v1761 = vand.u32 %v1760, 4294901760
      %1762 = vmatpush1.msra.mxu0 %v1761
      %v1763 = vand.u32 %v1403, 4294901760
      %v1764 = vsub.f32 %v1403, %v1763
      %v1765 = vand.u32 %v1764, 4294901760
      %v1766 = vsub.f32 %v1764, %v1765
      %v1767 = vand.u32 %v1766, 4294901760
      %1768 = vmatprep.subr.mxu0 %v1767
      %v1769 = vand.u32 %v1402, 4294901760
      %v1770 = vsub.f32 %v1402, %v1769
      %v1771 = vand.u32 %v1770, 4294901760
      %v1772 = vsub.f32 %v1770, %v1771
      %v1773 = vand.u32 %v1772, 4294901760
      %1774 = vmatpush1.msra.mxu0 %v1773
      %v1775 = vand.u32 %v1401, 4294901760
      %v1776 = vsub.f32 %v1401, %v1775
      %v1777 = vand.u32 %v1776, 4294901760
      %v1778 = vsub.f32 %v1776, %v1777
      %v1779 = vand.u32 %v1778, 4294901760
      %1780 = vmatprep.subr.mxu0 %v1779
      %v1781 = vand.u32 %v1400, 4294901760
      %v1782 = vsub.f32 %v1400, %v1781
      %v1783 = vand.u32 %v1782, 4294901760
      %v1784 = vsub.f32 %v1782, %v1783
      %v1785 = vand.u32 %v1784, 4294901760
      %1786 = vmatpush1.msra.mxu0 %v1785
      %v1787 = vand.u32 %v1399, 4294901760
      %v1788 = vsub.f32 %v1399, %v1787
      %v1789 = vand.u32 %v1788, 4294901760
      %v1790 = vsub.f32 %v1788, %v1789
      %v1791 = vand.u32 %v1790, 4294901760
      %1792 = vmatprep.subr.mxu0 %v1791
      %v1793 = vand.u32 %v1398, 4294901760
      %v1794 = vsub.f32 %v1398, %v1793
      %v1795 = vand.u32 %v1794, 4294901760
      %v1796 = vsub.f32 %v1794, %v1795
      %v1797 = vand.u32 %v1796, 4294901760
      %1798 = vmatpush1.msra.mxu0 %v1797
      %v1799 = vand.u32 %v1397, 4294901760
      %v1800 = vsub.f32 %v1397, %v1799
      %v1801 = vand.u32 %v1800, 4294901760
      %v1802 = vsub.f32 %v1800, %v1801
      %v1803 = vand.u32 %v1802, 4294901760
      %1804 = vmatprep.subr.mxu0 %v1803
      %v1805 = vand.u32 %v1396, 4294901760
      %v1806 = vsub.f32 %v1396, %v1805
      %v1807 = vand.u32 %v1806, 4294901760
      %v1808 = vsub.f32 %v1806, %v1807
      %v1809 = vand.u32 %v1808, 4294901760
      %1810 = vmatpush1.msra.mxu0 %v1809
      %v1811 = vand.u32 %v1395, 4294901760
      %v1812 = vsub.f32 %v1395, %v1811
      %v1813 = vand.u32 %v1812, 4294901760
      %v1814 = vsub.f32 %v1812, %v1813
      %v1815 = vand.u32 %v1814, 4294901760
      %1816 = vmatprep.subr.mxu0 %v1815
      %v1817 = vand.u32 %v1394, 4294901760
      %v1818 = vsub.f32 %v1394, %v1817
      %v1819 = vand.u32 %v1818, 4294901760
      %v1820 = vsub.f32 %v1818, %v1819
      %v1821 = vand.u32 %v1820, 4294901760
      %1822 = vmatpush1.msra.mxu0 %v1821
      %v1823 = vand.u32 %v1393, 4294901760
      %v1824 = vsub.f32 %v1393, %v1823
      %v1825 = vand.u32 %v1824, 4294901760
      %v1826 = vsub.f32 %v1824, %v1825
      %v1827 = vand.u32 %v1826, 4294901760
      %1828 = vmatprep.subr.mxu0 %v1827
      %v1829 = vand.u32 %v1392, 4294901760
      %v1830 = vsub.f32 %v1392, %v1829
      %v1831 = vand.u32 %v1830, 4294901760
      %v1832 = vsub.f32 %v1830, %v1831
      %v1833 = vand.u32 %v1832, 4294901760
      %1834 = vmatpush1.msra.mxu0 %v1833
      %v1835 = vand.u32 %v1391, 4294901760
      %v1836 = vsub.f32 %v1391, %v1835
      %v1837 = vand.u32 %v1836, 4294901760
      %v1838 = vsub.f32 %v1836, %v1837
      %v1839 = vand.u32 %v1838, 4294901760
      %1840 = vmatprep.subr.mxu0 %v1839
      %v1841 = vand.u32 %v1390, 4294901760
      %v1842 = vsub.f32 %v1390, %v1841
      %v1843 = vand.u32 %v1842, 4294901760
      %v1844 = vsub.f32 %v1842, %v1843
      %v1845 = vand.u32 %v1844, 4294901760
      %1846 = vmatpush1.msra.mxu0 %v1845
      %v1847 = vand.u32 %v1389, 4294901760
      %v1848 = vsub.f32 %v1389, %v1847
      %v1849 = vand.u32 %v1848, 4294901760
      %v1850 = vsub.f32 %v1848, %v1849
      %v1851 = vand.u32 %v1850, 4294901760
      %1852 = vmatprep.subr.mxu0 %v1851
      %v1853 = vand.u32 %v1388, 4294901760
      %v1854 = vsub.f32 %v1388, %v1853
      %v1855 = vand.u32 %v1854, 4294901760
      %v1856 = vsub.f32 %v1854, %v1855
      %v1857 = vand.u32 %v1856, 4294901760
      %1858 = vmatpush1.msra.mxu0 %v1857
      %v1859 = vand.u32 %v1387, 4294901760
      %v1860 = vsub.f32 %v1387, %v1859
      %v1861 = vand.u32 %v1860, 4294901760
      %v1862 = vsub.f32 %v1860, %v1861
      %v1863 = vand.u32 %v1862, 4294901760
      %1864 = vmatprep.subr.mxu0 %v1863
      %v1865 = vand.u32 %v1386, 4294901760
      %v1866 = vsub.f32 %v1386, %v1865
      %v1867 = vand.u32 %v1866, 4294901760
      %v1868 = vsub.f32 %v1866, %v1867
      %v1869 = vand.u32 %v1868, 4294901760
      %1870 = vmatpush1.msra.mxu0 %v1869
      %v1871 = vand.u32 %v1385, 4294901760
      %v1872 = vsub.f32 %v1385, %v1871
      %v1873 = vand.u32 %v1872, 4294901760
      %v1874 = vsub.f32 %v1872, %v1873
      %v1875 = vand.u32 %v1874, 4294901760
      %1876 = vmatprep.subr.mxu0 %v1875
      %v1877 = vand.u32 %v1384, 4294901760
      %v1878 = vsub.f32 %v1384, %v1877
      %v1879 = vand.u32 %v1878, 4294901760
      %v1880 = vsub.f32 %v1878, %v1879
      %v1881 = vand.u32 %v1880, 4294901760
      %1882 = vmatpush1.msra.mxu0 %v1881
      %v1883 = vand.u32 %v1383, 4294901760
      %v1884 = vsub.f32 %v1383, %v1883
      %v1885 = vand.u32 %v1884, 4294901760
      %v1886 = vsub.f32 %v1884, %v1885
      %v1887 = vand.u32 %v1886, 4294901760
      %1888 = vmatprep.subr.mxu0 %v1887
      %v1889 = vand.u32 %v1382, 4294901760
      %v1890 = vsub.f32 %v1382, %v1889
      %v1891 = vand.u32 %v1890, 4294901760
      %v1892 = vsub.f32 %v1890, %v1891
      %v1893 = vand.u32 %v1892, 4294901760
      %1894 = vmatpush1.msra.mxu0 %v1893
      %v1895 = vand.u32 %v1445, 4294901760
      %v1896 = vsub.f32 %v1445, %v1895
      %v1897 = vand.u32 %v1896, 4294901760
      %v1898 = vsub.f32 %v1896, %v1897
      %v1899 = vand.u32 %v1898, 4294901760
      %1900 = vmatprep.subr.mxu0 %v1899
      %v1901 = vand.u32 %v1444, 4294901760
      %v1902 = vsub.f32 %v1444, %v1901
      %v1903 = vand.u32 %v1902, 4294901760
      %v1904 = vsub.f32 %v1902, %v1903
      %v1905 = vand.u32 %v1904, 4294901760
      %1906 = vmatpush2.msra.mxu0 %v1905
      %v1907 = vand.u32 %v1443, 4294901760
      %v1908 = vsub.f32 %v1443, %v1907
      %v1909 = vand.u32 %v1908, 4294901760
      %v1910 = vsub.f32 %v1908, %v1909
      %v1911 = vand.u32 %v1910, 4294901760
      %1912 = vmatprep.subr.mxu0 %v1911
      %v1913 = vand.u32 %v1442, 4294901760
      %v1914 = vsub.f32 %v1442, %v1913
      %v1915 = vand.u32 %v1914, 4294901760
      %v1916 = vsub.f32 %v1914, %v1915
      %v1917 = vand.u32 %v1916, 4294901760
      %1918 = vmatpush2.msra.mxu0 %v1917
      %v1919 = vand.u32 %v1441, 4294901760
      %v1920 = vsub.f32 %v1441, %v1919
      %v1921 = vand.u32 %v1920, 4294901760
      %v1922 = vsub.f32 %v1920, %v1921
      %v1923 = vand.u32 %v1922, 4294901760
      %1924 = vmatprep.subr.mxu0 %v1923
      %v1925 = vand.u32 %v1440, 4294901760
      %v1926 = vsub.f32 %v1440, %v1925
      %v1927 = vand.u32 %v1926, 4294901760
      %v1928 = vsub.f32 %v1926, %v1927
      %v1929 = vand.u32 %v1928, 4294901760
      %1930 = vmatpush2.msra.mxu0 %v1929
      %v1931 = vand.u32 %v1439, 4294901760
      %v1932 = vsub.f32 %v1439, %v1931
      %v1933 = vand.u32 %v1932, 4294901760
      %v1934 = vsub.f32 %v1932, %v1933
      %v1935 = vand.u32 %v1934, 4294901760
      %1936 = vmatprep.subr.mxu0 %v1935
      %v1937 = vand.u32 %v1438, 4294901760
      %v1938 = vsub.f32 %v1438, %v1937
      %v1939 = vand.u32 %v1938, 4294901760
      %v1940 = vsub.f32 %v1938, %v1939
      %v1941 = vand.u32 %v1940, 4294901760
      %1942 = vmatpush2.msra.mxu0 %v1941
      %v1943 = vand.u32 %v1437, 4294901760
      %v1944 = vsub.f32 %v1437, %v1943
      %v1945 = vand.u32 %v1944, 4294901760
      %v1946 = vsub.f32 %v1944, %v1945
      %v1947 = vand.u32 %v1946, 4294901760
      %1948 = vmatprep.subr.mxu0 %v1947
      %v1949 = vand.u32 %v1436, 4294901760
      %v1950 = vsub.f32 %v1436, %v1949
      %v1951 = vand.u32 %v1950, 4294901760
      %v1952 = vsub.f32 %v1950, %v1951
      %v1953 = vand.u32 %v1952, 4294901760
      %1954 = vmatpush2.msra.mxu0 %v1953
      %v1955 = vand.u32 %v1435, 4294901760
      %v1956 = vsub.f32 %v1435, %v1955
      %v1957 = vand.u32 %v1956, 4294901760
      %v1958 = vsub.f32 %v1956, %v1957
      %v1959 = vand.u32 %v1958, 4294901760
      %1960 = vmatprep.subr.mxu0 %v1959
      %v1961 = vand.u32 %v1434, 4294901760
      %v1962 = vsub.f32 %v1434, %v1961
      %v1963 = vand.u32 %v1962, 4294901760
      %v1964 = vsub.f32 %v1962, %v1963
      %v1965 = vand.u32 %v1964, 4294901760
      %1966 = vmatpush2.msra.mxu0 %v1965
      %v1967 = vand.u32 %v1433, 4294901760
      %v1968 = vsub.f32 %v1433, %v1967
      %v1969 = vand.u32 %v1968, 4294901760
      %v1970 = vsub.f32 %v1968, %v1969
      %v1971 = vand.u32 %v1970, 4294901760
      %1972 = vmatprep.subr.mxu0 %v1971
      %v1973 = vand.u32 %v1432, 4294901760
      %v1974 = vsub.f32 %v1432, %v1973
      %v1975 = vand.u32 %v1974, 4294901760
      %v1976 = vsub.f32 %v1974, %v1975
      %v1977 = vand.u32 %v1976, 4294901760
      %1978 = vmatpush2.msra.mxu0 %v1977
      %v1979 = vand.u32 %v1431, 4294901760
      %v1980 = vsub.f32 %v1431, %v1979
      %v1981 = vand.u32 %v1980, 4294901760
      %v1982 = vsub.f32 %v1980, %v1981
      %v1983 = vand.u32 %v1982, 4294901760
      %1984 = vmatprep.subr.mxu0 %v1983
      %v1985 = vand.u32 %v1430, 4294901760
      %v1986 = vsub.f32 %v1430, %v1985
      %v1987 = vand.u32 %v1986, 4294901760
      %v1988 = vsub.f32 %v1986, %v1987
      %v1989 = vand.u32 %v1988, 4294901760
      %1990 = vmatpush2.msra.mxu0 %v1989
      %v1991 = vand.u32 %v1429, 4294901760
      %v1992 = vsub.f32 %v1429, %v1991
      %v1993 = vand.u32 %v1992, 4294901760
      %v1994 = vsub.f32 %v1992, %v1993
      %v1995 = vand.u32 %v1994, 4294901760
      %1996 = vmatprep.subr.mxu0 %v1995
      %v1997 = vand.u32 %v1428, 4294901760
      %v1998 = vsub.f32 %v1428, %v1997
      %v1999 = vand.u32 %v1998, 4294901760
      %v2000 = vsub.f32 %v1998, %v1999
      %v2001 = vand.u32 %v2000, 4294901760
      %2002 = vmatpush2.msra.mxu0 %v2001
      %v2003 = vand.u32 %v1427, 4294901760
      %v2004 = vsub.f32 %v1427, %v2003
      %v2005 = vand.u32 %v2004, 4294901760
      %v2006 = vsub.f32 %v2004, %v2005
      %v2007 = vand.u32 %v2006, 4294901760
      %2008 = vmatprep.subr.mxu0 %v2007
      %v2009 = vand.u32 %v1426, 4294901760
      %v2010 = vsub.f32 %v1426, %v2009
      %v2011 = vand.u32 %v2010, 4294901760
      %v2012 = vsub.f32 %v2010, %v2011
      %v2013 = vand.u32 %v2012, 4294901760
      %2014 = vmatpush2.msra.mxu0 %v2013
      %v2015 = vand.u32 %v1425, 4294901760
      %v2016 = vsub.f32 %v1425, %v2015
      %v2017 = vand.u32 %v2016, 4294901760
      %v2018 = vsub.f32 %v2016, %v2017
      %v2019 = vand.u32 %v2018, 4294901760
      %2020 = vmatprep.subr.mxu0 %v2019
      %v2021 = vand.u32 %v1424, 4294901760
      %v2022 = vsub.f32 %v1424, %v2021
      %v2023 = vand.u32 %v2022, 4294901760
      %v2024 = vsub.f32 %v2022, %v2023
      %v2025 = vand.u32 %v2024, 4294901760
      %2026 = vmatpush2.msra.mxu0 %v2025
      %v2027 = vand.u32 %v1423, 4294901760
      %v2028 = vsub.f32 %v1423, %v2027
      %v2029 = vand.u32 %v2028, 4294901760
      %v2030 = vsub.f32 %v2028, %v2029
      %v2031 = vand.u32 %v2030, 4294901760
      %2032 = vmatprep.subr.mxu0 %v2031
      %v2033 = vand.u32 %v1422, 4294901760
      %v2034 = vsub.f32 %v1422, %v2033
      %v2035 = vand.u32 %v2034, 4294901760
      %v2036 = vsub.f32 %v2034, %v2035
      %v2037 = vand.u32 %v2036, 4294901760
      %2038 = vmatpush2.msra.mxu0 %v2037
      %v2039 = vand.u32 %v1421, 4294901760
      %v2040 = vsub.f32 %v1421, %v2039
      %v2041 = vand.u32 %v2040, 4294901760
      %v2042 = vsub.f32 %v2040, %v2041
      %v2043 = vand.u32 %v2042, 4294901760
      %2044 = vmatprep.subr.mxu0 %v2043
      %v2045 = vand.u32 %v1420, 4294901760
      %v2046 = vsub.f32 %v1420, %v2045
      %v2047 = vand.u32 %v2046, 4294901760
      %v2048 = vsub.f32 %v2046, %v2047
      %v2049 = vand.u32 %v2048, 4294901760
      %2050 = vmatpush2.msra.mxu0 %v2049
      %v2051 = vand.u32 %v1419, 4294901760
      %v2052 = vsub.f32 %v1419, %v2051
      %v2053 = vand.u32 %v2052, 4294901760
      %v2054 = vsub.f32 %v2052, %v2053
      %v2055 = vand.u32 %v2054, 4294901760
      %2056 = vmatprep.subr.mxu0 %v2055
      %v2057 = vand.u32 %v1418, 4294901760
      %v2058 = vsub.f32 %v1418, %v2057
      %v2059 = vand.u32 %v2058, 4294901760
      %v2060 = vsub.f32 %v2058, %v2059
      %v2061 = vand.u32 %v2060, 4294901760
      %2062 = vmatpush2.msra.mxu0 %v2061
      %v2063 = vand.u32 %v1417, 4294901760
      %v2064 = vsub.f32 %v1417, %v2063
      %v2065 = vand.u32 %v2064, 4294901760
      %v2066 = vsub.f32 %v2064, %v2065
      %v2067 = vand.u32 %v2066, 4294901760
      %2068 = vmatprep.subr.mxu0 %v2067
      %v2069 = vand.u32 %v1416, 4294901760
      %v2070 = vsub.f32 %v1416, %v2069
      %v2071 = vand.u32 %v2070, 4294901760
      %v2072 = vsub.f32 %v2070, %v2071
      %v2073 = vand.u32 %v2072, 4294901760
      %2074 = vmatpush2.msra.mxu0 %v2073
      %v2075 = vand.u32 %v1415, 4294901760
      %v2076 = vsub.f32 %v1415, %v2075
      %v2077 = vand.u32 %v2076, 4294901760
      %v2078 = vsub.f32 %v2076, %v2077
      %v2079 = vand.u32 %v2078, 4294901760
      %2080 = vmatprep.subr.mxu0 %v2079
      %v2081 = vand.u32 %v1414, 4294901760
      %v2082 = vsub.f32 %v1414, %v2081
      %v2083 = vand.u32 %v2082, 4294901760
      %v2084 = vsub.f32 %v2082, %v2083
      %v2085 = vand.u32 %v2084, 4294901760
      %2086 = vmatpush2.msra.mxu0 %v2085
      %v2087 = vand.u32 %v1331, 4294901760
      %2088 = vmatprep.mubr.f32.mxu0 %v2087
      %v2089 = vand.u32 %v1329, 4294901760
      %2090 = vmatmul.mubr.f32.gmra.mxu0 %v2089
      %v2091 = vpop.f32.mrf.mxu0
      %v2092 = vadd.f32 %v1587, %v2091
      %v2093 = vpop.f32.mrf.mxu0
      %v2094 = vadd.f32 %v1589, %v2093
      %v2095 = vand.u32 %v1338, 4294901760
      %2096 = vmatprep.mubr.f32.mxu0 %v2095
      %v2097 = vand.u32 %v1336, 4294901760
      %2098 = vmatmul.mubr.f32.gmra.mxu0 %v2097
      %v2099 = vpop.f32.mrf.mxu0
      %v2100 = vadd.f32 %v1603, %v2099
      %v2101 = vpop.f32.mrf.mxu0
      %v2102 = vadd.f32 %v1605, %v2101
      %v2103 = vand.u32 %v1345, 4294901760
      %2104 = vmatprep.mubr.f32.mxu0 %v2103
      %v2105 = vand.u32 %v1343, 4294901760
      %2106 = vmatmul.mubr.f32.gmra.mxu0 %v2105
      %v2107 = vpop.f32.mrf.mxu0
      %v2108 = vadd.f32 %v1619, %v2107
      %v2109 = vpop.f32.mrf.mxu0
      %v2110 = vadd.f32 %v1621, %v2109
      %v2111 = vand.u32 %v1352, 4294901760
      %2112 = vmatprep.mubr.f32.mxu0 %v2111
      %v2113 = vand.u32 %v1350, 4294901760
      %2114 = vmatmul.mubr.f32.gmra.mxu0 %v2113
      %v2115 = vpop.f32.mrf.mxu0
      %v2116 = vadd.f32 %v1635, %v2115
      %v2117 = vpop.f32.mrf.mxu0
      %v2118 = vadd.f32 %v1637, %v2117
      %v2119 = vand.u32 %v1359, 4294901760
      %2120 = vmatprep.mubr.f32.mxu0 %v2119
      %v2121 = vand.u32 %v1357, 4294901760
      %2122 = vmatmul.mubr.f32.gmra.mxu0 %v2121
      %v2123 = vpop.f32.mrf.mxu0
      %v2124 = vadd.f32 %v1651, %v2123
      %v2125 = vpop.f32.mrf.mxu0
      %v2126 = vadd.f32 %v1653, %v2125
      %v2127 = vand.u32 %v1366, 4294901760
      %2128 = vmatprep.mubr.f32.mxu0 %v2127
      %v2129 = vand.u32 %v1364, 4294901760
      %2130 = vmatmul.mubr.f32.gmra.mxu0 %v2129
      %v2131 = vpop.f32.mrf.mxu0
      %v2132 = vadd.f32 %v1667, %v2131
      %v2133 = vpop.f32.mrf.mxu0
      %v2134 = vadd.f32 %v1669, %v2133
      %v2135 = vand.u32 %v1373, 4294901760
      %2136 = vmatprep.mubr.f32.mxu0 %v2135
      %v2137 = vand.u32 %v1371, 4294901760
      %2138 = vmatmul.mubr.f32.gmra.mxu0 %v2137
      %v2139 = vpop.f32.mrf.mxu0
      %v2140 = vadd.f32 %v1683, %v2139
      %v2141 = vpop.f32.mrf.mxu0
      %v2142 = vadd.f32 %v1685, %v2141
      %v2143 = vand.u32 %v1380, 4294901760
      %2144 = vmatprep.mubr.f32.mxu0 %v2143
      %v2145 = vand.u32 %v1378, 4294901760
      %2146 = vmatmul.mubr.f32.gmra.mxu0 %v2145
      %v2147 = vpop.f32.mrf.mxu0
      %v2148 = vadd.f32 %v1699, %v2147
      %v2149 = vpop.f32.mrf.mxu0
      %v2150 = vadd.f32 %v1701, %v2149
      %2151 = vdwg.mxu0
      %v2152 = vand.u32 %v1413, 4294901760
      %v2153 = vsub.f32 %v1413, %v2152
      %2154 = vmatprep.subr.mxu0 %v2153
      %v2155 = vand.u32 %v1412, 4294901760
      %v2156 = vsub.f32 %v1412, %v2155
      %2157 = vmatpush1.msra.mxu0 %v2156
      %v2158 = vand.u32 %v1411, 4294901760
      %v2159 = vsub.f32 %v1411, %v2158
      %2160 = vmatprep.subr.mxu0 %v2159
      %v2161 = vand.u32 %v1410, 4294901760
      %v2162 = vsub.f32 %v1410, %v2161
      %2163 = vmatpush1.msra.mxu0 %v2162
      %v2164 = vand.u32 %v1409, 4294901760
      %v2165 = vsub.f32 %v1409, %v2164
      %2166 = vmatprep.subr.mxu0 %v2165
      %v2167 = vand.u32 %v1408, 4294901760
      %v2168 = vsub.f32 %v1408, %v2167
      %2169 = vmatpush1.msra.mxu0 %v2168
      %v2170 = vand.u32 %v1407, 4294901760
      %v2171 = vsub.f32 %v1407, %v2170
      %2172 = vmatprep.subr.mxu0 %v2171
      %v2173 = vand.u32 %v1406, 4294901760
      %v2174 = vsub.f32 %v1406, %v2173
      %2175 = vmatpush1.msra.mxu0 %v2174
      %v2176 = vand.u32 %v1405, 4294901760
      %v2177 = vsub.f32 %v1405, %v2176
      %2178 = vmatprep.subr.mxu0 %v2177
      %v2179 = vand.u32 %v1404, 4294901760
      %v2180 = vsub.f32 %v1404, %v2179
      %2181 = vmatpush1.msra.mxu0 %v2180
      %v2182 = vand.u32 %v1403, 4294901760
      %v2183 = vsub.f32 %v1403, %v2182
      %2184 = vmatprep.subr.mxu0 %v2183
      %v2185 = vand.u32 %v1402, 4294901760
      %v2186 = vsub.f32 %v1402, %v2185
      %2187 = vmatpush1.msra.mxu0 %v2186
      %v2188 = vand.u32 %v1401, 4294901760
      %v2189 = vsub.f32 %v1401, %v2188
      %2190 = vmatprep.subr.mxu0 %v2189
      %v2191 = vand.u32 %v1400, 4294901760
      %v2192 = vsub.f32 %v1400, %v2191
      %2193 = vmatpush1.msra.mxu0 %v2192
      %v2194 = vand.u32 %v1399, 4294901760
      %v2195 = vsub.f32 %v1399, %v2194
      %2196 = vmatprep.subr.mxu0 %v2195
      %v2197 = vand.u32 %v1398, 4294901760
      %v2198 = vsub.f32 %v1398, %v2197
      %2199 = vmatpush1.msra.mxu0 %v2198
      %v2200 = vand.u32 %v1397, 4294901760
      %v2201 = vsub.f32 %v1397, %v2200
      %2202 = vmatprep.subr.mxu0 %v2201
      %v2203 = vand.u32 %v1396, 4294901760
      %v2204 = vsub.f32 %v1396, %v2203
      %2205 = vmatpush1.msra.mxu0 %v2204
      %v2206 = vand.u32 %v1395, 4294901760
      %v2207 = vsub.f32 %v1395, %v2206
      %2208 = vmatprep.subr.mxu0 %v2207
      %v2209 = vand.u32 %v1394, 4294901760
      %v2210 = vsub.f32 %v1394, %v2209
      %2211 = vmatpush1.msra.mxu0 %v2210
      %v2212 = vand.u32 %v1393, 4294901760
      %v2213 = vsub.f32 %v1393, %v2212
      %2214 = vmatprep.subr.mxu0 %v2213
      %v2215 = vand.u32 %v1392, 4294901760
      %v2216 = vsub.f32 %v1392, %v2215
      %2217 = vmatpush1.msra.mxu0 %v2216
      %v2218 = vand.u32 %v1391, 4294901760
      %v2219 = vsub.f32 %v1391, %v2218
      %2220 = vmatprep.subr.mxu0 %v2219
      %v2221 = vand.u32 %v1390, 4294901760
      %v2222 = vsub.f32 %v1390, %v2221
      %2223 = vmatpush1.msra.mxu0 %v2222
      %v2224 = vand.u32 %v1389, 4294901760
      %v2225 = vsub.f32 %v1389, %v2224
      %2226 = vmatprep.subr.mxu0 %v2225
      %v2227 = vand.u32 %v1388, 4294901760
      %v2228 = vsub.f32 %v1388, %v2227
      %2229 = vmatpush1.msra.mxu0 %v2228
      %v2230 = vand.u32 %v1387, 4294901760
      %v2231 = vsub.f32 %v1387, %v2230
      %2232 = vmatprep.subr.mxu0 %v2231
      %v2233 = vand.u32 %v1386, 4294901760
      %v2234 = vsub.f32 %v1386, %v2233
      %2235 = vmatpush1.msra.mxu0 %v2234
      %v2236 = vand.u32 %v1385, 4294901760
      %v2237 = vsub.f32 %v1385, %v2236
      %2238 = vmatprep.subr.mxu0 %v2237
      %v2239 = vand.u32 %v1384, 4294901760
      %v2240 = vsub.f32 %v1384, %v2239
      %2241 = vmatpush1.msra.mxu0 %v2240
      %v2242 = vand.u32 %v1383, 4294901760
      %v2243 = vsub.f32 %v1383, %v2242
      %2244 = vmatprep.subr.mxu0 %v2243
      %v2245 = vand.u32 %v1382, 4294901760
      %v2246 = vsub.f32 %v1382, %v2245
      %2247 = vmatpush1.msra.mxu0 %v2246
      %v2248 = vand.u32 %v1445, 4294901760
      %v2249 = vsub.f32 %v1445, %v2248
      %2250 = vmatprep.subr.mxu0 %v2249
      %v2251 = vand.u32 %v1444, 4294901760
      %v2252 = vsub.f32 %v1444, %v2251
      %2253 = vmatpush2.msra.mxu0 %v2252
      %v2254 = vand.u32 %v1443, 4294901760
      %v2255 = vsub.f32 %v1443, %v2254
      %2256 = vmatprep.subr.mxu0 %v2255
      %v2257 = vand.u32 %v1442, 4294901760
      %v2258 = vsub.f32 %v1442, %v2257
      %2259 = vmatpush2.msra.mxu0 %v2258
      %v2260 = vand.u32 %v1441, 4294901760
      %v2261 = vsub.f32 %v1441, %v2260
      %2262 = vmatprep.subr.mxu0 %v2261
      %v2263 = vand.u32 %v1440, 4294901760
      %v2264 = vsub.f32 %v1440, %v2263
      %2265 = vmatpush2.msra.mxu0 %v2264
      %v2266 = vand.u32 %v1439, 4294901760
      %v2267 = vsub.f32 %v1439, %v2266
      %2268 = vmatprep.subr.mxu0 %v2267
      %v2269 = vand.u32 %v1438, 4294901760
      %v2270 = vsub.f32 %v1438, %v2269
      %2271 = vmatpush2.msra.mxu0 %v2270
      %v2272 = vand.u32 %v1437, 4294901760
      %v2273 = vsub.f32 %v1437, %v2272
      %2274 = vmatprep.subr.mxu0 %v2273
      %v2275 = vand.u32 %v1436, 4294901760
      %v2276 = vsub.f32 %v1436, %v2275
      %2277 = vmatpush2.msra.mxu0 %v2276
      %v2278 = vand.u32 %v1435, 4294901760
      %v2279 = vsub.f32 %v1435, %v2278
      %2280 = vmatprep.subr.mxu0 %v2279
      %v2281 = vand.u32 %v1434, 4294901760
      %v2282 = vsub.f32 %v1434, %v2281
      %2283 = vmatpush2.msra.mxu0 %v2282
      %v2284 = vand.u32 %v1433, 4294901760
      %v2285 = vsub.f32 %v1433, %v2284
      %2286 = vmatprep.subr.mxu0 %v2285
      %v2287 = vand.u32 %v1432, 4294901760
      %v2288 = vsub.f32 %v1432, %v2287
      %2289 = vmatpush2.msra.mxu0 %v2288
      %v2290 = vand.u32 %v1431, 4294901760
      %v2291 = vsub.f32 %v1431, %v2290
      %2292 = vmatprep.subr.mxu0 %v2291
      %v2293 = vand.u32 %v1430, 4294901760
      %v2294 = vsub.f32 %v1430, %v2293
      %2295 = vmatpush2.msra.mxu0 %v2294
      %v2296 = vand.u32 %v1429, 4294901760
      %v2297 = vsub.f32 %v1429, %v2296
      %2298 = vmatprep.subr.mxu0 %v2297
      %v2299 = vand.u32 %v1428, 4294901760
      %v2300 = vsub.f32 %v1428, %v2299
      %2301 = vmatpush2.msra.mxu0 %v2300
      %v2302 = vand.u32 %v1427, 4294901760
      %v2303 = vsub.f32 %v1427, %v2302
      %2304 = vmatprep.subr.mxu0 %v2303
      %v2305 = vand.u32 %v1426, 4294901760
      %v2306 = vsub.f32 %v1426, %v2305
      %2307 = vmatpush2.msra.mxu0 %v2306
      %v2308 = vand.u32 %v1425, 4294901760
      %v2309 = vsub.f32 %v1425, %v2308
      %2310 = vmatprep.subr.mxu0 %v2309
      %v2311 = vand.u32 %v1424, 4294901760
      %v2312 = vsub.f32 %v1424, %v2311
      %2313 = vmatpush2.msra.mxu0 %v2312
      %v2314 = vand.u32 %v1423, 4294901760
      %v2315 = vsub.f32 %v1423, %v2314
      %2316 = vmatprep.subr.mxu0 %v2315
      %v2317 = vand.u32 %v1422, 4294901760
      %v2318 = vsub.f32 %v1422, %v2317
      %2319 = vmatpush2.msra.mxu0 %v2318
      %v2320 = vand.u32 %v1421, 4294901760
      %v2321 = vsub.f32 %v1421, %v2320
      %2322 = vmatprep.subr.mxu0 %v2321
      %v2323 = vand.u32 %v1420, 4294901760
      %v2324 = vsub.f32 %v1420, %v2323
      %2325 = vmatpush2.msra.mxu0 %v2324
      %v2326 = vand.u32 %v1419, 4294901760
      %v2327 = vsub.f32 %v1419, %v2326
      %2328 = vmatprep.subr.mxu0 %v2327
      %v2329 = vand.u32 %v1418, 4294901760
      %v2330 = vsub.f32 %v1418, %v2329
      %2331 = vmatpush2.msra.mxu0 %v2330
      %v2332 = vand.u32 %v1417, 4294901760
      %v2333 = vsub.f32 %v1417, %v2332
      %2334 = vmatprep.subr.mxu0 %v2333
      %v2335 = vand.u32 %v1416, 4294901760
      %v2336 = vsub.f32 %v1416, %v2335
      %2337 = vmatpush2.msra.mxu0 %v2336
      %v2338 = vand.u32 %v1415, 4294901760
      %v2339 = vsub.f32 %v1415, %v2338
      %2340 = vmatprep.subr.mxu0 %v2339
      %v2341 = vand.u32 %v1414, 4294901760
      %v2342 = vsub.f32 %v1414, %v2341
      %2343 = vmatpush2.msra.mxu0 %v2342
      %v2344 = vand.u32 %v1331, 4294901760
      %v2345 = vsub.f32 %v1331, %v2344
      %2346 = vmatprep.mubr.f32.mxu0 %v2345
      %v2347 = vand.u32 %v1329, 4294901760
      %v2348 = vsub.f32 %v1329, %v2347
      %2349 = vmatmul.mubr.f32.gmra.mxu0 %v2348
      %v2350 = vpop.f32.mrf.mxu0
      %v2351 = vadd.f32 %v2092, %v2350
      %v2352 = vpop.f32.mrf.mxu0
      %v2353 = vadd.f32 %v2094, %v2352
      %v2354 = vand.u32 %v1338, 4294901760
      %v2355 = vsub.f32 %v1338, %v2354
      %2356 = vmatprep.mubr.f32.mxu0 %v2355
      %v2357 = vand.u32 %v1336, 4294901760
      %v2358 = vsub.f32 %v1336, %v2357
      %2359 = vmatmul.mubr.f32.gmra.mxu0 %v2358
      %v2360 = vpop.f32.mrf.mxu0
      %v2361 = vadd.f32 %v2100, %v2360
      %v2362 = vpop.f32.mrf.mxu0
      %v2363 = vadd.f32 %v2102, %v2362
      %v2364 = vand.u32 %v1345, 4294901760
      %v2365 = vsub.f32 %v1345, %v2364
      %2366 = vmatprep.mubr.f32.mxu0 %v2365
      %v2367 = vand.u32 %v1343, 4294901760
      %v2368 = vsub.f32 %v1343, %v2367
      %2369 = vmatmul.mubr.f32.gmra.mxu0 %v2368
      %v2370 = vpop.f32.mrf.mxu0
      %v2371 = vadd.f32 %v2108, %v2370
      %v2372 = vpop.f32.mrf.mxu0
      %v2373 = vadd.f32 %v2110, %v2372
      %v2374 = vand.u32 %v1352, 4294901760
      %v2375 = vsub.f32 %v1352, %v2374
      %2376 = vmatprep.mubr.f32.mxu0 %v2375
      %v2377 = vand.u32 %v1350, 4294901760
      %v2378 = vsub.f32 %v1350, %v2377
      %2379 = vmatmul.mubr.f32.gmra.mxu0 %v2378
      %v2380 = vpop.f32.mrf.mxu0
      %v2381 = vadd.f32 %v2116, %v2380
      %v2382 = vpop.f32.mrf.mxu0
      %v2383 = vadd.f32 %v2118, %v2382
      %v2384 = vand.u32 %v1359, 4294901760
      %v2385 = vsub.f32 %v1359, %v2384
      %2386 = vmatprep.mubr.f32.mxu0 %v2385
      %v2387 = vand.u32 %v1357, 4294901760
      %v2388 = vsub.f32 %v1357, %v2387
      %2389 = vmatmul.mubr.f32.gmra.mxu0 %v2388
      %v2390 = vpop.f32.mrf.mxu0
      %v2391 = vadd.f32 %v2124, %v2390
      %v2392 = vpop.f32.mrf.mxu0
      %v2393 = vadd.f32 %v2126, %v2392
      %v2394 = vand.u32 %v1366, 4294901760
      %v2395 = vsub.f32 %v1366, %v2394
      %2396 = vmatprep.mubr.f32.mxu0 %v2395
      %v2397 = vand.u32 %v1364, 4294901760
      %v2398 = vsub.f32 %v1364, %v2397
      %2399 = vmatmul.mubr.f32.gmra.mxu0 %v2398
      %v2400 = vpop.f32.mrf.mxu0
      %v2401 = vadd.f32 %v2132, %v2400
      %v2402 = vpop.f32.mrf.mxu0
      %v2403 = vadd.f32 %v2134, %v2402
      %v2404 = vand.u32 %v1373, 4294901760
      %v2405 = vsub.f32 %v1373, %v2404
      %2406 = vmatprep.mubr.f32.mxu0 %v2405
      %v2407 = vand.u32 %v1371, 4294901760
      %v2408 = vsub.f32 %v1371, %v2407
      %2409 = vmatmul.mubr.f32.gmra.mxu0 %v2408
      %v2410 = vpop.f32.mrf.mxu0
      %v2411 = vadd.f32 %v2140, %v2410
      %v2412 = vpop.f32.mrf.mxu0
      %v2413 = vadd.f32 %v2142, %v2412
      %v2414 = vand.u32 %v1380, 4294901760
      %v2415 = vsub.f32 %v1380, %v2414
      %2416 = vmatprep.mubr.f32.mxu0 %v2415
      %v2417 = vand.u32 %v1378, 4294901760
      %v2418 = vsub.f32 %v1378, %v2417
      %2419 = vmatmul.mubr.f32.gmra.mxu0 %v2418
      %v2420 = vpop.f32.mrf.mxu0
      %v2421 = vadd.f32 %v2148, %v2420
      %v2422 = vpop.f32.mrf.mxu0
      %v2423 = vadd.f32 %v2150, %v2422
      %2424 = vdwg.mxu0
      %v2425 = vand.u32 %v1413, 4294901760
      %2426 = vmatprep.subr.mxu0 %v2425
      %v2427 = vand.u32 %v1412, 4294901760
      %2428 = vmatpush1.msra.mxu0 %v2427
      %v2429 = vand.u32 %v1411, 4294901760
      %2430 = vmatprep.subr.mxu0 %v2429
      %v2431 = vand.u32 %v1410, 4294901760
      %2432 = vmatpush1.msra.mxu0 %v2431
      %v2433 = vand.u32 %v1409, 4294901760
      %2434 = vmatprep.subr.mxu0 %v2433
      %v2435 = vand.u32 %v1408, 4294901760
      %2436 = vmatpush1.msra.mxu0 %v2435
      %v2437 = vand.u32 %v1407, 4294901760
      %2438 = vmatprep.subr.mxu0 %v2437
      %v2439 = vand.u32 %v1406, 4294901760
      %2440 = vmatpush1.msra.mxu0 %v2439
      %v2441 = vand.u32 %v1405, 4294901760
      %2442 = vmatprep.subr.mxu0 %v2441
      %v2443 = vand.u32 %v1404, 4294901760
      %2444 = vmatpush1.msra.mxu0 %v2443
      %v2445 = vand.u32 %v1403, 4294901760
      %2446 = vmatprep.subr.mxu0 %v2445
      %v2447 = vand.u32 %v1402, 4294901760
      %2448 = vmatpush1.msra.mxu0 %v2447
      %v2449 = vand.u32 %v1401, 4294901760
      %2450 = vmatprep.subr.mxu0 %v2449
      %v2451 = vand.u32 %v1400, 4294901760
      %2452 = vmatpush1.msra.mxu0 %v2451
      %v2453 = vand.u32 %v1399, 4294901760
      %2454 = vmatprep.subr.mxu0 %v2453
      %v2455 = vand.u32 %v1398, 4294901760
      %2456 = vmatpush1.msra.mxu0 %v2455
      %v2457 = vand.u32 %v1397, 4294901760
      %2458 = vmatprep.subr.mxu0 %v2457
      %v2459 = vand.u32 %v1396, 4294901760
      %2460 = vmatpush1.msra.mxu0 %v2459
      %v2461 = vand.u32 %v1395, 4294901760
      %2462 = vmatprep.subr.mxu0 %v2461
      %v2463 = vand.u32 %v1394, 4294901760
      %2464 = vmatpush1.msra.mxu0 %v2463
      %v2465 = vand.u32 %v1393, 4294901760
      %2466 = vmatprep.subr.mxu0 %v2465
      %v2467 = vand.u32 %v1392, 4294901760
      %2468 = vmatpush1.msra.mxu0 %v2467
      %v2469 = vand.u32 %v1391, 4294901760
      %2470 = vmatprep.subr.mxu0 %v2469
      %v2471 = vand.u32 %v1390, 4294901760
      %2472 = vmatpush1.msra.mxu0 %v2471
      %v2473 = vand.u32 %v1389, 4294901760
      %2474 = vmatprep.subr.mxu0 %v2473
      %v2475 = vand.u32 %v1388, 4294901760
      %2476 = vmatpush1.msra.mxu0 %v2475
      %v2477 = vand.u32 %v1387, 4294901760
      %2478 = vmatprep.subr.mxu0 %v2477
      %v2479 = vand.u32 %v1386, 4294901760
      %2480 = vmatpush1.msra.mxu0 %v2479
      %v2481 = vand.u32 %v1385, 4294901760
      %2482 = vmatprep.subr.mxu0 %v2481
      %v2483 = vand.u32 %v1384, 4294901760
      %2484 = vmatpush1.msra.mxu0 %v2483
      %v2485 = vand.u32 %v1383, 4294901760
      %2486 = vmatprep.subr.mxu0 %v2485
      %v2487 = vand.u32 %v1382, 4294901760
      %2488 = vmatpush1.msra.mxu0 %v2487
      %v2489 = vand.u32 %v1445, 4294901760
      %2490 = vmatprep.subr.mxu0 %v2489
      %v2491 = vand.u32 %v1444, 4294901760
      %2492 = vmatpush2.msra.mxu0 %v2491
      %v2493 = vand.u32 %v1443, 4294901760
      %2494 = vmatprep.subr.mxu0 %v2493
      %v2495 = vand.u32 %v1442, 4294901760
      %2496 = vmatpush2.msra.mxu0 %v2495
      %v2497 = vand.u32 %v1441, 4294901760
      %2498 = vmatprep.subr.mxu0 %v2497
      %v2499 = vand.u32 %v1440, 4294901760
      %2500 = vmatpush2.msra.mxu0 %v2499
      %v2501 = vand.u32 %v1439, 4294901760
      %2502 = vmatprep.subr.mxu0 %v2501
      %v2503 = vand.u32 %v1438, 4294901760
      %2504 = vmatpush2.msra.mxu0 %v2503
      %v2505 = vand.u32 %v1437, 4294901760
      %2506 = vmatprep.subr.mxu0 %v2505
      %v2507 = vand.u32 %v1436, 4294901760
      %2508 = vmatpush2.msra.mxu0 %v2507
      %v2509 = vand.u32 %v1435, 4294901760
      %2510 = vmatprep.subr.mxu0 %v2509
      %v2511 = vand.u32 %v1434, 4294901760
      %2512 = vmatpush2.msra.mxu0 %v2511
      %v2513 = vand.u32 %v1433, 4294901760
      %2514 = vmatprep.subr.mxu0 %v2513
      %v2515 = vand.u32 %v1432, 4294901760
      %2516 = vmatpush2.msra.mxu0 %v2515
      %v2517 = vand.u32 %v1431, 4294901760
      %2518 = vmatprep.subr.mxu0 %v2517
      %v2519 = vand.u32 %v1430, 4294901760
      %2520 = vmatpush2.msra.mxu0 %v2519
      %v2521 = vand.u32 %v1429, 4294901760
      %2522 = vmatprep.subr.mxu0 %v2521
      %v2523 = vand.u32 %v1428, 4294901760
      %2524 = vmatpush2.msra.mxu0 %v2523
      %v2525 = vand.u32 %v1427, 4294901760
      %2526 = vmatprep.subr.mxu0 %v2525
      %v2527 = vand.u32 %v1426, 4294901760
      %2528 = vmatpush2.msra.mxu0 %v2527
      %v2529 = vand.u32 %v1425, 4294901760
      %2530 = vmatprep.subr.mxu0 %v2529
      %v2531 = vand.u32 %v1424, 4294901760
      %2532 = vmatpush2.msra.mxu0 %v2531
      %v2533 = vand.u32 %v1423, 4294901760
      %2534 = vmatprep.subr.mxu0 %v2533
      %v2535 = vand.u32 %v1422, 4294901760
      %2536 = vmatpush2.msra.mxu0 %v2535
      %v2537 = vand.u32 %v1421, 4294901760
      %2538 = vmatprep.subr.mxu0 %v2537
      %v2539 = vand.u32 %v1420, 4294901760
      %2540 = vmatpush2.msra.mxu0 %v2539
      %v2541 = vand.u32 %v1419, 4294901760
      %2542 = vmatprep.subr.mxu0 %v2541
      %v2543 = vand.u32 %v1418, 4294901760
      %2544 = vmatpush2.msra.mxu0 %v2543
      %v2545 = vand.u32 %v1417, 4294901760
      %2546 = vmatprep.subr.mxu0 %v2545
      %v2547 = vand.u32 %v1416, 4294901760
      %2548 = vmatpush2.msra.mxu0 %v2547
      %v2549 = vand.u32 %v1415, 4294901760
      %2550 = vmatprep.subr.mxu0 %v2549
      %v2551 = vand.u32 %v1414, 4294901760
      %2552 = vmatpush2.msra.mxu0 %v2551
      %v2553 = vand.u32 %v1331, 4294901760
      %v2554 = vsub.f32 %v1331, %v2553
      %v2555 = vand.u32 %v2554, 4294901760
      %2556 = vmatprep.mubr.f32.mxu0 %v2555
      %v2557 = vand.u32 %v1329, 4294901760
      %v2558 = vsub.f32 %v1329, %v2557
      %v2559 = vand.u32 %v2558, 4294901760
      %2560 = vmatmul.mubr.f32.gmra.mxu0 %v2559
      %v2561 = vpop.f32.mrf.mxu0
      %v2562 = vadd.f32 %v2351, %v2561
      %v2563 = vpop.f32.mrf.mxu0
      %v2564 = vadd.f32 %v2353, %v2563
      %v2565 = vand.u32 %v1338, 4294901760
      %v2566 = vsub.f32 %v1338, %v2565
      %v2567 = vand.u32 %v2566, 4294901760
      %2568 = vmatprep.mubr.f32.mxu0 %v2567
      %v2569 = vand.u32 %v1336, 4294901760
      %v2570 = vsub.f32 %v1336, %v2569
      %v2571 = vand.u32 %v2570, 4294901760
      %2572 = vmatmul.mubr.f32.gmra.mxu0 %v2571
      %v2573 = vpop.f32.mrf.mxu0
      %v2574 = vadd.f32 %v2361, %v2573
      %v2575 = vpop.f32.mrf.mxu0
      %v2576 = vadd.f32 %v2363, %v2575
      %v2577 = vand.u32 %v1345, 4294901760
      %v2578 = vsub.f32 %v1345, %v2577
      %v2579 = vand.u32 %v2578, 4294901760
      %2580 = vmatprep.mubr.f32.mxu0 %v2579
      %v2581 = vand.u32 %v1343, 4294901760
      %v2582 = vsub.f32 %v1343, %v2581
      %v2583 = vand.u32 %v2582, 4294901760
      %2584 = vmatmul.mubr.f32.gmra.mxu0 %v2583
      %v2585 = vpop.f32.mrf.mxu0
      %v2586 = vadd.f32 %v2371, %v2585
      %v2587 = vpop.f32.mrf.mxu0
      %v2588 = vadd.f32 %v2373, %v2587
      %v2589 = vand.u32 %v1352, 4294901760
      %v2590 = vsub.f32 %v1352, %v2589
      %v2591 = vand.u32 %v2590, 4294901760
      %2592 = vmatprep.mubr.f32.mxu0 %v2591
      %v2593 = vand.u32 %v1350, 4294901760
      %v2594 = vsub.f32 %v1350, %v2593
      %v2595 = vand.u32 %v2594, 4294901760
      %2596 = vmatmul.mubr.f32.gmra.mxu0 %v2595
      %v2597 = vpop.f32.mrf.mxu0
      %v2598 = vadd.f32 %v2381, %v2597
      %v2599 = vpop.f32.mrf.mxu0
      %v2600 = vadd.f32 %v2383, %v2599
      %v2601 = vand.u32 %v1359, 4294901760
      %v2602 = vsub.f32 %v1359, %v2601
      %v2603 = vand.u32 %v2602, 4294901760
      %2604 = vmatprep.mubr.f32.mxu0 %v2603
      %v2605 = vand.u32 %v1357, 4294901760
      %v2606 = vsub.f32 %v1357, %v2605
      %v2607 = vand.u32 %v2606, 4294901760
      %2608 = vmatmul.mubr.f32.gmra.mxu0 %v2607
      %v2609 = vpop.f32.mrf.mxu0
      %v2610 = vadd.f32 %v2391, %v2609
      %v2611 = vpop.f32.mrf.mxu0
      %v2612 = vadd.f32 %v2393, %v2611
      %v2613 = vand.u32 %v1366, 4294901760
      %v2614 = vsub.f32 %v1366, %v2613
      %v2615 = vand.u32 %v2614, 4294901760
      %2616 = vmatprep.mubr.f32.mxu0 %v2615
      %v2617 = vand.u32 %v1364, 4294901760
      %v2618 = vsub.f32 %v1364, %v2617
      %v2619 = vand.u32 %v2618, 4294901760
      %2620 = vmatmul.mubr.f32.gmra.mxu0 %v2619
      %v2621 = vpop.f32.mrf.mxu0
      %v2622 = vadd.f32 %v2401, %v2621
      %v2623 = vpop.f32.mrf.mxu0
      %v2624 = vadd.f32 %v2403, %v2623
      %v2625 = vand.u32 %v1373, 4294901760
      %v2626 = vsub.f32 %v1373, %v2625
      %v2627 = vand.u32 %v2626, 4294901760
      %2628 = vmatprep.mubr.f32.mxu0 %v2627
      %v2629 = vand.u32 %v1371, 4294901760
      %v2630 = vsub.f32 %v1371, %v2629
      %v2631 = vand.u32 %v2630, 4294901760
      %2632 = vmatmul.mubr.f32.gmra.mxu0 %v2631
      %v2633 = vpop.f32.mrf.mxu0
      %v2634 = vadd.f32 %v2411, %v2633
      %v2635 = vpop.f32.mrf.mxu0
      %v2636 = vadd.f32 %v2413, %v2635
      %v2637 = vand.u32 %v1380, 4294901760
      %v2638 = vsub.f32 %v1380, %v2637
      %v2639 = vand.u32 %v2638, 4294901760
      %2640 = vmatprep.mubr.f32.mxu0 %v2639
      %v2641 = vand.u32 %v1378, 4294901760
      %v2642 = vsub.f32 %v1378, %v2641
      %v2643 = vand.u32 %v2642, 4294901760
      %2644 = vmatmul.mubr.f32.gmra.mxu0 %v2643
      %v2645 = vpop.f32.mrf.mxu0
      %v2646 = vadd.f32 %v2421, %v2645
      %v2647 = vpop.f32.mrf.mxu0
      %v2648 = vadd.f32 %v2423, %v2647
      %2649 = vdwg.mxu0
      %v2650 = vand.u32 %v1413, 4294901760
      %v2651 = vsub.f32 %v1413, %v2650
      %v2652 = vand.u32 %v2651, 4294901760
      %2653 = vmatprep.subr.mxu0 %v2652
      %v2654 = vand.u32 %v1412, 4294901760
      %v2655 = vsub.f32 %v1412, %v2654
      %v2656 = vand.u32 %v2655, 4294901760
      %2657 = vmatpush1.msra.mxu0 %v2656
      %v2658 = vand.u32 %v1411, 4294901760
      %v2659 = vsub.f32 %v1411, %v2658
      %v2660 = vand.u32 %v2659, 4294901760
      %2661 = vmatprep.subr.mxu0 %v2660
      %v2662 = vand.u32 %v1410, 4294901760
      %v2663 = vsub.f32 %v1410, %v2662
      %v2664 = vand.u32 %v2663, 4294901760
      %2665 = vmatpush1.msra.mxu0 %v2664
      %v2666 = vand.u32 %v1409, 4294901760
      %v2667 = vsub.f32 %v1409, %v2666
      %v2668 = vand.u32 %v2667, 4294901760
      %2669 = vmatprep.subr.mxu0 %v2668
      %v2670 = vand.u32 %v1408, 4294901760
      %v2671 = vsub.f32 %v1408, %v2670
      %v2672 = vand.u32 %v2671, 4294901760
      %2673 = vmatpush1.msra.mxu0 %v2672
      %v2674 = vand.u32 %v1407, 4294901760
      %v2675 = vsub.f32 %v1407, %v2674
      %v2676 = vand.u32 %v2675, 4294901760
      %2677 = vmatprep.subr.mxu0 %v2676
      %v2678 = vand.u32 %v1406, 4294901760
      %v2679 = vsub.f32 %v1406, %v2678
      %v2680 = vand.u32 %v2679, 4294901760
      %2681 = vmatpush1.msra.mxu0 %v2680
      %v2682 = vand.u32 %v1405, 4294901760
      %v2683 = vsub.f32 %v1405, %v2682
      %v2684 = vand.u32 %v2683, 4294901760
      %2685 = vmatprep.subr.mxu0 %v2684
      %v2686 = vand.u32 %v1404, 4294901760
      %v2687 = vsub.f32 %v1404, %v2686
      %v2688 = vand.u32 %v2687, 4294901760
      %2689 = vmatpush1.msra.mxu0 %v2688
      %v2690 = vand.u32 %v1403, 4294901760
      %v2691 = vsub.f32 %v1403, %v2690
      %v2692 = vand.u32 %v2691, 4294901760
      %2693 = vmatprep.subr.mxu0 %v2692
      %v2694 = vand.u32 %v1402, 4294901760
      %v2695 = vsub.f32 %v1402, %v2694
      %v2696 = vand.u32 %v2695, 4294901760
      %2697 = vmatpush1.msra.mxu0 %v2696
      %v2698 = vand.u32 %v1401, 4294901760
      %v2699 = vsub.f32 %v1401, %v2698
      %v2700 = vand.u32 %v2699, 4294901760
      %2701 = vmatprep.subr.mxu0 %v2700
      %v2702 = vand.u32 %v1400, 4294901760
      %v2703 = vsub.f32 %v1400, %v2702
      %v2704 = vand.u32 %v2703, 4294901760
      %2705 = vmatpush1.msra.mxu0 %v2704
      %v2706 = vand.u32 %v1399, 4294901760
      %v2707 = vsub.f32 %v1399, %v2706
      %v2708 = vand.u32 %v2707, 4294901760
      %2709 = vmatprep.subr.mxu0 %v2708
      %v2710 = vand.u32 %v1398, 4294901760
      %v2711 = vsub.f32 %v1398, %v2710
      %v2712 = vand.u32 %v2711, 4294901760
      %2713 = vmatpush1.msra.mxu0 %v2712
      %v2714 = vand.u32 %v1397, 4294901760
      %v2715 = vsub.f32 %v1397, %v2714
      %v2716 = vand.u32 %v2715, 4294901760
      %2717 = vmatprep.subr.mxu0 %v2716
      %v2718 = vand.u32 %v1396, 4294901760
      %v2719 = vsub.f32 %v1396, %v2718
      %v2720 = vand.u32 %v2719, 4294901760
      %2721 = vmatpush1.msra.mxu0 %v2720
      %v2722 = vand.u32 %v1395, 4294901760
      %v2723 = vsub.f32 %v1395, %v2722
      %v2724 = vand.u32 %v2723, 4294901760
      %2725 = vmatprep.subr.mxu0 %v2724
      %v2726 = vand.u32 %v1394, 4294901760
      %v2727 = vsub.f32 %v1394, %v2726
      %v2728 = vand.u32 %v2727, 4294901760
      %2729 = vmatpush1.msra.mxu0 %v2728
      %v2730 = vand.u32 %v1393, 4294901760
      %v2731 = vsub.f32 %v1393, %v2730
      %v2732 = vand.u32 %v2731, 4294901760
      %2733 = vmatprep.subr.mxu0 %v2732
      %v2734 = vand.u32 %v1392, 4294901760
      %v2735 = vsub.f32 %v1392, %v2734
      %v2736 = vand.u32 %v2735, 4294901760
      %2737 = vmatpush1.msra.mxu0 %v2736
      %v2738 = vand.u32 %v1391, 4294901760
      %v2739 = vsub.f32 %v1391, %v2738
      %v2740 = vand.u32 %v2739, 4294901760
      %2741 = vmatprep.subr.mxu0 %v2740
      %v2742 = vand.u32 %v1390, 4294901760
      %v2743 = vsub.f32 %v1390, %v2742
      %v2744 = vand.u32 %v2743, 4294901760
      %2745 = vmatpush1.msra.mxu0 %v2744
      %v2746 = vand.u32 %v1389, 4294901760
      %v2747 = vsub.f32 %v1389, %v2746
      %v2748 = vand.u32 %v2747, 4294901760
      %2749 = vmatprep.subr.mxu0 %v2748
      %v2750 = vand.u32 %v1388, 4294901760
      %v2751 = vsub.f32 %v1388, %v2750
      %v2752 = vand.u32 %v2751, 4294901760
      %2753 = vmatpush1.msra.mxu0 %v2752
      %v2754 = vand.u32 %v1387, 4294901760
      %v2755 = vsub.f32 %v1387, %v2754
      %v2756 = vand.u32 %v2755, 4294901760
      %2757 = vmatprep.subr.mxu0 %v2756
      %v2758 = vand.u32 %v1386, 4294901760
      %v2759 = vsub.f32 %v1386, %v2758
      %v2760 = vand.u32 %v2759, 4294901760
      %2761 = vmatpush1.msra.mxu0 %v2760
      %v2762 = vand.u32 %v1385, 4294901760
      %v2763 = vsub.f32 %v1385, %v2762
      %v2764 = vand.u32 %v2763, 4294901760
      %2765 = vmatprep.subr.mxu0 %v2764
      %v2766 = vand.u32 %v1384, 4294901760
      %v2767 = vsub.f32 %v1384, %v2766
      %v2768 = vand.u32 %v2767, 4294901760
      %2769 = vmatpush1.msra.mxu0 %v2768
      %v2770 = vand.u32 %v1383, 4294901760
      %v2771 = vsub.f32 %v1383, %v2770
      %v2772 = vand.u32 %v2771, 4294901760
      %2773 = vmatprep.subr.mxu0 %v2772
      %v2774 = vand.u32 %v1382, 4294901760
      %v2775 = vsub.f32 %v1382, %v2774
      %v2776 = vand.u32 %v2775, 4294901760
      %2777 = vmatpush1.msra.mxu0 %v2776
      %v2778 = vand.u32 %v1445, 4294901760
      %v2779 = vsub.f32 %v1445, %v2778
      %v2780 = vand.u32 %v2779, 4294901760
      %2781 = vmatprep.subr.mxu0 %v2780
      %v2782 = vand.u32 %v1444, 4294901760
      %v2783 = vsub.f32 %v1444, %v2782
      %v2784 = vand.u32 %v2783, 4294901760
      %2785 = vmatpush2.msra.mxu0 %v2784
      %v2786 = vand.u32 %v1443, 4294901760
      %v2787 = vsub.f32 %v1443, %v2786
      %v2788 = vand.u32 %v2787, 4294901760
      %2789 = vmatprep.subr.mxu0 %v2788
      %v2790 = vand.u32 %v1442, 4294901760
      %v2791 = vsub.f32 %v1442, %v2790
      %v2792 = vand.u32 %v2791, 4294901760
      %2793 = vmatpush2.msra.mxu0 %v2792
      %v2794 = vand.u32 %v1441, 4294901760
      %v2795 = vsub.f32 %v1441, %v2794
      %v2796 = vand.u32 %v2795, 4294901760
      %2797 = vmatprep.subr.mxu0 %v2796
      %v2798 = vand.u32 %v1440, 4294901760
      %v2799 = vsub.f32 %v1440, %v2798
      %v2800 = vand.u32 %v2799, 4294901760
      %2801 = vmatpush2.msra.mxu0 %v2800
      %v2802 = vand.u32 %v1439, 4294901760
      %v2803 = vsub.f32 %v1439, %v2802
      %v2804 = vand.u32 %v2803, 4294901760
      %2805 = vmatprep.subr.mxu0 %v2804
      %v2806 = vand.u32 %v1438, 4294901760
      %v2807 = vsub.f32 %v1438, %v2806
      %v2808 = vand.u32 %v2807, 4294901760
      %2809 = vmatpush2.msra.mxu0 %v2808
      %v2810 = vand.u32 %v1437, 4294901760
      %v2811 = vsub.f32 %v1437, %v2810
      %v2812 = vand.u32 %v2811, 4294901760
      %2813 = vmatprep.subr.mxu0 %v2812
      %v2814 = vand.u32 %v1436, 4294901760
      %v2815 = vsub.f32 %v1436, %v2814
      %v2816 = vand.u32 %v2815, 4294901760
      %2817 = vmatpush2.msra.mxu0 %v2816
      %v2818 = vand.u32 %v1435, 4294901760
      %v2819 = vsub.f32 %v1435, %v2818
      %v2820 = vand.u32 %v2819, 4294901760
      %2821 = vmatprep.subr.mxu0 %v2820
      %v2822 = vand.u32 %v1434, 4294901760
      %v2823 = vsub.f32 %v1434, %v2822
      %v2824 = vand.u32 %v2823, 4294901760
      %2825 = vmatpush2.msra.mxu0 %v2824
      %v2826 = vand.u32 %v1433, 4294901760
      %v2827 = vsub.f32 %v1433, %v2826
      %v2828 = vand.u32 %v2827, 4294901760
      %2829 = vmatprep.subr.mxu0 %v2828
      %v2830 = vand.u32 %v1432, 4294901760
      %v2831 = vsub.f32 %v1432, %v2830
      %v2832 = vand.u32 %v2831, 4294901760
      %2833 = vmatpush2.msra.mxu0 %v2832
      %v2834 = vand.u32 %v1431, 4294901760
      %v2835 = vsub.f32 %v1431, %v2834
      %v2836 = vand.u32 %v2835, 4294901760
      %2837 = vmatprep.subr.mxu0 %v2836
      %v2838 = vand.u32 %v1430, 4294901760
      %v2839 = vsub.f32 %v1430, %v2838
      %v2840 = vand.u32 %v2839, 4294901760
      %2841 = vmatpush2.msra.mxu0 %v2840
      %v2842 = vand.u32 %v1429, 4294901760
      %v2843 = vsub.f32 %v1429, %v2842
      %v2844 = vand.u32 %v2843, 4294901760
      %2845 = vmatprep.subr.mxu0 %v2844
      %v2846 = vand.u32 %v1428, 4294901760
      %v2847 = vsub.f32 %v1428, %v2846
      %v2848 = vand.u32 %v2847, 4294901760
      %2849 = vmatpush2.msra.mxu0 %v2848
      %v2850 = vand.u32 %v1427, 4294901760
      %v2851 = vsub.f32 %v1427, %v2850
      %v2852 = vand.u32 %v2851, 4294901760
      %2853 = vmatprep.subr.mxu0 %v2852
      %v2854 = vand.u32 %v1426, 4294901760
      %v2855 = vsub.f32 %v1426, %v2854
      %v2856 = vand.u32 %v2855, 4294901760
      %2857 = vmatpush2.msra.mxu0 %v2856
      %v2858 = vand.u32 %v1425, 4294901760
      %v2859 = vsub.f32 %v1425, %v2858
      %v2860 = vand.u32 %v2859, 4294901760
      %2861 = vmatprep.subr.mxu0 %v2860
      %v2862 = vand.u32 %v1424, 4294901760
      %v2863 = vsub.f32 %v1424, %v2862
      %v2864 = vand.u32 %v2863, 4294901760
      %2865 = vmatpush2.msra.mxu0 %v2864
      %v2866 = vand.u32 %v1423, 4294901760
      %v2867 = vsub.f32 %v1423, %v2866
      %v2868 = vand.u32 %v2867, 4294901760
      %2869 = vmatprep.subr.mxu0 %v2868
      %v2870 = vand.u32 %v1422, 4294901760
      %v2871 = vsub.f32 %v1422, %v2870
      %v2872 = vand.u32 %v2871, 4294901760
      %2873 = vmatpush2.msra.mxu0 %v2872
      %v2874 = vand.u32 %v1421, 4294901760
      %v2875 = vsub.f32 %v1421, %v2874
      %v2876 = vand.u32 %v2875, 4294901760
      %2877 = vmatprep.subr.mxu0 %v2876
      %v2878 = vand.u32 %v1420, 4294901760
      %v2879 = vsub.f32 %v1420, %v2878
      %v2880 = vand.u32 %v2879, 4294901760
      %2881 = vmatpush2.msra.mxu0 %v2880
      %v2882 = vand.u32 %v1419, 4294901760
      %v2883 = vsub.f32 %v1419, %v2882
      %v2884 = vand.u32 %v2883, 4294901760
      %2885 = vmatprep.subr.mxu0 %v2884
      %v2886 = vand.u32 %v1418, 4294901760
      %v2887 = vsub.f32 %v1418, %v2886
      %v2888 = vand.u32 %v2887, 4294901760
      %2889 = vmatpush2.msra.mxu0 %v2888
      %v2890 = vand.u32 %v1417, 4294901760
      %v2891 = vsub.f32 %v1417, %v2890
      %v2892 = vand.u32 %v2891, 4294901760
      %2893 = vmatprep.subr.mxu0 %v2892
      %v2894 = vand.u32 %v1416, 4294901760
      %v2895 = vsub.f32 %v1416, %v2894
      %v2896 = vand.u32 %v2895, 4294901760
      %2897 = vmatpush2.msra.mxu0 %v2896
      %v2898 = vand.u32 %v1415, 4294901760
      %v2899 = vsub.f32 %v1415, %v2898
      %v2900 = vand.u32 %v2899, 4294901760
      %2901 = vmatprep.subr.mxu0 %v2900
      %v2902 = vand.u32 %v1414, 4294901760
      %v2903 = vsub.f32 %v1414, %v2902
      %v2904 = vand.u32 %v2903, 4294901760
      %2905 = vmatpush2.msra.mxu0 %v2904
      %v2906 = vand.u32 %v1331, 4294901760
      %2907 = vmatprep.mubr.f32.mxu0 %v2906
      %v2908 = vand.u32 %v1329, 4294901760
      %2909 = vmatmul.mubr.f32.gmra.mxu0 %v2908
      %v2910 = vpop.f32.mrf.mxu0
      %v2911 = vadd.f32 %v2562, %v2910
      %v2912 = vpop.f32.mrf.mxu0
      %v2913 = vadd.f32 %v2564, %v2912
      %v2914 = vand.u32 %v1338, 4294901760
      %2915 = vmatprep.mubr.f32.mxu0 %v2914
      %v2916 = vand.u32 %v1336, 4294901760
      %2917 = vmatmul.mubr.f32.gmra.mxu0 %v2916
      %v2918 = vpop.f32.mrf.mxu0
      %v2919 = vadd.f32 %v2574, %v2918
      %v2920 = vpop.f32.mrf.mxu0
      %v2921 = vadd.f32 %v2576, %v2920
      %v2922 = vand.u32 %v1345, 4294901760
      %2923 = vmatprep.mubr.f32.mxu0 %v2922
      %v2924 = vand.u32 %v1343, 4294901760
      %2925 = vmatmul.mubr.f32.gmra.mxu0 %v2924
      %v2926 = vpop.f32.mrf.mxu0
      %v2927 = vadd.f32 %v2586, %v2926
      %v2928 = vpop.f32.mrf.mxu0
      %v2929 = vadd.f32 %v2588, %v2928
      %v2930 = vand.u32 %v1352, 4294901760
      %2931 = vmatprep.mubr.f32.mxu0 %v2930
      %v2932 = vand.u32 %v1350, 4294901760
      %2933 = vmatmul.mubr.f32.gmra.mxu0 %v2932
      %v2934 = vpop.f32.mrf.mxu0
      %v2935 = vadd.f32 %v2598, %v2934
      %v2936 = vpop.f32.mrf.mxu0
      %v2937 = vadd.f32 %v2600, %v2936
      %v2938 = vand.u32 %v1359, 4294901760
      %2939 = vmatprep.mubr.f32.mxu0 %v2938
      %v2940 = vand.u32 %v1357, 4294901760
      %2941 = vmatmul.mubr.f32.gmra.mxu0 %v2940
      %v2942 = vpop.f32.mrf.mxu0
      %v2943 = vadd.f32 %v2610, %v2942
      %v2944 = vpop.f32.mrf.mxu0
      %v2945 = vadd.f32 %v2612, %v2944
      %v2946 = vand.u32 %v1366, 4294901760
      %2947 = vmatprep.mubr.f32.mxu0 %v2946
      %v2948 = vand.u32 %v1364, 4294901760
      %2949 = vmatmul.mubr.f32.gmra.mxu0 %v2948
      %v2950 = vpop.f32.mrf.mxu0
      %v2951 = vadd.f32 %v2622, %v2950
      %v2952 = vpop.f32.mrf.mxu0
      %v2953 = vadd.f32 %v2624, %v2952
      %v2954 = vand.u32 %v1373, 4294901760
      %2955 = vmatprep.mubr.f32.mxu0 %v2954
      %v2956 = vand.u32 %v1371, 4294901760
      %2957 = vmatmul.mubr.f32.gmra.mxu0 %v2956
      %v2958 = vpop.f32.mrf.mxu0
      %v2959 = vadd.f32 %v2634, %v2958
      %v2960 = vpop.f32.mrf.mxu0
      %v2961 = vadd.f32 %v2636, %v2960
      %v2962 = vand.u32 %v1380, 4294901760
      %2963 = vmatprep.mubr.f32.mxu0 %v2962
      %v2964 = vand.u32 %v1378, 4294901760
      %2965 = vmatmul.mubr.f32.gmra.mxu0 %v2964
      %v2966 = vpop.f32.mrf.mxu0
      %v2967 = vadd.f32 %v2646, %v2966
      %v2968 = vpop.f32.mrf.mxu0
      %v2969 = vadd.f32 %v2648, %v2968
      %2970 = vdwg.mxu0
      %v2971 = vand.u32 %v1413, 4294901760
      %2972 = vmatprep.subr.mxu0 %v2971
      %v2973 = vand.u32 %v1412, 4294901760
      %2974 = vmatpush1.msra.mxu0 %v2973
      %v2975 = vand.u32 %v1411, 4294901760
      %2976 = vmatprep.subr.mxu0 %v2975
      %v2977 = vand.u32 %v1410, 4294901760
      %2978 = vmatpush1.msra.mxu0 %v2977
      %v2979 = vand.u32 %v1409, 4294901760
      %2980 = vmatprep.subr.mxu0 %v2979
      %v2981 = vand.u32 %v1408, 4294901760
      %2982 = vmatpush1.msra.mxu0 %v2981
      %v2983 = vand.u32 %v1407, 4294901760
      %2984 = vmatprep.subr.mxu0 %v2983
      %v2985 = vand.u32 %v1406, 4294901760
      %2986 = vmatpush1.msra.mxu0 %v2985
      %v2987 = vand.u32 %v1405, 4294901760
      %2988 = vmatprep.subr.mxu0 %v2987
      %v2989 = vand.u32 %v1404, 4294901760
      %2990 = vmatpush1.msra.mxu0 %v2989
      %v2991 = vand.u32 %v1403, 4294901760
      %2992 = vmatprep.subr.mxu0 %v2991
      %v2993 = vand.u32 %v1402, 4294901760
      %2994 = vmatpush1.msra.mxu0 %v2993
      %v2995 = vand.u32 %v1401, 4294901760
      %2996 = vmatprep.subr.mxu0 %v2995
      %v2997 = vand.u32 %v1400, 4294901760
      %2998 = vmatpush1.msra.mxu0 %v2997
      %v2999 = vand.u32 %v1399, 4294901760
      %3000 = vmatprep.subr.mxu0 %v2999
      %v3001 = vand.u32 %v1398, 4294901760
      %3002 = vmatpush1.msra.mxu0 %v3001
      %v3003 = vand.u32 %v1397, 4294901760
      %3004 = vmatprep.subr.mxu0 %v3003
      %v3005 = vand.u32 %v1396, 4294901760
      %3006 = vmatpush1.msra.mxu0 %v3005
      %v3007 = vand.u32 %v1395, 4294901760
      %3008 = vmatprep.subr.mxu0 %v3007
      %v3009 = vand.u32 %v1394, 4294901760
      %3010 = vmatpush1.msra.mxu0 %v3009
      %v3011 = vand.u32 %v1393, 4294901760
      %3012 = vmatprep.subr.mxu0 %v3011
      %v3013 = vand.u32 %v1392, 4294901760
      %3014 = vmatpush1.msra.mxu0 %v3013
      %v3015 = vand.u32 %v1391, 4294901760
      %3016 = vmatprep.subr.mxu0 %v3015
      %v3017 = vand.u32 %v1390, 4294901760
      %3018 = vmatpush1.msra.mxu0 %v3017
      %v3019 = vand.u32 %v1389, 4294901760
      %3020 = vmatprep.subr.mxu0 %v3019
      %v3021 = vand.u32 %v1388, 4294901760
      %3022 = vmatpush1.msra.mxu0 %v3021
      %v3023 = vand.u32 %v1387, 4294901760
      %3024 = vmatprep.subr.mxu0 %v3023
      %v3025 = vand.u32 %v1386, 4294901760
      %3026 = vmatpush1.msra.mxu0 %v3025
      %v3027 = vand.u32 %v1385, 4294901760
      %3028 = vmatprep.subr.mxu0 %v3027
      %v3029 = vand.u32 %v1384, 4294901760
      %3030 = vmatpush1.msra.mxu0 %v3029
      %v3031 = vand.u32 %v1383, 4294901760
      %3032 = vmatprep.subr.mxu0 %v3031
      %v3033 = vand.u32 %v1382, 4294901760
      %3034 = vmatpush1.msra.mxu0 %v3033
      %v3035 = vand.u32 %v1445, 4294901760
      %3036 = vmatprep.subr.mxu0 %v3035
      %v3037 = vand.u32 %v1444, 4294901760
      %3038 = vmatpush2.msra.mxu0 %v3037
      %v3039 = vand.u32 %v1443, 4294901760
      %3040 = vmatprep.subr.mxu0 %v3039
      %v3041 = vand.u32 %v1442, 4294901760
      %3042 = vmatpush2.msra.mxu0 %v3041
      %v3043 = vand.u32 %v1441, 4294901760
      %3044 = vmatprep.subr.mxu0 %v3043
      %v3045 = vand.u32 %v1440, 4294901760
      %3046 = vmatpush2.msra.mxu0 %v3045
      %v3047 = vand.u32 %v1439, 4294901760
      %3048 = vmatprep.subr.mxu0 %v3047
      %v3049 = vand.u32 %v1438, 4294901760
      %3050 = vmatpush2.msra.mxu0 %v3049
      %v3051 = vand.u32 %v1437, 4294901760
      %3052 = vmatprep.subr.mxu0 %v3051
      %v3053 = vand.u32 %v1436, 4294901760
      %3054 = vmatpush2.msra.mxu0 %v3053
      %v3055 = vand.u32 %v1435, 4294901760
      %3056 = vmatprep.subr.mxu0 %v3055
      %v3057 = vand.u32 %v1434, 4294901760
      %3058 = vmatpush2.msra.mxu0 %v3057
      %v3059 = vand.u32 %v1433, 4294901760
      %3060 = vmatprep.subr.mxu0 %v3059
      %v3061 = vand.u32 %v1432, 4294901760
      %3062 = vmatpush2.msra.mxu0 %v3061
      %v3063 = vand.u32 %v1431, 4294901760
      %3064 = vmatprep.subr.mxu0 %v3063
      %v3065 = vand.u32 %v1430, 4294901760
      %3066 = vmatpush2.msra.mxu0 %v3065
      %v3067 = vand.u32 %v1429, 4294901760
      %3068 = vmatprep.subr.mxu0 %v3067
      %v3069 = vand.u32 %v1428, 4294901760
      %3070 = vmatpush2.msra.mxu0 %v3069
      %v3071 = vand.u32 %v1427, 4294901760
      %3072 = vmatprep.subr.mxu0 %v3071
      %v3073 = vand.u32 %v1426, 4294901760
      %3074 = vmatpush2.msra.mxu0 %v3073
      %v3075 = vand.u32 %v1425, 4294901760
      %3076 = vmatprep.subr.mxu0 %v3075
      %v3077 = vand.u32 %v1424, 4294901760
      %3078 = vmatpush2.msra.mxu0 %v3077
      %v3079 = vand.u32 %v1423, 4294901760
      %3080 = vmatprep.subr.mxu0 %v3079
      %v3081 = vand.u32 %v1422, 4294901760
      %3082 = vmatpush2.msra.mxu0 %v3081
      %v3083 = vand.u32 %v1421, 4294901760
      %3084 = vmatprep.subr.mxu0 %v3083
      %v3085 = vand.u32 %v1420, 4294901760
      %3086 = vmatpush2.msra.mxu0 %v3085
      %v3087 = vand.u32 %v1419, 4294901760
      %3088 = vmatprep.subr.mxu0 %v3087
      %v3089 = vand.u32 %v1418, 4294901760
      %3090 = vmatpush2.msra.mxu0 %v3089
      %v3091 = vand.u32 %v1417, 4294901760
      %3092 = vmatprep.subr.mxu0 %v3091
      %v3093 = vand.u32 %v1416, 4294901760
      %3094 = vmatpush2.msra.mxu0 %v3093
      %v3095 = vand.u32 %v1415, 4294901760
      %3096 = vmatprep.subr.mxu0 %v3095
      %v3097 = vand.u32 %v1414, 4294901760
      %3098 = vmatpush2.msra.mxu0 %v3097
      %v3099 = vand.u32 %v1331, 4294901760
      %3100 = vmatprep.mubr.f32.mxu0 %v3099
      %v3101 = vand.u32 %v1329, 4294901760
      %3102 = vmatmul.mubr.f32.gmra.mxu0 %v3101
      %v3103 = vpop.f32.mrf.mxu0
      %v3104 = vadd.f32 %v2911, %v3103
      %v3105 = vpop.f32.mrf.mxu0
      %v3106 = vadd.f32 %v2913, %v3105
      %v3107 = vand.u32 %v1338, 4294901760
      %3108 = vmatprep.mubr.f32.mxu0 %v3107
      %v3109 = vand.u32 %v1336, 4294901760
      %3110 = vmatmul.mubr.f32.gmra.mxu0 %v3109
      %v3111 = vpop.f32.mrf.mxu0
      %v3112 = vadd.f32 %v2919, %v3111
      %v3113 = vpop.f32.mrf.mxu0
      %v3114 = vadd.f32 %v2921, %v3113
      %v3115 = vand.u32 %v1345, 4294901760
      %3116 = vmatprep.mubr.f32.mxu0 %v3115
      %v3117 = vand.u32 %v1343, 4294901760
      %3118 = vmatmul.mubr.f32.gmra.mxu0 %v3117
      %v3119 = vpop.f32.mrf.mxu0
      %v3120 = vadd.f32 %v2927, %v3119
      %v3121 = vpop.f32.mrf.mxu0
      %v3122 = vadd.f32 %v2929, %v3121
      %v3123 = vand.u32 %v1352, 4294901760
      %3124 = vmatprep.mubr.f32.mxu0 %v3123
      %v3125 = vand.u32 %v1350, 4294901760
      %3126 = vmatmul.mubr.f32.gmra.mxu0 %v3125
      %v3127 = vpop.f32.mrf.mxu0
      %v3128 = vadd.f32 %v2935, %v3127
      %v3129 = vpop.f32.mrf.mxu0
      %v3130 = vadd.f32 %v2937, %v3129
      %v3131 = vand.u32 %v1359, 4294901760
      %3132 = vmatprep.mubr.f32.mxu0 %v3131
      %v3133 = vand.u32 %v1357, 4294901760
      %3134 = vmatmul.mubr.f32.gmra.mxu0 %v3133
      %v3135 = vpop.f32.mrf.mxu0
      %v3136 = vadd.f32 %v2943, %v3135
      %v3137 = vpop.f32.mrf.mxu0
      %v3138 = vadd.f32 %v2945, %v3137
      %v3139 = vand.u32 %v1366, 4294901760
      %3140 = vmatprep.mubr.f32.mxu0 %v3139
      %v3141 = vand.u32 %v1364, 4294901760
      %3142 = vmatmul.mubr.f32.gmra.mxu0 %v3141
      %v3143 = vpop.f32.mrf.mxu0
      %v3144 = vadd.f32 %v2951, %v3143
      %v3145 = vpop.f32.mrf.mxu0
      %v3146 = vadd.f32 %v2953, %v3145
      %v3147 = vand.u32 %v1373, 4294901760
      %3148 = vmatprep.mubr.f32.mxu0 %v3147
      %v3149 = vand.u32 %v1371, 4294901760
      %3150 = vmatmul.mubr.f32.gmra.mxu0 %v3149
      %v3151 = vpop.f32.mrf.mxu0
      %v3152 = vadd.f32 %v2959, %v3151
      %v3153 = vpop.f32.mrf.mxu0
      %v3154 = vadd.f32 %v2961, %v3153
      %v3155 = vand.u32 %v1380, 4294901760
      %3156 = vmatprep.mubr.f32.mxu0 %v3155
      %v3157 = vand.u32 %v1378, 4294901760
      %3158 = vmatmul.mubr.f32.gmra.mxu0 %v3157
      %v3159 = vpop.f32.mrf.mxu0
      %v3160 = vadd.f32 %v2967, %v3159
      %v3161 = vpop.f32.mrf.mxu0
      %v3162 = vadd.f32 %v2969, %v3161
      %3163 = vdwg.mxu0
      %3164 = vst [vmem:[%s241] sm:$0xff] %v3104
      %3165 = vst [vmem:[%s241 + $0x8] sm:$0xff] %v3106
      %3166 = vst [vmem:[%s241 + $0x10] sm:$0xff] %v3112
      %3167 = vst [vmem:[%s241 + $0x18] sm:$0xff] %v3114
      %3168 = vst [vmem:[%s241 + $0x20] sm:$0xff] %v3120
      %3169 = vst [vmem:[%s241 + $0x28] sm:$0xff] %v3122
      %3170 = vst [vmem:[%s241 + $0x30] sm:$0xff] %v3128
      %3171 = vst [vmem:[%s241 + $0x38] sm:$0xff] %v3130
      %3172 = vst [vmem:[%s241 + $0x40] sm:$0xff] %v3136
      %3173 = vst [vmem:[%s241 + $0x48] sm:$0xff] %v3138
      %3174 = vst [vmem:[%s241 + $0x50] sm:$0xff] %v3144
      %3175 = vst [vmem:[%s241 + $0x58] sm:$0xff] %v3146
      %3176 = vst [vmem:[%s241 + $0x60] sm:$0xff] %v3152
      %3177 = vst [vmem:[%s241 + $0x68] sm:$0xff] %v3154
      %3178 = vst [vmem:[%s241 + $0x70] sm:$0xff] %v3160
      %3179 = vst [vmem:[%s241 + $0x78] sm:$0xff] %v3162
      %s3180 = smul.u32 4, %s20
      %s3181 = smul.u32 2, %s21
      %p3182 = scmp.lt.s32.totalorder %s19, 1
      %s3183 = scalar_select %p3182, %s19, 1
      %p3184 = scmp.lt.s32.totalorder %s3180, 3
      %s3185 = scalar_select %p3184, %s3180, 3
      %p3186 = scmp.lt.s32.totalorder %s3181, 1
      %s3187 = scalar_select %p3186, %s3181, 1
      %s3188 = smul.addr %s3185, 4
      %s3189 = sadd.s32 %s3187, %s3188
      %s3190 = smul.addr %s3183, 16
      %s3191 = sadd.s32 %s3189, %s3190
      %s3192 = smul.addr %s3191, 8
      %s3193 = scalar_lea.vmem %s3, %s3192
      // Predicated region
      $region33: #{_lambda_.1} parent=31 // pred_check
        %p3194 = pneg %p127
      $region34: #{_lambda_.1} parent=31 // pred_check_branch
        %3196 = sbr.rel (%p3194) target = $region36
      $region35: #{_lambda_.1} parent=31 // pred_region
        %s3197 = smul.u32 4, %s20
        %s3198 = smul.u32 2, %s21
      $region36: #{_lambda_.1} parent=31 // pred_fallthru
        _
    $region32: #{_lambda_.1} parent=5 // pred_fallthru
      _
    %p3199 = scmp.le.s32.totalorder 2, %s9
    // Predicated region
    $region37: #{_lambda_.1} parent=5 // pred_check
      %p3200 = pneg %p3199
    $region38: #{_lambda_.1} parent=5 // pred_check_branch
      %3202 = sbr.rel (%p3200) target = $region40
    $region39: #{_lambda_.1} parent=5 // pred_region
      %s3203 = ssub.s32 %s9, 2
      // Predicated region
      $region41: #{_lambda_.1} parent=39 // pred_check
        %p3204 = pneg %p133
      $region42: #{_lambda_.1} parent=39 // pred_check_branch
        %3206 = sbr.rel (%p3204) target = $region44
      $region43: #{_lambda_.1} parent=39 // pred_region
        %s3207 = smul.u32 4, %s23
        %s3208 = smul.u32 2, %s24
        %p3209 = scmp.lt.s32.totalorder %s22, 1
        %s3210 = scalar_select %p3209, %s22, 1
        %p3211 = scmp.lt.s32.totalorder %s3207, 3
        %s3212 = scalar_select %p3211, %s3207, 3
        %p3213 = scmp.lt.s32.totalorder %s3208, 1
        %s3214 = scalar_select %p3213, %s3208, 1
        %s3215 = smul.addr %s3212, 4
        %s3216 = sadd.s32 %s3214, %s3215
        %s3217 = smul.addr %s3210, 16
        %s3218 = sadd.s32 %s3216, %s3217
        %s3219 = smul.addr %s3218, 8
        %s3220 = scalar_lea.vmem %s3, %s3219
      $region44: #{_lambda_.1} parent=39 // pred_fallthru
        _
    $region40: #{_lambda_.1} parent=5 // pred_fallthru
      _
  $region6: #{_lambda_.1} parent=0 // loop_footer
    %s13 = sadd.s32 1, %s9
  $region7: #{_lambda_.1} parent=0 // loop_footer_branch
    %8 = sbr.rel target = $region3
  $region8: #{_lambda_.1} parent=0 // loop_exit
    _

</llo_original>
